<compile_context>
chip_gen: v5e
topology: v5e:2x2
jax: 0.10.0
libtpu: 0.0.40
codegen_flags: <defaults>
</compile_context>

<pallas_src>
import jax
import jax.numpy as jnp
from jax import lax
from jax.experimental import pallas as pl
from jax.experimental.pallas import tpu as pltpu

# ----------------------------- model config ---------------------------------
INPUT_SIZE = 16
HIDDEN_SIZE = 32
OUTPUT_SIZE = 8
NUM_EXPERTS = 4
NUM_LAYERS = 3
NHEAD = 4
HEAD_DIM = HIDDEN_SIZE // NHEAD
DIM_FF = 2048            # nn.TransformerEncoderLayer default dim_feedforward
LN_EPS = 1e-5
BATCH = 8

# Kernel input order (after x).  FFN weights live in HBM and are DMA'd
# manually so their load overlaps the MoE + attention compute.
_ARG_ORDER = (
    "moe0_w", "moe0_b", "moe1_w", "moe1_b", "moe2_w", "moe2_b",
    "wqkv", "bqkv", "wo", "ob", "ln1w", "ln1b", "ln2w", "ln2b",
    "ffn_w1", "ffn_b1", "ffn_w2t", "ffn_b2",
    "wa", "ba", "wb", "bb",
)
_HBM_ARGS = ("ffn_w1", "ffn_w2t")


# ----------------------------- kernel stages ---------------------------------
def _layernorm(x, w, b):
    mu = jnp.mean(x, axis=-1, keepdims=True)
    var = jnp.mean((x - mu) ** 2, axis=-1, keepdims=True)
    return (x - mu) * lax.rsqrt(var + LN_EPS) * w + b


def _moe_stage(x, w_ref, b_ref):
    """One MoE layer.  w_ref is (Din, E*H + E): experts lane-packed in lanes
    0:128, gating weights in lanes 128:132 -> a single MXU matmul."""
    allv = (jnp.dot(x, w_ref[...], preferred_element_type=jnp.float32)
            + b_ref[...])                                      # (B, 132)

    # Row-0 top-2 on the raw gating logits (softmax is monotone; only the
    # ranking is consumed, exactly like `top_k_indices[0]` in the torch code).
    base = NUM_EXPERTS * HIDDEN_SIZE
    l0 = allv[0:1, base:base + NUM_EXPERTS]                    # (1, E)
    iota = lax.broadcasted_iota(jnp.int32, l0.shape, 1)
    big = jnp.int32(NUM_EXPERTS)
    m1 = jnp.max(l0)
    idx1 = jnp.min(jnp.where(l0 == m1, iota, big))             # first argmax
    l0m = jnp.where(iota == idx1, -jnp.inf, l0)
    m2 = jnp.max(l0m)
    idx2 = jnp.min(jnp.where(l0m == m2, iota, big))            # second

    # Mean of the two selected experts: scalar selects on static 32-lane slices.
    y = jnp.zeros((x.shape[0], HIDDEN_SIZE), jnp.float32)
    for e in range(NUM_EXPERTS):
        sel = 0.5 * ((idx1 == e).astype(jnp.float32)
                     + (idx2 == e).astype(jnp.float32))
        y = y + sel * allv[:, e * HIDDEN_SIZE:(e + 1) * HIDDEN_SIZE]
    return y


def _attention_block(x, wqkv_ref, bqkv_ref, wo_ref, ob_ref, ln1w_ref, ln1b_ref):
    """Post-norm MHA + residual + LayerNorm1.  One fused QKV matmul, per-head
    static lane slices, one output projection matmul."""
    scale = 1.0 / (HEAD_DIM ** 0.5)
    qkv = (jnp.dot(x, wqkv_ref[...], preferred_element_type=jnp.float32)
           + bqkv_ref[...])                                    # (L, 96)

    heads = []
    for h in range(NHEAD):
        q = qkv[:, h * HEAD_DIM:(h + 1) * HEAD_DIM]
        k = qkv[:, HIDDEN_SIZE + h * HEAD_DIM:HIDDEN_SIZE + (h + 1) * HEAD_DIM]
        v = qkv[:, 2 * HIDDEN_SIZE + h * HEAD_DIM:
                2 * HIDDEN_SIZE + (h + 1) * HEAD_DIM]
        s = lax.dot_general(q, k, (((1,), (1,)), ((), ())),
                            preferred_element_type=jnp.float32) * scale  # (L, L)
        m = jnp.max(s, axis=-1, keepdims=True)
        p = jnp.exp(s - m)
        p = p * pl.reciprocal(jnp.sum(p, axis=-1, keepdims=True), approx=True)
        heads.append(jnp.dot(p, v, preferred_element_type=jnp.float32))  # (L, dh)

    o_cat = jnp.concatenate(heads, axis=-1)                    # (L, D)
    attn = (jnp.dot(o_cat, wo_ref[...], preferred_element_type=jnp.float32)
            + ob_ref[...])
    return _layernorm(x + attn, ln1w_ref[...], ln1b_ref[...])


def _ffn_block(y, w1_ref, b1_ref, w2t_ref, b2_ref, ln2w_ref, ln2b_ref):
    """FFN (ReLU) + residual + LayerNorm2.  w2 is stored transposed (32,2048)
    and contracted on the lane axis (NT matmul) to keep the DMA lane-dense."""
    h1 = jnp.maximum(
        jnp.dot(y, w1_ref[...], preferred_element_type=jnp.float32) + b1_ref[...],
        0.0)                                                   # (L, DIM_FF)
    ff = lax.dot_general(h1, w2t_ref[...], (((1,), (1,)), ((), ())),
                         preferred_element_type=jnp.float32) + b2_ref[...]
    return _layernorm(y + ff, ln2w_ref[...], ln2b_ref[...])


def _head_stage(x, wa_ref, ba_ref, wb_ref, bb_ref):
    """Algebraically folded head: relu(x@Wa + ba)@Wb + bb (5 matmuls -> 2)."""
    h = jnp.maximum(
        jnp.dot(x, wa_ref[...], preferred_element_type=jnp.float32) + ba_ref[...],
        0.0)
    return jnp.dot(h, wb_ref[...], preferred_element_type=jnp.float32) + bb_ref[...]


def _liquid_kernel(x_ref,
                   mw0, mb0, mw1, mb1, mw2, mb2,
                   wqkv, bqkv, wo, ob, ln1w, ln1b, ln2w, ln2b,
                   w1_hbm, b1, w2t_hbm, b2,
                   wa, ba, wb, bb,
                   o_ref,
                   w1_vmem, w2t_vmem, dma_sem):
    # Kick off the FFN weight DMA immediately; it is hidden behind the
    # 3 MoE layers + attention and only waited on right before the FFN dots.
    cp_w1 = pltpu.make_async_copy(w1_hbm, w1_vmem, dma_sem.at[0])
    cp_w2 = pltpu.make_async_copy(w2t_hbm, w2t_vmem, dma_sem.at[1])
    cp_w1.start()
    cp_w2.start()

    x = x_ref[...]
    x = _moe_stage(x, mw0, mb0)
    x = _moe_stage(x, mw1, mb1)
    x = _moe_stage(x, mw2, mb2)
    x = _attention_block(x, wqkv, bqkv, wo, ob, ln1w, ln1b)

    cp_w1.wait()
    cp_w2.wait()
    x = _ffn_block(x, w1_vmem, b1, w2t_vmem, b2, ln2w, ln2b)

    o_ref[...] = _head_stage(x, wa, ba, wb, bb)


# ----------------------------- one-time param packing ------------------------
def pack_params(params):
    """Repack logical (torch-like) params into kernel-ready layouts.

    Run ONCE at init / parameter-update time; the hot path (`liquid_forward`)
    does no repacking, transposes or algebraic folds."""
    packed = {}

    # MoE: lane-pack experts (E, Din, H) -> (Din, E*H) and concatenate the
    # gating weight so logits ride on the same matmul -> (Din, E*H + E).
    for i, p in enumerate(params["moe"]):
        ew = p["ew"]                                            # (E, Din, H)
        eb = p["eb"]                                            # (E, 1, H)
        din = ew.shape[1]
        ew_pk = jnp.transpose(ew, (1, 0, 2)).reshape(din, NUM_EXPERTS * HIDDEN_SIZE)
        eb_pk = eb.reshape(1, NUM_EXPERTS * HIDDEN_SIZE)
        packed[f"moe{i}_w"] = jnp.concatenate([ew_pk, p["gw"]], axis=1)   # (Din,132)
        packed[f"moe{i}_b"] = jnp.concatenate([eb_pk, p["gb"]], axis=1)   # (1,132)

    # Transformer: fused QKV weight stays (D, 3D); FFN w2 stored transposed
    # (lane-dense (32, 2048)).
    t = params["transformer"]
    packed["wqkv"] = t["in_w"]                                  # (32, 96)
    packed["bqkv"] = t["in_b"]                                  # (1, 96)
    packed["wo"] = t["out_w"]
    packed["ob"] = t["out_b"]
    packed["ln1w"], packed["ln1b"] = t["ln1_w"], t["ln1_b"]
    packed["ln2w"], packed["ln2b"] = t["ln2_w"], t["ln2_b"]
    packed["ffn_w1"] = t["w1"]                                  # (32, 2048)
    packed["ffn_b1"] = t["b1"]                                  # (1, 2048)
    packed["ffn_w2t"] = t["w2"].T                               # (32, 2048)
    packed["ffn_b2"] = t["b2"]                                  # (1, 32)

    # Head: fold ff->cf->k1 and k2->out (exact up to fp reassociation).
    h = params["head"]
    packed["wa"] = h["ff_w"] @ h["cf_w"] @ h["k1_w"]            # (32, 32)
    packed["ba"] = (h["ff_b"] @ h["cf_w"] @ h["k1_w"]
                    + h["cf_b"] @ h["k1_w"] + h["k1_b"])        # (1, 32)
    packed["wb"] = h["k2_w"] @ h["out_w"]                       # (32, 8)
    packed["bb"] = h["k2_b"] @ h["out_w"] + h["out_b"]          # (1, 8)
    return packed


# ----------------------------- pallas_call glue ------------------------------
@jax.jit
def liquid_forward(packed, x):
    vmem = pl.BlockSpec(memory_space=pltpu.MemorySpace.VMEM)
    hbm = pl.BlockSpec(memory_space=pl.ANY)
    args = [x] + [packed[k] for k in _ARG_ORDER]
    in_specs = [vmem] + [hbm if k in _HBM_ARGS else vmem for k in _ARG_ORDER]
    return pl.pallas_call(
        _liquid_kernel,
        out_shape=jax.ShapeDtypeStruct((x.shape[0], OUTPUT_SIZE), jnp.float32),
        in_specs=in_specs,
        out_specs=vmem,
        scratch_shapes=[
            pltpu.VMEM((HIDDEN_SIZE, DIM_FF), jnp.float32),   # FFN w1
            pltpu.VMEM((HIDDEN_SIZE, DIM_FF), jnp.float32),   # FFN w2^T
            pltpu.SemaphoreType.DMA((2,)),
        ],
    )(*args)


def liquid_forward_with_loss(packed, x, targets):
    out = liquid_forward(packed, x)
    return out, jnp.mean((out - targets) ** 2)   # glue: F.mse_loss


# ----------------------------- parameter init --------------------------------
def _linear(key, fan_in, fan_out):
    kw, kb = jax.random.split(key)
    bound = 1.0 / (fan_in ** 0.5)
    w = jax.random.uniform(kw, (fan_in, fan_out), jnp.float32, -bound, bound)
    b = jax.random.uniform(kb, (1, fan_out), jnp.float32, -bound, bound)
    return w, b


def init_params(key):
    keys = jax.random.split(key, 32)
    ki = iter(keys)
    params = {"moe": [], "transformer": {}, "head": {}}

    for layer in range(NUM_LAYERS):
        din = INPUT_SIZE if layer == 0 else HIDDEN_SIZE
        gw, gb = _linear(next(ki), din, NUM_EXPERTS)
        ews, ebs = [], []
        for _ in range(NUM_EXPERTS):
            w, b = _linear(next(ki), din, HIDDEN_SIZE)
            ews.append(w)
            ebs.append(b)
        params["moe"].append({
            "gw": gw, "gb": gb,
            "ew": jnp.stack(ews),                       # (E, din, H)
            "eb": jnp.stack(ebs),                       # (E, 1, H)
        })

    in_w, in_b = _linear(next(ki), HIDDEN_SIZE, 3 * HIDDEN_SIZE)
    out_w, out_b = _linear(next(ki), HIDDEN_SIZE, HIDDEN_SIZE)
    w1, b1 = _linear(next(ki), HIDDEN_SIZE, DIM_FF)
    w2, b2 = _linear(next(ki), DIM_FF, HIDDEN_SIZE)
    params["transformer"] = {
        "in_w": in_w, "in_b": in_b, "out_w": out_w, "out_b": out_b,
        "ln1_w": jnp.ones((1, HIDDEN_SIZE), jnp.float32),
        "ln1_b": jnp.zeros((1, HIDDEN_SIZE), jnp.float32),
        "ln2_w": jnp.ones((1, HIDDEN_SIZE), jnp.float32),
        "ln2_b": jnp.zeros((1, HIDDEN_SIZE), jnp.float32),
        "w1": w1, "b1": b1, "w2": w2, "b2": b2,
    }

    ff_w, ff_b = _linear(next(ki), HIDDEN_SIZE, HIDDEN_SIZE)
    cf_w, cf_b = _linear(next(ki), HIDDEN_SIZE, HIDDEN_SIZE)
    k1_w, k1_b = _linear(next(ki), HIDDEN_SIZE, HIDDEN_SIZE)
    k2_w, k2_b = _linear(next(ki), HIDDEN_SIZE, HIDDEN_SIZE)
    o_w, o_b = _linear(next(ki), HIDDEN_SIZE, OUTPUT_SIZE)
    params["head"] = {
        "ff_w": ff_w, "ff_b": ff_b, "cf_w": cf_w, "cf_b": cf_b,
        "k1_w": k1_w, "k1_b": k1_b, "k2_w": k2_w, "k2_b": k2_b,
        "out_w": o_w, "out_b": o_b,
    }
    return params


# ----------------------------- pure-JAX reference ----------------------------
def _ln(x, w, b):
    mu = x.mean(-1, keepdims=True)
    var = ((x - mu) ** 2).mean(-1, keepdims=True)
    return (x - mu) / jnp.sqrt(var + LN_EPS) * w + b


def ref_forward(params, x):
    for p in params["moe"]:
        scores = jax.nn.softmax(x @ p["gw"] + p["gb"], axis=-1)
        _, idx = lax.top_k(scores[0], 2)                # row-0 indices, like torch
        acc = 0.0
        for e in range(NUM_EXPERTS):
            sel = 0.5 * ((idx[0] == e).astype(jnp.float32)
                         + (idx[1] == e).astype(jnp.float32))
            acc = acc + sel * (x @ p["ew"][e] + p["eb"][e])
        x = acc
    t = params["transformer"]
    D, dh = HIDDEN_SIZE, HEAD_DIM
    qkv = x @ t["in_w"] + t["in_b"]
    q, k, v = qkv[:, :D], qkv[:, D:2 * D], qkv[:, 2 * D:]
    outs = []
    for h in range(NHEAD):
        qh, kh, vh = (a[:, h * dh:(h + 1) * dh] for a in (q, k, v))
        a = jax.nn.softmax(qh @ kh.T / (dh ** 0.5), axis=-1)
        outs.append(a @ vh)
    attn = jnp.concatenate(outs, axis=-1) @ t["out_w"] + t["out_b"]
    y = _ln(x + attn, t["ln1_w"], t["ln1_b"])
    ff = jax.nn.relu(y @ t["w1"] + t["b1"]) @ t["w2"] + t["b2"]
    x = _ln(y + ff, t["ln2_w"], t["ln2_b"])
    h = params["head"]
    x = x @ h["ff_w"] + h["ff_b"]
    x = x @ h["cf_w"] + h["cf_b"]
    x = jax.nn.relu(x @ h["k1_w"] + h["k1_b"]) @ h["k2_w"] + h["k2_b"]
    return x @ h["out_w"] + h["out_b"]


# ----------------------------------- main ------------------------------------
if __name__ == "__main__":
    key = jax.random.PRNGKey(0)
    kp, kx = jax.random.split(key)
    params = init_params(kp)
    x = jax.random.normal(kx, (BATCH, INPUT_SIZE), jnp.float32)

    packed = pack_params(params)            # one-time repack (not in hot path)

    out = liquid_forward(packed, x)
    out = jax.block_until_ready(out)
    assert out.shape == (BATCH, OUTPUT_SIZE), out.shape

    ref = jax.block_until_ready(ref_forward(params, x))
    assert jnp.allclose(out, ref, rtol=1e-3, atol=1e-3), \
        f"max abs err {jnp.max(jnp.abs(out - ref))}"

    print("KERNEL_OK")
</pallas_src>

<mosaic_0001>
module attributes {stable_mosaic.version = 11 : i64} {
  func.func @_liquid_kernel(%arg0: memref<8x16xf32, #tpu.memory_space<vmem>>, %arg1: memref<16x132xf32, #tpu.memory_space<vmem>>, %arg2: memref<1x132xf32, #tpu.memory_space<vmem>>, %arg3: memref<32x132xf32, #tpu.memory_space<vmem>>, %arg4: memref<1x132xf32, #tpu.memory_space<vmem>>, %arg5: memref<32x132xf32, #tpu.memory_space<vmem>>, %arg6: memref<1x132xf32, #tpu.memory_space<vmem>>, %arg7: memref<32x96xf32, #tpu.memory_space<vmem>>, %arg8: memref<1x96xf32, #tpu.memory_space<vmem>>, %arg9: memref<32x32xf32, #tpu.memory_space<vmem>>, %arg10: memref<1x32xf32, #tpu.memory_space<vmem>>, %arg11: memref<1x32xf32, #tpu.memory_space<vmem>>, %arg12: memref<1x32xf32, #tpu.memory_space<vmem>>, %arg13: memref<1x32xf32, #tpu.memory_space<vmem>>, %arg14: memref<1x32xf32, #tpu.memory_space<vmem>>, %arg15: memref<32x2048xf32, #tpu.memory_space<any>>, %arg16: memref<1x2048xf32, #tpu.memory_space<vmem>>, %arg17: memref<32x2048xf32, #tpu.memory_space<any>>, %arg18: memref<1x32xf32, #tpu.memory_space<vmem>>, %arg19: memref<32x32xf32, #tpu.memory_space<vmem>>, %arg20: memref<1x32xf32, #tpu.memory_space<vmem>>, %arg21: memref<32x8xf32, #tpu.memory_space<vmem>>, %arg22: memref<1x8xf32, #tpu.memory_space<vmem>>, %arg23: memref<8x8xf32, #tpu.memory_space<vmem>>, %arg24: memref<32x2048xf32, #tpu.memory_space<vmem>>, %arg25: memref<32x2048xf32, #tpu.memory_space<vmem>>, %arg26: memref<2x!tpu.dma_semaphore, #tpu.memory_space<semaphore_mem>>) attributes {dimension_semantics = [], scalar_prefetch = 0 : i64, scratch_operands = 3 : i64, tpu.core_type = #tpu.core_type<tc>} {
    %c0_i32 = arith.constant 0 : i32
    %0 = tpu.memref_slice %arg26[%c0_i32] : memref<2x!tpu.dma_semaphore, #tpu.memory_space<semaphore_mem>> -> memref<1x!tpu.dma_semaphore, #tpu.memory_space<semaphore_mem>>
    %1 = tpu.memref_squeeze %0 : memref<1x!tpu.dma_semaphore, #tpu.memory_space<semaphore_mem>> -> memref<!tpu.dma_semaphore, #tpu.memory_space<semaphore_mem>>
    tpu.enqueue_dma source(%arg15 : memref<32x2048xf32, #tpu.memory_space<any>>) target(%arg24 : memref<32x2048xf32, #tpu.memory_space<vmem>>) target_semaphore(%1 : memref<!tpu.dma_semaphore, #tpu.memory_space<semaphore_mem>>)
    %c1_i32 = arith.constant 1 : i32
    %2 = tpu.memref_slice %arg26[%c1_i32] : memref<2x!tpu.dma_semaphore, #tpu.memory_space<semaphore_mem>> -> memref<1x!tpu.dma_semaphore, #tpu.memory_space<semaphore_mem>>
    %3 = tpu.memref_squeeze %2 : memref<1x!tpu.dma_semaphore, #tpu.memory_space<semaphore_mem>> -> memref<!tpu.dma_semaphore, #tpu.memory_space<semaphore_mem>>
    tpu.enqueue_dma source(%arg17 : memref<32x2048xf32, #tpu.memory_space<any>>) target(%arg25 : memref<32x2048xf32, #tpu.memory_space<vmem>>) target_semaphore(%3 : memref<!tpu.dma_semaphore, #tpu.memory_space<semaphore_mem>>)
    %c0 = arith.constant 0 : index
    %c0_0 = arith.constant 0 : index
    %4 = vector.load %arg0[%c0, %c0_0] : memref<8x16xf32, #tpu.memory_space<vmem>>, vector<8x16xf32>
    %c0_1 = arith.constant 0 : index
    %c0_2 = arith.constant 0 : index
    %5 = vector.load %arg1[%c0_1, %c0_2] : memref<16x132xf32, #tpu.memory_space<vmem>>, vector<16x132xf32>
    %cst = arith.constant dense<0.000000e+00> : vector<8x132xf32>
    %6 = tpu.matmul %4, %5, %cst {dimension_numbers = #tpu.dot_dimension_numbers<[1], [0], [0], [1], [0, 0, 1, 1], [], []>} : vector<8x16xf32>, vector<16x132xf32>, vector<8x132xf32> -> vector<8x132xf32>
    %c0_3 = arith.constant 0 : index
    %c0_4 = arith.constant 0 : index
    %7 = vector.load %arg2[%c0_3, %c0_4] : memref<1x132xf32, #tpu.memory_space<vmem>>, vector<1x132xf32>
    %8 = vector.broadcast %7 : vector<1x132xf32> to vector<8x132xf32>
    %9 = arith.addf %6, %8 : vector<8x132xf32>
    %10 = vector.extract_strided_slice %9 {offsets = [0, 128], sizes = [1, 4], strides = [1, 1]} : vector<8x132xf32> to vector<1x4xf32>
    %11 = tpu.iota {dimensions = array<i32: 1>} : vector<1x4xi32>
    %12 = vector.shape_cast %10 : vector<1x4xf32> to vector<1x1x4xf32>
    %cst_5 = arith.constant dense<0xFF800000> : vector<1xf32>
    %13 = vector.multi_reduction <maximumf>, %12, %cst_5 [1, 2] : vector<1x1x4xf32> to vector<1xf32>
    %14 = vector.shape_cast %13 : vector<1xf32> to vector<1x1x1xf32>
    %15 = vector.extract %14[0, 0, 0] : f32 from vector<1x1x1xf32>
    %16 = vector.broadcast %15 : f32 to vector<1x4xf32>
    %17 = arith.cmpf oeq, %10, %16 : vector<1x4xf32>
    %c4_i32 = arith.constant 4 : i32
    %18 = vector.broadcast %c4_i32 : i32 to vector<1x4xi32>
    %19 = arith.select %17, %11, %18 : vector<1x4xi1>, vector<1x4xi32>
    %20 = vector.shape_cast %19 : vector<1x4xi32> to vector<1x1x4xi32>
    %cst_6 = arith.constant dense<2147483647> : vector<1xi32>
    %21 = vector.multi_reduction <minsi>, %20, %cst_6 [1, 2] : vector<1x1x4xi32> to vector<1xi32>
    %22 = vector.shape_cast %21 : vector<1xi32> to vector<1x1x1xi32>
    %23 = vector.extract %22[0, 0, 0] : i32 from vector<1x1x1xi32>
    %24 = vector.broadcast %23 : i32 to vector<1x4xi32>
    %25 = arith.cmpi eq, %11, %24 : vector<1x4xi32>
    %cst_7 = arith.constant 0xFF800000 : f32
    %26 = vector.broadcast %cst_7 : f32 to vector<1x4xf32>
    %27 = arith.select %25, %26, %10 : vector<1x4xi1>, vector<1x4xf32>
    %28 = vector.shape_cast %27 : vector<1x4xf32> to vector<1x1x4xf32>
    %cst_8 = arith.constant dense<0xFF800000> : vector<1xf32>
    %29 = vector.multi_reduction <maximumf>, %28, %cst_8 [1, 2] : vector<1x1x4xf32> to vector<1xf32>
    %30 = vector.shape_cast %29 : vector<1xf32> to vector<1x1x1xf32>
    %31 = vector.extract %30[0, 0, 0] : f32 from vector<1x1x1xf32>
    %32 = vector.broadcast %31 : f32 to vector<1x4xf32>
    %33 = arith.cmpf oeq, %27, %32 : vector<1x4xf32>
    %c4_i32_9 = arith.constant 4 : i32
    %34 = vector.broadcast %c4_i32_9 : i32 to vector<1x4xi32>
    %35 = arith.select %33, %11, %34 : vector<1x4xi1>, vector<1x4xi32>
    %36 = vector.shape_cast %35 : vector<1x4xi32> to vector<1x1x4xi32>
    %cst_10 = arith.constant dense<2147483647> : vector<1xi32>
    %37 = vector.multi_reduction <minsi>, %36, %cst_10 [1, 2] : vector<1x1x4xi32> to vector<1xi32>
    %38 = vector.shape_cast %37 : vector<1xi32> to vector<1x1x1xi32>
    %39 = vector.extract %38[0, 0, 0] : i32 from vector<1x1x1xi32>
    %cst_11 = arith.constant 0.000000e+00 : f32
    %40 = vector.broadcast %cst_11 : f32 to vector<8x32xf32>
    %c0_i32_12 = arith.constant 0 : i32
    %41 = arith.cmpi eq, %23, %c0_i32_12 : i32
    %42 = arith.extui %41 : i1 to i32
    %43 = arith.sitofp %42 : i32 to f32
    %c0_i32_13 = arith.constant 0 : i32
    %44 = arith.cmpi eq, %39, %c0_i32_13 : i32
    %45 = arith.extui %44 : i1 to i32
    %46 = arith.sitofp %45 : i32 to f32
    %47 = arith.addf %43, %46 : f32
    %cst_14 = arith.constant 5.000000e-01 : f32
    %48 = arith.mulf %cst_14, %47 : f32
    %49 = vector.extract_strided_slice %9 {offsets = [0, 0], sizes = [8, 32], strides = [1, 1]} : vector<8x132xf32> to vector<8x32xf32>
    %50 = vector.broadcast %48 : f32 to vector<8x32xf32>
    %51 = arith.mulf %50, %49 : vector<8x32xf32>
    %52 = arith.addf %40, %51 : vector<8x32xf32>
    %c1_i32_15 = arith.constant 1 : i32
    %53 = arith.cmpi eq, %23, %c1_i32_15 : i32
    %54 = arith.extui %53 : i1 to i32
    %55 = arith.sitofp %54 : i32 to f32
    %c1_i32_16 = arith.constant 1 : i32
    %56 = arith.cmpi eq, %39, %c1_i32_16 : i32
    %57 = arith.extui %56 : i1 to i32
    %58 = arith.sitofp %57 : i32 to f32
    %59 = arith.addf %55, %58 : f32
    %cst_17 = arith.constant 5.000000e-01 : f32
    %60 = arith.mulf %cst_17, %59 : f32
    %61 = vector.extract_strided_slice %9 {offsets = [0, 32], sizes = [8, 32], strides = [1, 1]} : vector<8x132xf32> to vector<8x32xf32>
    %62 = vector.broadcast %60 : f32 to vector<8x32xf32>
    %63 = arith.mulf %62, %61 : vector<8x32xf32>
    %64 = arith.addf %52, %63 : vector<8x32xf32>
    %c2_i32 = arith.constant 2 : i32
    %65 = arith.cmpi eq, %23, %c2_i32 : i32
    %66 = arith.extui %65 : i1 to i32
    %67 = arith.sitofp %66 : i32 to f32
    %c2_i32_18 = arith.constant 2 : i32
    %68 = arith.cmpi eq, %39, %c2_i32_18 : i32
    %69 = arith.extui %68 : i1 to i32
    %70 = arith.sitofp %69 : i32 to f32
    %71 = arith.addf %67, %70 : f32
    %cst_19 = arith.constant 5.000000e-01 : f32
    %72 = arith.mulf %cst_19, %71 : f32
    %73 = vector.extract_strided_slice %9 {offsets = [0, 64], sizes = [8, 32], strides = [1, 1]} : vector<8x132xf32> to vector<8x32xf32>
    %74 = vector.broadcast %72 : f32 to vector<8x32xf32>
    %75 = arith.mulf %74, %73 : vector<8x32xf32>
    %76 = arith.addf %64, %75 : vector<8x32xf32>
    %c3_i32 = arith.constant 3 : i32
    %77 = arith.cmpi eq, %23, %c3_i32 : i32
    %78 = arith.extui %77 : i1 to i32
    %79 = arith.sitofp %78 : i32 to f32
    %c3_i32_20 = arith.constant 3 : i32
    %80 = arith.cmpi eq, %39, %c3_i32_20 : i32
    %81 = arith.extui %80 : i1 to i32
    %82 = arith.sitofp %81 : i32 to f32
    %83 = arith.addf %79, %82 : f32
    %cst_21 = arith.constant 5.000000e-01 : f32
    %84 = arith.mulf %cst_21, %83 : f32
    %85 = vector.extract_strided_slice %9 {offsets = [0, 96], sizes = [8, 32], strides = [1, 1]} : vector<8x132xf32> to vector<8x32xf32>
    %86 = vector.broadcast %84 : f32 to vector<8x32xf32>
    %87 = arith.mulf %86, %85 : vector<8x32xf32>
    %88 = arith.addf %76, %87 : vector<8x32xf32>
    %c0_22 = arith.constant 0 : index
    %c0_23 = arith.constant 0 : index
    %89 = vector.load %arg3[%c0_22, %c0_23] : memref<32x132xf32, #tpu.memory_space<vmem>>, vector<32x132xf32>
    %cst_24 = arith.constant dense<0.000000e+00> : vector<8x132xf32>
    %90 = tpu.matmul %88, %89, %cst_24 {dimension_numbers = #tpu.dot_dimension_numbers<[1], [0], [0], [1], [0, 0, 1, 1], [], []>} : vector<8x32xf32>, vector<32x132xf32>, vector<8x132xf32> -> vector<8x132xf32>
    %c0_25 = arith.constant 0 : index
    %c0_26 = arith.constant 0 : index
    %91 = vector.load %arg4[%c0_25, %c0_26] : memref<1x132xf32, #tpu.memory_space<vmem>>, vector<1x132xf32>
    %92 = vector.broadcast %91 : vector<1x132xf32> to vector<8x132xf32>
    %93 = arith.addf %90, %92 : vector<8x132xf32>
    %94 = vector.extract_strided_slice %93 {offsets = [0, 128], sizes = [1, 4], strides = [1, 1]} : vector<8x132xf32> to vector<1x4xf32>
    %95 = tpu.iota {dimensions = array<i32: 1>} : vector<1x4xi32>
    %96 = vector.shape_cast %94 : vector<1x4xf32> to vector<1x1x4xf32>
    %cst_27 = arith.constant dense<0xFF800000> : vector<1xf32>
    %97 = vector.multi_reduction <maximumf>, %96, %cst_27 [1, 2] : vector<1x1x4xf32> to vector<1xf32>
    %98 = vector.shape_cast %97 : vector<1xf32> to vector<1x1x1xf32>
    %99 = vector.extract %98[0, 0, 0] : f32 from vector<1x1x1xf32>
    %100 = vector.broadcast %99 : f32 to vector<1x4xf32>
    %101 = arith.cmpf oeq, %94, %100 : vector<1x4xf32>
    %c4_i32_28 = arith.constant 4 : i32
    %102 = vector.broadcast %c4_i32_28 : i32 to vector<1x4xi32>
    %103 = arith.select %101, %95, %102 : vector<1x4xi1>, vector<1x4xi32>
    %104 = vector.shape_cast %103 : vector<1x4xi32> to vector<1x1x4xi32>
    %cst_29 = arith.constant dense<2147483647> : vector<1xi32>
    %105 = vector.multi_reduction <minsi>, %104, %cst_29 [1, 2] : vector<1x1x4xi32> to vector<1xi32>
    %106 = vector.shape_cast %105 : vector<1xi32> to vector<1x1x1xi32>
    %107 = vector.extract %106[0, 0, 0] : i32 from vector<1x1x1xi32>
    %108 = vector.broadcast %107 : i32 to vector<1x4xi32>
    %109 = arith.cmpi eq, %95, %108 : vector<1x4xi32>
    %cst_30 = arith.constant 0xFF800000 : f32
    %110 = vector.broadcast %cst_30 : f32 to vector<1x4xf32>
    %111 = arith.select %109, %110, %94 : vector<1x4xi1>, vector<1x4xf32>
    %112 = vector.shape_cast %111 : vector<1x4xf32> to vector<1x1x4xf32>
    %cst_31 = arith.constant dense<0xFF800000> : vector<1xf32>
    %113 = vector.multi_reduction <maximumf>, %112, %cst_31 [1, 2] : vector<1x1x4xf32> to vector<1xf32>
    %114 = vector.shape_cast %113 : vector<1xf32> to vector<1x1x1xf32>
    %115 = vector.extract %114[0, 0, 0] : f32 from vector<1x1x1xf32>
    %116 = vector.broadcast %115 : f32 to vector<1x4xf32>
    %117 = arith.cmpf oeq, %111, %116 : vector<1x4xf32>
    %c4_i32_32 = arith.constant 4 : i32
    %118 = vector.broadcast %c4_i32_32 : i32 to vector<1x4xi32>
    %119 = arith.select %117, %95, %118 : vector<1x4xi1>, vector<1x4xi32>
    %120 = vector.shape_cast %119 : vector<1x4xi32> to vector<1x1x4xi32>
    %cst_33 = arith.constant dense<2147483647> : vector<1xi32>
    %121 = vector.multi_reduction <minsi>, %120, %cst_33 [1, 2] : vector<1x1x4xi32> to vector<1xi32>
    %122 = vector.shape_cast %121 : vector<1xi32> to vector<1x1x1xi32>
    %123 = vector.extract %122[0, 0, 0] : i32 from vector<1x1x1xi32>
    %cst_34 = arith.constant 0.000000e+00 : f32
    %124 = vector.broadcast %cst_34 : f32 to vector<8x32xf32>
    %c0_i32_35 = arith.constant 0 : i32
    %125 = arith.cmpi eq, %107, %c0_i32_35 : i32
    %126 = arith.extui %125 : i1 to i32
    %127 = arith.sitofp %126 : i32 to f32
    %c0_i32_36 = arith.constant 0 : i32
    %128 = arith.cmpi eq, %123, %c0_i32_36 : i32
    %129 = arith.extui %128 : i1 to i32
    %130 = arith.sitofp %129 : i32 to f32
    %131 = arith.addf %127, %130 : f32
    %cst_37 = arith.constant 5.000000e-01 : f32
    %132 = arith.mulf %cst_37, %131 : f32
    %133 = vector.extract_strided_slice %93 {offsets = [0, 0], sizes = [8, 32], strides = [1, 1]} : vector<8x132xf32> to vector<8x32xf32>
    %134 = vector.broadcast %132 : f32 to vector<8x32xf32>
    %135 = arith.mulf %134, %133 : vector<8x32xf32>
    %136 = arith.addf %124, %135 : vector<8x32xf32>
    %c1_i32_38 = arith.constant 1 : i32
    %137 = arith.cmpi eq, %107, %c1_i32_38 : i32
    %138 = arith.extui %137 : i1 to i32
    %139 = arith.sitofp %138 : i32 to f32
    %c1_i32_39 = arith.constant 1 : i32
    %140 = arith.cmpi eq, %123, %c1_i32_39 : i32
    %141 = arith.extui %140 : i1 to i32
    %142 = arith.sitofp %141 : i32 to f32
    %143 = arith.addf %139, %142 : f32
    %cst_40 = arith.constant 5.000000e-01 : f32
    %144 = arith.mulf %cst_40, %143 : f32
    %145 = vector.extract_strided_slice %93 {offsets = [0, 32], sizes = [8, 32], strides = [1, 1]} : vector<8x132xf32> to vector<8x32xf32>
    %146 = vector.broadcast %144 : f32 to vector<8x32xf32>
    %147 = arith.mulf %146, %145 : vector<8x32xf32>
    %148 = arith.addf %136, %147 : vector<8x32xf32>
    %c2_i32_41 = arith.constant 2 : i32
    %149 = arith.cmpi eq, %107, %c2_i32_41 : i32
    %150 = arith.extui %149 : i1 to i32
    %151 = arith.sitofp %150 : i32 to f32
    %c2_i32_42 = arith.constant 2 : i32
    %152 = arith.cmpi eq, %123, %c2_i32_42 : i32
    %153 = arith.extui %152 : i1 to i32
    %154 = arith.sitofp %153 : i32 to f32
    %155 = arith.addf %151, %154 : f32
    %cst_43 = arith.constant 5.000000e-01 : f32
    %156 = arith.mulf %cst_43, %155 : f32
    %157 = vector.extract_strided_slice %93 {offsets = [0, 64], sizes = [8, 32], strides = [1, 1]} : vector<8x132xf32> to vector<8x32xf32>
    %158 = vector.broadcast %156 : f32 to vector<8x32xf32>
    %159 = arith.mulf %158, %157 : vector<8x32xf32>
    %160 = arith.addf %148, %159 : vector<8x32xf32>
    %c3_i32_44 = arith.constant 3 : i32
    %161 = arith.cmpi eq, %107, %c3_i32_44 : i32
    %162 = arith.extui %161 : i1 to i32
    %163 = arith.sitofp %162 : i32 to f32
    %c3_i32_45 = arith.constant 3 : i32
    %164 = arith.cmpi eq, %123, %c3_i32_45 : i32
    %165 = arith.extui %164 : i1 to i32
    %166 = arith.sitofp %165 : i32 to f32
    %167 = arith.addf %163, %166 : f32
    %cst_46 = arith.constant 5.000000e-01 : f32
    %168 = arith.mulf %cst_46, %167 : f32
    %169 = vector.extract_strided_slice %93 {offsets = [0, 96], sizes = [8, 32], strides = [1, 1]} : vector<8x132xf32> to vector<8x32xf32>
    %170 = vector.broadcast %168 : f32 to vector<8x32xf32>
    %171 = arith.mulf %170, %169 : vector<8x32xf32>
    %172 = arith.addf %160, %171 : vector<8x32xf32>
    %c0_47 = arith.constant 0 : index
    %c0_48 = arith.constant 0 : index
    %173 = vector.load %arg5[%c0_47, %c0_48] : memref<32x132xf32, #tpu.memory_space<vmem>>, vector<32x132xf32>
    %cst_49 = arith.constant dense<0.000000e+00> : vector<8x132xf32>
    %174 = tpu.matmul %172, %173, %cst_49 {dimension_numbers = #tpu.dot_dimension_numbers<[1], [0], [0], [1], [0, 0, 1, 1], [], []>} : vector<8x32xf32>, vector<32x132xf32>, vector<8x132xf32> -> vector<8x132xf32>
    %c0_50 = arith.constant 0 : index
    %c0_51 = arith.constant 0 : index
    %175 = vector.load %arg6[%c0_50, %c0_51] : memref<1x132xf32, #tpu.memory_space<vmem>>, vector<1x132xf32>
    %176 = vector.broadcast %175 : vector<1x132xf32> to vector<8x132xf32>
    %177 = arith.addf %174, %176 : vector<8x132xf32>
    %178 = vector.extract_strided_slice %177 {offsets = [0, 128], sizes = [1, 4], strides = [1, 1]} : vector<8x132xf32> to vector<1x4xf32>
    %179 = tpu.iota {dimensions = array<i32: 1>} : vector<1x4xi32>
    %180 = vector.shape_cast %178 : vector<1x4xf32> to vector<1x1x4xf32>
    %cst_52 = arith.constant dense<0xFF800000> : vector<1xf32>
    %181 = vector.multi_reduction <maximumf>, %180, %cst_52 [1, 2] : vector<1x1x4xf32> to vector<1xf32>
    %182 = vector.shape_cast %181 : vector<1xf32> to vector<1x1x1xf32>
    %183 = vector.extract %182[0, 0, 0] : f32 from vector<1x1x1xf32>
    %184 = vector.broadcast %183 : f32 to vector<1x4xf32>
    %185 = arith.cmpf oeq, %178, %184 : vector<1x4xf32>
    %c4_i32_53 = arith.constant 4 : i32
    %186 = vector.broadcast %c4_i32_53 : i32 to vector<1x4xi32>
    %187 = arith.select %185, %179, %186 : vector<1x4xi1>, vector<1x4xi32>
    %188 = vector.shape_cast %187 : vector<1x4xi32> to vector<1x1x4xi32>
    %cst_54 = arith.constant dense<2147483647> : vector<1xi32>
    %189 = vector.multi_reduction <minsi>, %188, %cst_54 [1, 2] : vector<1x1x4xi32> to vector<1xi32>
    %190 = vector.shape_cast %189 : vector<1xi32> to vector<1x1x1xi32>
    %191 = vector.extract %190[0, 0, 0] : i32 from vector<1x1x1xi32>
    %192 = vector.broadcast %191 : i32 to vector<1x4xi32>
    %193 = arith.cmpi eq, %179, %192 : vector<1x4xi32>
    %cst_55 = arith.constant 0xFF800000 : f32
    %194 = vector.broadcast %cst_55 : f32 to vector<1x4xf32>
    %195 = arith.select %193, %194, %178 : vector<1x4xi1>, vector<1x4xf32>
    %196 = vector.shape_cast %195 : vector<1x4xf32> to vector<1x1x4xf32>
    %cst_56 = arith.constant dense<0xFF800000> : vector<1xf32>
    %197 = vector.multi_reduction <maximumf>, %196, %cst_56 [1, 2] : vector<1x1x4xf32> to vector<1xf32>
    %198 = vector.shape_cast %197 : vector<1xf32> to vector<1x1x1xf32>
    %199 = vector.extract %198[0, 0, 0] : f32 from vector<1x1x1xf32>
    %200 = vector.broadcast %199 : f32 to vector<1x4xf32>
    %201 = arith.cmpf oeq, %195, %200 : vector<1x4xf32>
    %c4_i32_57 = arith.constant 4 : i32
    %202 = vector.broadcast %c4_i32_57 : i32 to vector<1x4xi32>
    %203 = arith.select %201, %179, %202 : vector<1x4xi1>, vector<1x4xi32>
    %204 = vector.shape_cast %203 : vector<1x4xi32> to vector<1x1x4xi32>
    %cst_58 = arith.constant dense<2147483647> : vector<1xi32>
    %205 = vector.multi_reduction <minsi>, %204, %cst_58 [1, 2] : vector<1x1x4xi32> to vector<1xi32>
    %206 = vector.shape_cast %205 : vector<1xi32> to vector<1x1x1xi32>
    %207 = vector.extract %206[0, 0, 0] : i32 from vector<1x1x1xi32>
    %cst_59 = arith.constant 0.000000e+00 : f32
    %208 = vector.broadcast %cst_59 : f32 to vector<8x32xf32>
    %c0_i32_60 = arith.constant 0 : i32
    %209 = arith.cmpi eq, %191, %c0_i32_60 : i32
    %210 = arith.extui %209 : i1 to i32
    %211 = arith.sitofp %210 : i32 to f32
    %c0_i32_61 = arith.constant 0 : i32
    %212 = arith.cmpi eq, %207, %c0_i32_61 : i32
    %213 = arith.extui %212 : i1 to i32
    %214 = arith.sitofp %213 : i32 to f32
    %215 = arith.addf %211, %214 : f32
    %cst_62 = arith.constant 5.000000e-01 : f32
    %216 = arith.mulf %cst_62, %215 : f32
    %217 = vector.extract_strided_slice %177 {offsets = [0, 0], sizes = [8, 32], strides = [1, 1]} : vector<8x132xf32> to vector<8x32xf32>
    %218 = vector.broadcast %216 : f32 to vector<8x32xf32>
    %219 = arith.mulf %218, %217 : vector<8x32xf32>
    %220 = arith.addf %208, %219 : vector<8x32xf32>
    %c1_i32_63 = arith.constant 1 : i32
    %221 = arith.cmpi eq, %191, %c1_i32_63 : i32
    %222 = arith.extui %221 : i1 to i32
    %223 = arith.sitofp %222 : i32 to f32
    %c1_i32_64 = arith.constant 1 : i32
    %224 = arith.cmpi eq, %207, %c1_i32_64 : i32
    %225 = arith.extui %224 : i1 to i32
    %226 = arith.sitofp %225 : i32 to f32
    %227 = arith.addf %223, %226 : f32
    %cst_65 = arith.constant 5.000000e-01 : f32
    %228 = arith.mulf %cst_65, %227 : f32
    %229 = vector.extract_strided_slice %177 {offsets = [0, 32], sizes = [8, 32], strides = [1, 1]} : vector<8x132xf32> to vector<8x32xf32>
    %230 = vector.broadcast %228 : f32 to vector<8x32xf32>
    %231 = arith.mulf %230, %229 : vector<8x32xf32>
    %232 = arith.addf %220, %231 : vector<8x32xf32>
    %c2_i32_66 = arith.constant 2 : i32
    %233 = arith.cmpi eq, %191, %c2_i32_66 : i32
    %234 = arith.extui %233 : i1 to i32
    %235 = arith.sitofp %234 : i32 to f32
    %c2_i32_67 = arith.constant 2 : i32
    %236 = arith.cmpi eq, %207, %c2_i32_67 : i32
    %237 = arith.extui %236 : i1 to i32
    %238 = arith.sitofp %237 : i32 to f32
    %239 = arith.addf %235, %238 : f32
    %cst_68 = arith.constant 5.000000e-01 : f32
    %240 = arith.mulf %cst_68, %239 : f32
    %241 = vector.extract_strided_slice %177 {offsets = [0, 64], sizes = [8, 32], strides = [1, 1]} : vector<8x132xf32> to vector<8x32xf32>
    %242 = vector.broadcast %240 : f32 to vector<8x32xf32>
    %243 = arith.mulf %242, %241 : vector<8x32xf32>
    %244 = arith.addf %232, %243 : vector<8x32xf32>
    %c3_i32_69 = arith.constant 3 : i32
    %245 = arith.cmpi eq, %191, %c3_i32_69 : i32
    %246 = arith.extui %245 : i1 to i32
    %247 = arith.sitofp %246 : i32 to f32
    %c3_i32_70 = arith.constant 3 : i32
    %248 = arith.cmpi eq, %207, %c3_i32_70 : i32
    %249 = arith.extui %248 : i1 to i32
    %250 = arith.sitofp %249 : i32 to f32
    %251 = arith.addf %247, %250 : f32
    %cst_71 = arith.constant 5.000000e-01 : f32
    %252 = arith.mulf %cst_71, %251 : f32
    %253 = vector.extract_strided_slice %177 {offsets = [0, 96], sizes = [8, 32], strides = [1, 1]} : vector<8x132xf32> to vector<8x32xf32>
    %254 = vector.broadcast %252 : f32 to vector<8x32xf32>
    %255 = arith.mulf %254, %253 : vector<8x32xf32>
    %256 = arith.addf %244, %255 : vector<8x32xf32>
    %c0_72 = arith.constant 0 : index
    %c0_73 = arith.constant 0 : index
    %257 = vector.load %arg7[%c0_72, %c0_73] : memref<32x96xf32, #tpu.memory_space<vmem>>, vector<32x96xf32>
    %cst_74 = arith.constant dense<0.000000e+00> : vector<8x96xf32>
    %258 = tpu.matmul %256, %257, %cst_74 {dimension_numbers = #tpu.dot_dimension_numbers<[1], [0], [0], [1], [0, 0, 1, 1], [], []>} : vector<8x32xf32>, vector<32x96xf32>, vector<8x96xf32> -> vector<8x96xf32>
    %c0_75 = arith.constant 0 : index
    %c0_76 = arith.constant 0 : index
    %259 = vector.load %arg8[%c0_75, %c0_76] : memref<1x96xf32, #tpu.memory_space<vmem>>, vector<1x96xf32>
    %260 = vector.broadcast %259 : vector<1x96xf32> to vector<8x96xf32>
    %261 = arith.addf %258, %260 : vector<8x96xf32>
    %262 = vector.extract_strided_slice %261 {offsets = [0, 0], sizes = [8, 8], strides = [1, 1]} : vector<8x96xf32> to vector<8x8xf32>
    %263 = vector.extract_strided_slice %261 {offsets = [0, 32], sizes = [8, 8], strides = [1, 1]} : vector<8x96xf32> to vector<8x8xf32>
    %264 = vector.extract_strided_slice %261 {offsets = [0, 64], sizes = [8, 8], strides = [1, 1]} : vector<8x96xf32> to vector<8x8xf32>
    %cst_77 = arith.constant dense<0.000000e+00> : vector<8x8xf32>
    %265 = tpu.matmul %262, %263, %cst_77 {dimension_numbers = #tpu.dot_dimension_numbers<[1], [1], [0], [0], [0, 0, 1, 0], [], []>} : vector<8x8xf32>, vector<8x8xf32>, vector<8x8xf32> -> vector<8x8xf32>
    %cst_78 = arith.constant 0.353553385 : f32
    %266 = vector.broadcast %cst_78 : f32 to vector<8x8xf32>
    %267 = arith.mulf %265, %266 : vector<8x8xf32>
    %cst_79 = arith.constant dense<0xFF800000> : vector<8xf32>
    %268 = vector.multi_reduction <maximumf>, %267, %cst_79 [1] : vector<8x8xf32> to vector<8xf32>
    %269 = vector.shape_cast %268 : vector<8xf32> to vector<8x1xf32>
    %270 = vector.broadcast %269 : vector<8x1xf32> to vector<8x8xf32>
    %271 = arith.subf %267, %270 : vector<8x8xf32>
    %272 = math.exp %271 : vector<8x8xf32>
    %cst_80 = arith.constant dense<0.000000e+00> : vector<8xf32>
    %273 = vector.multi_reduction <add>, %272, %cst_80 [1] : vector<8x8xf32> to vector<8xf32>
    %274 = vector.shape_cast %273 : vector<8xf32> to vector<8x1xf32>
    %275 = tpu.reciprocal %274 {approx = true} : vector<8x1xf32> -> vector<8x1xf32>
    %276 = vector.broadcast %275 : vector<8x1xf32> to vector<8x8xf32>
    %277 = arith.mulf %272, %276 : vector<8x8xf32>
    %cst_81 = arith.constant dense<0.000000e+00> : vector<8x8xf32>
    %278 = tpu.matmul %277, %264, %cst_81 {dimension_numbers = #tpu.dot_dimension_numbers<[1], [0], [0], [1], [0, 0, 1, 1], [], []>} : vector<8x8xf32>, vector<8x8xf32>, vector<8x8xf32> -> vector<8x8xf32>
    %279 = vector.extract_strided_slice %261 {offsets = [0, 8], sizes = [8, 8], strides = [1, 1]} : vector<8x96xf32> to vector<8x8xf32>
    %280 = vector.extract_strided_slice %261 {offsets = [0, 40], sizes = [8, 8], strides = [1, 1]} : vector<8x96xf32> to vector<8x8xf32>
    %281 = vector.extract_strided_slice %261 {offsets = [0, 72], sizes = [8, 8], strides = [1, 1]} : vector<8x96xf32> to vector<8x8xf32>
    %cst_82 = arith.constant dense<0.000000e+00> : vector<8x8xf32>
    %282 = tpu.matmul %279, %280, %cst_82 {dimension_numbers = #tpu.dot_dimension_numbers<[1], [1], [0], [0], [0, 0, 1, 0], [], []>} : vector<8x8xf32>, vector<8x8xf32>, vector<8x8xf32> -> vector<8x8xf32>
    %cst_83 = arith.constant 0.353553385 : f32
    %283 = vector.broadcast %cst_83 : f32 to vector<8x8xf32>
    %284 = arith.mulf %282, %283 : vector<8x8xf32>
    %cst_84 = arith.constant dense<0xFF800000> : vector<8xf32>
    %285 = vector.multi_reduction <maximumf>, %284, %cst_84 [1] : vector<8x8xf32> to vector<8xf32>
    %286 = vector.shape_cast %285 : vector<8xf32> to vector<8x1xf32>
    %287 = vector.broadcast %286 : vector<8x1xf32> to vector<8x8xf32>
    %288 = arith.subf %284, %287 : vector<8x8xf32>
    %289 = math.exp %288 : vector<8x8xf32>
    %cst_85 = arith.constant dense<0.000000e+00> : vector<8xf32>
    %290 = vector.multi_reduction <add>, %289, %cst_85 [1] : vector<8x8xf32> to vector<8xf32>
    %291 = vector.shape_cast %290 : vector<8xf32> to vector<8x1xf32>
    %292 = tpu.reciprocal %291 {approx = true} : vector<8x1xf32> -> vector<8x1xf32>
    %293 = vector.broadcast %292 : vector<8x1xf32> to vector<8x8xf32>
    %294 = arith.mulf %289, %293 : vector<8x8xf32>
    %cst_86 = arith.constant dense<0.000000e+00> : vector<8x8xf32>
    %295 = tpu.matmul %294, %281, %cst_86 {dimension_numbers = #tpu.dot_dimension_numbers<[1], [0], [0], [1], [0, 0, 1, 1], [], []>} : vector<8x8xf32>, vector<8x8xf32>, vector<8x8xf32> -> vector<8x8xf32>
    %296 = vector.extract_strided_slice %261 {offsets = [0, 16], sizes = [8, 8], strides = [1, 1]} : vector<8x96xf32> to vector<8x8xf32>
    %297 = vector.extract_strided_slice %261 {offsets = [0, 48], sizes = [8, 8], strides = [1, 1]} : vector<8x96xf32> to vector<8x8xf32>
    %298 = vector.extract_strided_slice %261 {offsets = [0, 80], sizes = [8, 8], strides = [1, 1]} : vector<8x96xf32> to vector<8x8xf32>
    %cst_87 = arith.constant dense<0.000000e+00> : vector<8x8xf32>
    %299 = tpu.matmul %296, %297, %cst_87 {dimension_numbers = #tpu.dot_dimension_numbers<[1], [1], [0], [0], [0, 0, 1, 0], [], []>} : vector<8x8xf32>, vector<8x8xf32>, vector<8x8xf32> -> vector<8x8xf32>
    %cst_88 = arith.constant 0.353553385 : f32
    %300 = vector.broadcast %cst_88 : f32 to vector<8x8xf32>
    %301 = arith.mulf %299, %300 : vector<8x8xf32>
    %cst_89 = arith.constant dense<0xFF800000> : vector<8xf32>
    %302 = vector.multi_reduction <maximumf>, %301, %cst_89 [1] : vector<8x8xf32> to vector<8xf32>
    %303 = vector.shape_cast %302 : vector<8xf32> to vector<8x1xf32>
    %304 = vector.broadcast %303 : vector<8x1xf32> to vector<8x8xf32>
    %305 = arith.subf %301, %304 : vector<8x8xf32>
    %306 = math.exp %305 : vector<8x8xf32>
    %cst_90 = arith.constant dense<0.000000e+00> : vector<8xf32>
    %307 = vector.multi_reduction <add>, %306, %cst_90 [1] : vector<8x8xf32> to vector<8xf32>
    %308 = vector.shape_cast %307 : vector<8xf32> to vector<8x1xf32>
    %309 = tpu.reciprocal %308 {approx = true} : vector<8x1xf32> -> vector<8x1xf32>
    %310 = vector.broadcast %309 : vector<8x1xf32> to vector<8x8xf32>
    %311 = arith.mulf %306, %310 : vector<8x8xf32>
    %cst_91 = arith.constant dense<0.000000e+00> : vector<8x8xf32>
    %312 = tpu.matmul %311, %298, %cst_91 {dimension_numbers = #tpu.dot_dimension_numbers<[1], [0], [0], [1], [0, 0, 1, 1], [], []>} : vector<8x8xf32>, vector<8x8xf32>, vector<8x8xf32> -> vector<8x8xf32>
    %313 = vector.extract_strided_slice %261 {offsets = [0, 24], sizes = [8, 8], strides = [1, 1]} : vector<8x96xf32> to vector<8x8xf32>
    %314 = vector.extract_strided_slice %261 {offsets = [0, 56], sizes = [8, 8], strides = [1, 1]} : vector<8x96xf32> to vector<8x8xf32>
    %315 = vector.extract_strided_slice %261 {offsets = [0, 88], sizes = [8, 8], strides = [1, 1]} : vector<8x96xf32> to vector<8x8xf32>
    %cst_92 = arith.constant dense<0.000000e+00> : vector<8x8xf32>
    %316 = tpu.matmul %313, %314, %cst_92 {dimension_numbers = #tpu.dot_dimension_numbers<[1], [1], [0], [0], [0, 0, 1, 0], [], []>} : vector<8x8xf32>, vector<8x8xf32>, vector<8x8xf32> -> vector<8x8xf32>
    %cst_93 = arith.constant 0.353553385 : f32
    %317 = vector.broadcast %cst_93 : f32 to vector<8x8xf32>
    %318 = arith.mulf %316, %317 : vector<8x8xf32>
    %cst_94 = arith.constant dense<0xFF800000> : vector<8xf32>
    %319 = vector.multi_reduction <maximumf>, %318, %cst_94 [1] : vector<8x8xf32> to vector<8xf32>
    %320 = vector.shape_cast %319 : vector<8xf32> to vector<8x1xf32>
    %321 = vector.broadcast %320 : vector<8x1xf32> to vector<8x8xf32>
    %322 = arith.subf %318, %321 : vector<8x8xf32>
    %323 = math.exp %322 : vector<8x8xf32>
    %cst_95 = arith.constant dense<0.000000e+00> : vector<8xf32>
    %324 = vector.multi_reduction <add>, %323, %cst_95 [1] : vector<8x8xf32> to vector<8xf32>
    %325 = vector.shape_cast %324 : vector<8xf32> to vector<8x1xf32>
    %326 = tpu.reciprocal %325 {approx = true} : vector<8x1xf32> -> vector<8x1xf32>
    %327 = vector.broadcast %326 : vector<8x1xf32> to vector<8x8xf32>
    %328 = arith.mulf %323, %327 : vector<8x8xf32>
    %cst_96 = arith.constant dense<0.000000e+00> : vector<8x8xf32>
    %329 = tpu.matmul %328, %315, %cst_96 {dimension_numbers = #tpu.dot_dimension_numbers<[1], [0], [0], [1], [0, 0, 1, 1], [], []>} : vector<8x8xf32>, vector<8x8xf32>, vector<8x8xf32> -> vector<8x8xf32>
    %330 = tpu.concatenate %278, %295, %312, %329 in 1 : vector<8x8xf32>, vector<8x8xf32>, vector<8x8xf32>, vector<8x8xf32> -> vector<8x32xf32>
    %c0_97 = arith.constant 0 : index
    %c0_98 = arith.constant 0 : index
    %331 = vector.load %arg9[%c0_97, %c0_98] : memref<32x32xf32, #tpu.memory_space<vmem>>, vector<32x32xf32>
    %cst_99 = arith.constant dense<0.000000e+00> : vector<8x32xf32>
    %332 = tpu.matmul %330, %331, %cst_99 {dimension_numbers = #tpu.dot_dimension_numbers<[1], [0], [0], [1], [0, 0, 1, 1], [], []>} : vector<8x32xf32>, vector<32x32xf32>, vector<8x32xf32> -> vector<8x32xf32>
    %c0_100 = arith.constant 0 : index
    %c0_101 = arith.constant 0 : index
    %333 = vector.load %arg10[%c0_100, %c0_101] : memref<1x32xf32, #tpu.memory_space<vmem>>, vector<1x32xf32>
    %334 = vector.broadcast %333 : vector<1x32xf32> to vector<8x32xf32>
    %335 = arith.addf %332, %334 : vector<8x32xf32>
    %336 = arith.addf %256, %335 : vector<8x32xf32>
    %c0_102 = arith.constant 0 : index
    %c0_103 = arith.constant 0 : index
    %337 = vector.load %arg11[%c0_102, %c0_103] : memref<1x32xf32, #tpu.memory_space<vmem>>, vector<1x32xf32>
    %c0_104 = arith.constant 0 : index
    %c0_105 = arith.constant 0 : index
    %338 = vector.load %arg12[%c0_104, %c0_105] : memref<1x32xf32, #tpu.memory_space<vmem>>, vector<1x32xf32>
    %cst_106 = arith.constant dense<0.000000e+00> : vector<8xf32>
    %339 = vector.multi_reduction <add>, %336, %cst_106 [1] : vector<8x32xf32> to vector<8xf32>
    %340 = vector.shape_cast %339 : vector<8xf32> to vector<8x1xf32>
    %cst_107 = arith.constant 3.200000e+01 : f32
    %341 = vector.broadcast %cst_107 : f32 to vector<8x1xf32>
    %342 = arith.divf %340, %341 : vector<8x1xf32>
    %343 = vector.broadcast %342 : vector<8x1xf32> to vector<8x32xf32>
    %344 = arith.subf %336, %343 : vector<8x32xf32>
    %345 = arith.mulf %344, %344 : vector<8x32xf32>
    %cst_108 = arith.constant dense<0.000000e+00> : vector<8xf32>
    %346 = vector.multi_reduction <add>, %345, %cst_108 [1] : vector<8x32xf32> to vector<8xf32>
    %347 = vector.shape_cast %346 : vector<8xf32> to vector<8x1xf32>
    %cst_109 = arith.constant 3.200000e+01 : f32
    %348 = vector.broadcast %cst_109 : f32 to vector<8x1xf32>
    %349 = arith.divf %347, %348 : vector<8x1xf32>
    %350 = vector.broadcast %342 : vector<8x1xf32> to vector<8x32xf32>
    %351 = arith.subf %336, %350 : vector<8x32xf32>
    %cst_110 = arith.constant 9.99999974E-6 : f32
    %352 = vector.broadcast %cst_110 : f32 to vector<8x1xf32>
    %353 = arith.addf %349, %352 : vector<8x1xf32>
    %354 = math.rsqrt %353 : vector<8x1xf32>
    %355 = vector.broadcast %354 : vector<8x1xf32> to vector<8x32xf32>
    %356 = arith.mulf %351, %355 : vector<8x32xf32>
    %357 = vector.broadcast %337 : vector<1x32xf32> to vector<8x32xf32>
    %358 = arith.mulf %356, %357 : vector<8x32xf32>
    %359 = vector.broadcast %338 : vector<1x32xf32> to vector<8x32xf32>
    %360 = arith.addf %358, %359 : vector<8x32xf32>
    %c0_i32_111 = arith.constant 0 : i32
    %361 = tpu.memref_slice %arg26[%c0_i32_111] : memref<2x!tpu.dma_semaphore, #tpu.memory_space<semaphore_mem>> -> memref<1x!tpu.dma_semaphore, #tpu.memory_space<semaphore_mem>>
    %362 = tpu.memref_squeeze %361 : memref<1x!tpu.dma_semaphore, #tpu.memory_space<semaphore_mem>> -> memref<!tpu.dma_semaphore, #tpu.memory_space<semaphore_mem>>
    tpu.wait_dma2 semaphore(%362 : memref<!tpu.dma_semaphore, #tpu.memory_space<semaphore_mem>>) src(%arg15 : memref<32x2048xf32, #tpu.memory_space<any>>) dst(%arg24 : memref<32x2048xf32, #tpu.memory_space<vmem>>)
    %c1_i32_112 = arith.constant 1 : i32
    %363 = tpu.memref_slice %arg26[%c1_i32_112] : memref<2x!tpu.dma_semaphore, #tpu.memory_space<semaphore_mem>> -> memref<1x!tpu.dma_semaphore, #tpu.memory_space<semaphore_mem>>
    %364 = tpu.memref_squeeze %363 : memref<1x!tpu.dma_semaphore, #tpu.memory_space<semaphore_mem>> -> memref<!tpu.dma_semaphore, #tpu.memory_space<semaphore_mem>>
    tpu.wait_dma2 semaphore(%364 : memref<!tpu.dma_semaphore, #tpu.memory_space<semaphore_mem>>) src(%arg17 : memref<32x2048xf32, #tpu.memory_space<any>>) dst(%arg25 : memref<32x2048xf32, #tpu.memory_space<vmem>>)
    %c0_113 = arith.constant 0 : index
    %c0_114 = arith.constant 0 : index
    %365 = vector.load %arg24[%c0_113, %c0_114] : memref<32x2048xf32, #tpu.memory_space<vmem>>, vector<32x2048xf32>
    %cst_115 = arith.constant dense<0.000000e+00> : vector<8x2048xf32>
    %366 = tpu.matmul %360, %365, %cst_115 {dimension_numbers = #tpu.dot_dimension_numbers<[1], [0], [0], [1], [0, 0, 1, 1], [], []>} : vector<8x32xf32>, vector<32x2048xf32>, vector<8x2048xf32> -> vector<8x2048xf32>
    %c0_116 = arith.constant 0 : index
    %c0_117 = arith.constant 0 : index
    %367 = vector.load %arg16[%c0_116, %c0_117] : memref<1x2048xf32, #tpu.memory_space<vmem>>, vector<1x2048xf32>
    %368 = vector.broadcast %367 : vector<1x2048xf32> to vector<8x2048xf32>
    %369 = arith.addf %366, %368 : vector<8x2048xf32>
    %cst_118 = arith.constant 0.000000e+00 : f32
    %370 = vector.broadcast %cst_118 : f32 to vector<8x2048xf32>
    %371 = arith.maximumf %369, %370 : vector<8x2048xf32>
    %c0_119 = arith.constant 0 : index
    %c0_120 = arith.constant 0 : index
    %372 = vector.load %arg25[%c0_119, %c0_120] : memref<32x2048xf32, #tpu.memory_space<vmem>>, vector<32x2048xf32>
    %cst_121 = arith.constant dense<0.000000e+00> : vector<8x32xf32>
    %373 = tpu.matmul %371, %372, %cst_121 {dimension_numbers = #tpu.dot_dimension_numbers<[1], [1], [0], [0], [0, 0, 1, 0], [], []>} : vector<8x2048xf32>, vector<32x2048xf32>, vector<8x32xf32> -> vector<8x32xf32>
    %c0_122 = arith.constant 0 : index
    %c0_123 = arith.constant 0 : index
    %374 = vector.load %arg18[%c0_122, %c0_123] : memref<1x32xf32, #tpu.memory_space<vmem>>, vector<1x32xf32>
    %375 = vector.broadcast %374 : vector<1x32xf32> to vector<8x32xf32>
    %376 = arith.addf %373, %375 : vector<8x32xf32>
    %377 = arith.addf %360, %376 : vector<8x32xf32>
    %c0_124 = arith.constant 0 : index
    %c0_125 = arith.constant 0 : index
    %378 = vector.load %arg13[%c0_124, %c0_125] : memref<1x32xf32, #tpu.memory_space<vmem>>, vector<1x32xf32>
    %c0_126 = arith.constant 0 : index
    %c0_127 = arith.constant 0 : index
    %379 = vector.load %arg14[%c0_126, %c0_127] : memref<1x32xf32, #tpu.memory_space<vmem>>, vector<1x32xf32>
    %cst_128 = arith.constant dense<0.000000e+00> : vector<8xf32>
    %380 = vector.multi_reduction <add>, %377, %cst_128 [1] : vector<8x32xf32> to vector<8xf32>
    %381 = vector.shape_cast %380 : vector<8xf32> to vector<8x1xf32>
    %cst_129 = arith.constant 3.200000e+01 : f32
    %382 = vector.broadcast %cst_129 : f32 to vector<8x1xf32>
    %383 = arith.divf %381, %382 : vector<8x1xf32>
    %384 = vector.broadcast %383 : vector<8x1xf32> to vector<8x32xf32>
    %385 = arith.subf %377, %384 : vector<8x32xf32>
    %386 = arith.mulf %385, %385 : vector<8x32xf32>
    %cst_130 = arith.constant dense<0.000000e+00> : vector<8xf32>
    %387 = vector.multi_reduction <add>, %386, %cst_130 [1] : vector<8x32xf32> to vector<8xf32>
    %388 = vector.shape_cast %387 : vector<8xf32> to vector<8x1xf32>
    %cst_131 = arith.constant 3.200000e+01 : f32
    %389 = vector.broadcast %cst_131 : f32 to vector<8x1xf32>
    %390 = arith.divf %388, %389 : vector<8x1xf32>
    %391 = vector.broadcast %383 : vector<8x1xf32> to vector<8x32xf32>
    %392 = arith.subf %377, %391 : vector<8x32xf32>
    %cst_132 = arith.constant 9.99999974E-6 : f32
    %393 = vector.broadcast %cst_132 : f32 to vector<8x1xf32>
    %394 = arith.addf %390, %393 : vector<8x1xf32>
    %395 = math.rsqrt %394 : vector<8x1xf32>
    %396 = vector.broadcast %395 : vector<8x1xf32> to vector<8x32xf32>
    %397 = arith.mulf %392, %396 : vector<8x32xf32>
    %398 = vector.broadcast %378 : vector<1x32xf32> to vector<8x32xf32>
    %399 = arith.mulf %397, %398 : vector<8x32xf32>
    %400 = vector.broadcast %379 : vector<1x32xf32> to vector<8x32xf32>
    %401 = arith.addf %399, %400 : vector<8x32xf32>
    %c0_133 = arith.constant 0 : index
    %c0_134 = arith.constant 0 : index
    %402 = vector.load %arg19[%c0_133, %c0_134] : memref<32x32xf32, #tpu.memory_space<vmem>>, vector<32x32xf32>
    %cst_135 = arith.constant dense<0.000000e+00> : vector<8x32xf32>
    %403 = tpu.matmul %401, %402, %cst_135 {dimension_numbers = #tpu.dot_dimension_numbers<[1], [0], [0], [1], [0, 0, 1, 1], [], []>} : vector<8x32xf32>, vector<32x32xf32>, vector<8x32xf32> -> vector<8x32xf32>
    %c0_136 = arith.constant 0 : index
    %c0_137 = arith.constant 0 : index
    %404 = vector.load %arg20[%c0_136, %c0_137] : memref<1x32xf32, #tpu.memory_space<vmem>>, vector<1x32xf32>
    %405 = vector.broadcast %404 : vector<1x32xf32> to vector<8x32xf32>
    %406 = arith.addf %403, %405 : vector<8x32xf32>
    %cst_138 = arith.constant 0.000000e+00 : f32
    %407 = vector.broadcast %cst_138 : f32 to vector<8x32xf32>
    %408 = arith.maximumf %406, %407 : vector<8x32xf32>
    %c0_139 = arith.constant 0 : index
    %c0_140 = arith.constant 0 : index
    %409 = vector.load %arg21[%c0_139, %c0_140] : memref<32x8xf32, #tpu.memory_space<vmem>>, vector<32x8xf32>
    %cst_141 = arith.constant dense<0.000000e+00> : vector<8x8xf32>
    %410 = tpu.matmul %408, %409, %cst_141 {dimension_numbers = #tpu.dot_dimension_numbers<[1], [0], [0], [1], [0, 0, 1, 1], [], []>} : vector<8x32xf32>, vector<32x8xf32>, vector<8x8xf32> -> vector<8x8xf32>
    %c0_142 = arith.constant 0 : index
    %c0_143 = arith.constant 0 : index
    %411 = vector.load %arg22[%c0_142, %c0_143] : memref<1x8xf32, #tpu.memory_space<vmem>>, vector<1x8xf32>
    %412 = vector.broadcast %411 : vector<1x8xf32> to vector<8x8xf32>
    %413 = arith.addf %410, %412 : vector<8x8xf32>
    %c0_144 = arith.constant 0 : index
    %c0_145 = arith.constant 0 : index
    %414 = vector.load %arg23[%c0_144, %c0_145] : memref<8x8xf32, #tpu.memory_space<vmem>>, vector<8x8xf32>
    tpu.vector_store %arg23[%c0_144, %c0_145], %413 {strides = array<i32>} : memref<8x8xf32, #tpu.memory_space<vmem>>, vector<8x8xf32>,
    return
  }
}

</mosaic_0001>

<llo_original>
// kernel: liquid_forward.1
$region0: #{liquid_forward.1}
  #allocation0 [shape = 'u32[]', space=smem, size = 0x4, offset = 0x4, fixed_abs, tag = 'smem constant byte address 0x4 - core index']
  #allocation1 [shape = 'u32[72,128]{1,0:T(1,128)}', space=vmem, size = 0x9000, scoped, tag = 'internal scratch']
  #allocation2 [shape = 'f32[32,2048]{1,0:T(8,128)}', space=vmem, size = 0x40000, scoped, tag = 'scratch operand']
  #allocation3 [shape = 'f32[32,2048]{1,0:T(8,128)}', space=vmem, size = 0x40000, scoped, tag = 'scratch operand']
  #allocation4 [shape = 's32[2]{0}', space=sflag, size = 0x8, scoped, tag = 'scratch operand']
  #allocation35 [shape = 's32[]', space=sflag, size = 0x4, offset = 0, fixed_abs, tag = 'sflag constant byte address 0x0 - dummy sync flag']
  #allocation36 [shape = 's32[]', space=sflag, size = 0x4, offset = 0, fixed_abs, tag = 'sflag constant byte address 0x0 - dummy sync flag']
  #allocation37 [shape = 'u32[]', space=smem, size = 0x4, offset = 0x44, fixed_abs, tag = 'smem constant byte address 0x44 - assertion arg 0']
  #allocation38 [shape = 'u32[]', space=smem, size = 0x4, offset = 0x48, fixed_abs, tag = 'smem constant byte address 0x48 - assertion arg 1']
  #allocation39 [shape = 's32[]', space=sflag, size = 0x4, offset = 0, fixed_abs, tag = 'sflag constant byte address 0x0 - dummy sync flag']
  #allocation40 [shape = 's32[]', space=sflag, size = 0x4, offset = 0, fixed_abs, tag = 'sflag constant byte address 0x0 - dummy sync flag']
  %s0 = inlined_call_operand.hbm [shape: f32[8,16], index: 0, kind: input, shape index: {}]
  %s1 = inlined_call_operand.vmem [shape: f32[16,132], index: 1, kind: input, shape index: {}]
  %s2 = inlined_call_operand.hbm [shape: f32[1,132], index: 2, kind: input, shape index: {}]
  %s3 = inlined_call_operand.hbm [shape: f32[32,132], index: 3, kind: input, shape index: {}]
  %s4 = inlined_call_operand.hbm [shape: f32[1,132], index: 4, kind: input, shape index: {}]
  %s5 = inlined_call_operand.hbm [shape: f32[32,132], index: 5, kind: input, shape index: {}]
  %s6 = inlined_call_operand.hbm [shape: f32[1,132], index: 6, kind: input, shape index: {}]
  %s7 = inlined_call_operand.hbm [shape: f32[32,96], index: 7, kind: input, shape index: {}]
  %s8 = inlined_call_operand.hbm [shape: f32[1,96], index: 8, kind: input, shape index: {}]
  %s9 = inlined_call_operand.hbm [shape: f32[32,32], index: 9, kind: input, shape index: {}]
  %s10 = inlined_call_operand.hbm [shape: f32[1,32], index: 10, kind: input, shape index: {}]
  %s11 = inlined_call_operand.hbm [shape: f32[1,32], index: 11, kind: input, shape index: {}]
  %s12 = inlined_call_operand.hbm [shape: f32[1,32], index: 12, kind: input, shape index: {}]
  %s13 = inlined_call_operand.hbm [shape: f32[1,32], index: 13, kind: input, shape index: {}]
  %s14 = inlined_call_operand.hbm [shape: f32[1,32], index: 14, kind: input, shape index: {}]
  %s15 = inlined_call_operand.hbm [shape: f32[32,2048], index: 15, kind: input, shape index: {}]
  %s16 = inlined_call_operand.vmem [shape: f32[1,2048], index: 16, kind: input, shape index: {}]
  %s17 = inlined_call_operand.hbm [shape: f32[32,2048], index: 17, kind: input, shape index: {}]
  %s18 = inlined_call_operand.hbm [shape: f32[1,32], index: 18, kind: input, shape index: {}]
  %s19 = inlined_call_operand.hbm [shape: f32[32,32], index: 19, kind: input, shape index: {}]
  %s20 = inlined_call_operand.hbm [shape: f32[1,32], index: 20, kind: input, shape index: {}]
  %s21 = inlined_call_operand.vmem [shape: f32[32,8], index: 21, kind: input, shape index: {}]
  %s22 = inlined_call_operand.hbm [shape: f32[1,8], index: 22, kind: input, shape index: {}]
  %s23 = inlined_call_operand.hbm [shape: f32[8,8], index: 23, kind: output, shape index: {}]
  %s24 = sld [smem:[#allocation0]]
  $region174: #{liquid_forward.1} parent=0
    _
  %s26 = ssub.s32 1, %s24
  %s27 = scalar_select 0, %s26, %s24
  $region1: #{liquid_forward.1} parent=0
    #allocation5 [shape = 'u8[4096]{0}', space=vmem, size = 0x1000, scoped, tag = 'input window, operand 0, single buffered']
    #allocation6 [shape = 's32[1]{0}', space=sflag, size = 0x4, scoped, tag = 'scoped memory for liquid_forward.1']
    #allocation7 [shape = 's32[1]{0}', space=sflag, size = 0x4, scoped, tag = 'scoped memory for liquid_forward.1']
    #allocation8 [shape = 'u8[1024]{0}', space=vmem, size = 0x400, scoped, tag = 'input window, operand 2, single buffered']
    #allocation9 [shape = 's32[1]{0}', space=sflag, size = 0x4, scoped, tag = 'scoped memory for liquid_forward.1']
    #allocation10 [shape = 'u8[32768]{0}', space=vmem, size = 0x8000, scoped, tag = 'input window, operand 3, single buffered']
    #allocation11 [shape = 'u8[1024]{0}', space=vmem, size = 0x400, scoped, tag = 'input window, operand 4, single buffered']
    #allocation12 [shape = 's32[1]{0}', space=sflag, size = 0x4, scoped, tag = 'scoped memory for liquid_forward.1']
    #allocation13 [shape = 'u8[32768]{0}', space=vmem, size = 0x8000, scoped, tag = 'input window, operand 5, single buffered']
    #allocation14 [shape = 'u8[1024]{0}', space=vmem, size = 0x400, scoped, tag = 'input window, operand 6, single buffered']
    #allocation15 [shape = 's32[1]{0}', space=sflag, size = 0x4, scoped, tag = 'scoped memory for liquid_forward.1']
    #allocation16 [shape = 'u8[16384]{0}', space=vmem, size = 0x4000, scoped, tag = 'input window, operand 7, single buffered']
    #allocation17 [shape = 'u8[512]{0}', space=vmem, size = 0x400, scoped, tag = 'input window, operand 8, single buffered']
    #allocation18 [shape = 's32[1]{0}', space=sflag, size = 0x4, scoped, tag = 'scoped memory for liquid_forward.1']
    #allocation19 [shape = 'u8[16384]{0}', space=vmem, size = 0x4000, scoped, tag = 'input window, operand 9, single buffered']
    #allocation20 [shape = 'u8[512]{0}', space=vmem, size = 0x400, scoped, tag = 'input window, operand 10, single buffered']
    #allocation21 [shape = 's32[1]{0}', space=sflag, size = 0x4, scoped, tag = 'scoped memory for liquid_forward.1']
    #allocation22 [shape = 'u8[512]{0}', space=vmem, size = 0x400, scoped, tag = 'input window, operand 11, single buffered']
    #allocation23 [shape = 'u8[512]{0}', space=vmem, size = 0x400, scoped, tag = 'input window, operand 12, single buffered']
    #allocation24 [shape = 's32[1]{0}', space=sflag, size = 0x4, scoped, tag = 'scoped memory for liquid_forward.1']
    #allocation25 [shape = 'u8[512]{0}', space=vmem, size = 0x400, scoped, tag = 'input window, operand 13, single buffered']
    #allocation26 [shape = 'u8[512]{0}', space=vmem, size = 0x400, scoped, tag = 'input window, operand 14, single buffered']
    #allocation27 [shape = 's32[1]{0}', space=sflag, size = 0x4, scoped, tag = 'scoped memory for liquid_forward.1']
    #allocation28 [shape = 'u8[512]{0}', space=vmem, size = 0x400, scoped, tag = 'input window, operand 18, single buffered']
    #allocation29 [shape = 'u8[16384]{0}', space=vmem, size = 0x4000, scoped, tag = 'input window, operand 19, single buffered']
    #allocation30 [shape = 's32[1]{0}', space=sflag, size = 0x4, scoped, tag = 'scoped memory for liquid_forward.1']
    #allocation31 [shape = 'u8[512]{0}', space=vmem, size = 0x400, scoped, tag = 'input window, operand 20, single buffered']
    #allocation32 [shape = 'u8[512]{0}', space=vmem, size = 0x400, scoped, tag = 'input window, operand 22, single buffered']
    #allocation33 [shape = 's32[1]{0}', space=sflag, size = 0x4, scoped, tag = 'scoped memory for liquid_forward.1']
    #allocation34 [shape = 'u8[4096]{0}', space=vmem, size = 0x1000, scoped, tag = 'output window, operand 0, single buffered']
    %28 = vsyncpa [#allocation6], 0
    %29 = vsyncpa [#allocation9], 0
    %30 = vsyncpa [#allocation12], 0
    %31 = vsyncpa [#allocation15], 0
    %32 = vsyncpa [#allocation18], 0
    %33 = vsyncpa [#allocation21], 0
    %34 = vsyncpa [#allocation24], 0
    %35 = vsyncpa [#allocation27], 0
    %36 = vsyncpa [#allocation30], 0
    %37 = vsyncpa [#allocation33], 0
    %38 = vsyncpa [#allocation7], 0
    // Predicated region
    $region2: #{liquid_forward.1} parent=1 // pred_check
      _
    $region3: #{liquid_forward.1} parent=1 // pred_check_branch
      %40 = sbr.rel (0) target = $region5
    $region4: #{liquid_forward.1} parent=1 // pred_region
      %42 = vsyncadd [#allocation6], 0
      %s44 = sshll.u32 %s0, 4
      %s45 = int_to_ptr.hbm [resolvable:$true] %s44
      %s46 = sshll.u32 [#allocation5], 4
      %s47 = int_to_ptr.vmem [resolvable:$true] %s46
      %49 = dma.hbm_to_vmem [thread:$0]  %s45, 128, %s47, [#allocation6]
    $region5: #{liquid_forward.1} parent=1 // pred_fallthru
      _
    // Predicated region
    $region6: #{liquid_forward.1} parent=1 // pred_check
      _
    $region7: #{liquid_forward.1} parent=1 // pred_check_branch
      %51 = sbr.rel (0) target = $region9
    $region8: #{liquid_forward.1} parent=1 // pred_region
      _
    $region9: #{liquid_forward.1} parent=1 // pred_fallthru
      _
    // Predicated region
    $region10: #{liquid_forward.1} parent=1 // pred_check
      _
    $region11: #{liquid_forward.1} parent=1 // pred_check_branch
      %53 = sbr.rel (0) target = $region13
    $region12: #{liquid_forward.1} parent=1 // pred_region
      %55 = vsyncadd [#allocation9], 0
      %s57 = sshll.u32 %s2, 4
      %s58 = int_to_ptr.hbm [resolvable:$true] %s57
      %s59 = sshll.u32 [#allocation8], 4
      %s60 = int_to_ptr.vmem [resolvable:$true] %s59
      %62 = dma.hbm_to_vmem [thread:$0]  %s58, 32, %s60, [#allocation9]
    $region13: #{liquid_forward.1} parent=1 // pred_fallthru
      _
    // Predicated region
    $region14: #{liquid_forward.1} parent=1 // pred_check
      _
    $region15: #{liquid_forward.1} parent=1 // pred_check_branch
      %64 = sbr.rel (0) target = $region17
    $region16: #{liquid_forward.1} parent=1 // pred_region
      %66 = vsyncadd [#allocation9], 0
      %s67 = sshll.u32 %s3, 4
      %s68 = int_to_ptr.hbm [resolvable:$true] %s67
      %s69 = sshll.u32 [#allocation10], 4
      %s70 = int_to_ptr.vmem [resolvable:$true] %s69
      %75 = dma.hbm_to_vmem [thread:$0]  %s68, 1024, %s70, [#allocation9], 256, 256, 16
    $region17: #{liquid_forward.1} parent=1 // pred_fallthru
      _
    // Predicated region
    $region18: #{liquid_forward.1} parent=1 // pred_check
      _
    $region19: #{liquid_forward.1} parent=1 // pred_check_branch
      %77 = sbr.rel (0) target = $region21
    $region20: #{liquid_forward.1} parent=1 // pred_region
      %79 = vsyncadd [#allocation12], 0
      %s81 = sshll.u32 %s4, 4
      %s82 = int_to_ptr.hbm [resolvable:$true] %s81
      %s83 = sshll.u32 [#allocation11], 4
      %s84 = int_to_ptr.vmem [resolvable:$true] %s83
      %86 = dma.hbm_to_vmem [thread:$0]  %s82, 32, %s84, [#allocation12]
    $region21: #{liquid_forward.1} parent=1 // pred_fallthru
      _
    // Predicated region
    $region22: #{liquid_forward.1} parent=1 // pred_check
      _
    $region23: #{liquid_forward.1} parent=1 // pred_check_branch
      %88 = sbr.rel (0) target = $region25
    $region24: #{liquid_forward.1} parent=1 // pred_region
      %90 = vsyncadd [#allocation12], 0
      %s91 = sshll.u32 %s5, 4
      %s92 = int_to_ptr.hbm [resolvable:$true] %s91
      %s93 = sshll.u32 [#allocation13], 4
      %s94 = int_to_ptr.vmem [resolvable:$true] %s93
      %99 = dma.hbm_to_vmem [thread:$0]  %s92, 1024, %s94, [#allocation12], 256, 256, 16
    $region25: #{liquid_forward.1} parent=1 // pred_fallthru
      _
    // Predicated region
    $region26: #{liquid_forward.1} parent=1 // pred_check
      _
    $region27: #{liquid_forward.1} parent=1 // pred_check_branch
      %101 = sbr.rel (0) target = $region29
    $region28: #{liquid_forward.1} parent=1 // pred_region
      %103 = vsyncadd [#allocation15], 0
      %s105 = sshll.u32 %s6, 4
      %s106 = int_to_ptr.hbm [resolvable:$true] %s105
      %s107 = sshll.u32 [#allocation14], 4
      %s108 = int_to_ptr.vmem [resolvable:$true] %s107
      %110 = dma.hbm_to_vmem [thread:$0]  %s106, 32, %s108, [#allocation15]
    $region29: #{liquid_forward.1} parent=1 // pred_fallthru
      _
    // Predicated region
    $region30: #{liquid_forward.1} parent=1 // pred_check
      _
    $region31: #{liquid_forward.1} parent=1 // pred_check_branch
      %112 = sbr.rel (0) target = $region33
    $region32: #{liquid_forward.1} parent=1 // pred_region
      %114 = vsyncadd [#allocation15], 0
      %s115 = sshll.u32 %s7, 4
      %s116 = int_to_ptr.hbm [resolvable:$true] %s115
      %s117 = sshll.u32 [#allocation16], 4
      %s118 = int_to_ptr.vmem [resolvable:$true] %s117
      %123 = dma.hbm_to_vmem [thread:$0]  %s116, 512, %s118, [#allocation15], 128, 128, 8
    $region33: #{liquid_forward.1} parent=1 // pred_fallthru
      _
    // Predicated region
    $region34: #{liquid_forward.1} parent=1 // pred_check
      _
    $region35: #{liquid_forward.1} parent=1 // pred_check_branch
      %125 = sbr.rel (0) target = $region37
    $region36: #{liquid_forward.1} parent=1 // pred_region
      %127 = vsyncadd [#allocation18], 0
      %s129 = sshll.u32 %s8, 4
      %s130 = int_to_ptr.hbm [resolvable:$true] %s129
      %s131 = sshll.u32 [#allocation17], 4
      %s132 = int_to_ptr.vmem [resolvable:$true] %s131
      %134 = dma.hbm_to_vmem [thread:$0]  %s130, 16, %s132, [#allocation18]
    $region37: #{liquid_forward.1} parent=1 // pred_fallthru
      _
    // Predicated region
    $region38: #{liquid_forward.1} parent=1 // pred_check
      _
    $region39: #{liquid_forward.1} parent=1 // pred_check_branch
      %136 = sbr.rel (0) target = $region41
    $region40: #{liquid_forward.1} parent=1 // pred_region
      %138 = vsyncadd [#allocation18], 0
      %s139 = sshll.u32 %s9, 4
      %s140 = int_to_ptr.hbm [resolvable:$true] %s139
      %s141 = sshll.u32 [#allocation19], 4
      %s142 = int_to_ptr.vmem [resolvable:$true] %s141
      %147 = dma.hbm_to_vmem [thread:$0]  %s140, 512, %s142, [#allocation18], 128, 128, 8
    $region41: #{liquid_forward.1} parent=1 // pred_fallthru
      _
    // Predicated region
    $region42: #{liquid_forward.1} parent=1 // pred_check
      _
    $region43: #{liquid_forward.1} parent=1 // pred_check_branch
      %149 = sbr.rel (0) target = $region45
    $region44: #{liquid_forward.1} parent=1 // pred_region
      %151 = vsyncadd [#allocation21], 0
      %s153 = sshll.u32 %s10, 4
      %s154 = int_to_ptr.hbm [resolvable:$true] %s153
      %s155 = sshll.u32 [#allocation20], 4
      %s156 = int_to_ptr.vmem [resolvable:$true] %s155
      %158 = dma.hbm_to_vmem [thread:$0]  %s154, 16, %s156, [#allocation21]
    $region45: #{liquid_forward.1} parent=1 // pred_fallthru
      _
    // Predicated region
    $region46: #{liquid_forward.1} parent=1 // pred_check
      _
    $region47: #{liquid_forward.1} parent=1 // pred_check_branch
      %160 = sbr.rel (0) target = $region49
    $region48: #{liquid_forward.1} parent=1 // pred_region
      %162 = vsyncadd [#allocation21], 0
      %s164 = sshll.u32 %s11, 4
      %s165 = int_to_ptr.hbm [resolvable:$true] %s164
      %s166 = sshll.u32 [#allocation22], 4
      %s167 = int_to_ptr.vmem [resolvable:$true] %s166
      %169 = dma.hbm_to_vmem [thread:$0]  %s165, 16, %s167, [#allocation21]
    $region49: #{liquid_forward.1} parent=1 // pred_fallthru
      _
    // Predicated region
    $region50: #{liquid_forward.1} parent=1 // pred_check
      _
    $region51: #{liquid_forward.1} parent=1 // pred_check_branch
      %171 = sbr.rel (0) target = $region53
    $region52: #{liquid_forward.1} parent=1 // pred_region
      %173 = vsyncadd [#allocation24], 0
      %s175 = sshll.u32 %s12, 4
      %s176 = int_to_ptr.hbm [resolvable:$true] %s175
      %s177 = sshll.u32 [#allocation23], 4
      %s178 = int_to_ptr.vmem [resolvable:$true] %s177
      %180 = dma.hbm_to_vmem [thread:$0]  %s176, 16, %s178, [#allocation24]
    $region53: #{liquid_forward.1} parent=1 // pred_fallthru
      _
    // Predicated region
    $region54: #{liquid_forward.1} parent=1 // pred_check
      _
    $region55: #{liquid_forward.1} parent=1 // pred_check_branch
      %182 = sbr.rel (0) target = $region57
    $region56: #{liquid_forward.1} parent=1 // pred_region
      %184 = vsyncadd [#allocation24], 0
      %s186 = sshll.u32 %s13, 4
      %s187 = int_to_ptr.hbm [resolvable:$true] %s186
      %s188 = sshll.u32 [#allocation25], 4
      %s189 = int_to_ptr.vmem [resolvable:$true] %s188
      %191 = dma.hbm_to_vmem [thread:$0]  %s187, 16, %s189, [#allocation24]
    $region57: #{liquid_forward.1} parent=1 // pred_fallthru
      _
    // Predicated region
    $region58: #{liquid_forward.1} parent=1 // pred_check
      _
    $region59: #{liquid_forward.1} parent=1 // pred_check_branch
      %193 = sbr.rel (0) target = $region61
    $region60: #{liquid_forward.1} parent=1 // pred_region
      %195 = vsyncadd [#allocation27], 0
      %s197 = sshll.u32 %s14, 4
      %s198 = int_to_ptr.hbm [resolvable:$true] %s197
      %s199 = sshll.u32 [#allocation26], 4
      %s200 = int_to_ptr.vmem [resolvable:$true] %s199
      %202 = dma.hbm_to_vmem [thread:$0]  %s198, 16, %s200, [#allocation27]
    $region61: #{liquid_forward.1} parent=1 // pred_fallthru
      _
    // Predicated region
    $region62: #{liquid_forward.1} parent=1 // pred_check
      _
    $region63: #{liquid_forward.1} parent=1 // pred_check_branch
      %204 = sbr.rel (0) target = $region65
    $region64: #{liquid_forward.1} parent=1 // pred_region
      _
    $region65: #{liquid_forward.1} parent=1 // pred_fallthru
      _
    // Predicated region
    $region66: #{liquid_forward.1} parent=1 // pred_check
      _
    $region67: #{liquid_forward.1} parent=1 // pred_check_branch
      %206 = sbr.rel (0) target = $region69
    $region68: #{liquid_forward.1} parent=1 // pred_region
      %208 = vsyncadd [#allocation27], 0
      %s210 = sshll.u32 %s18, 4
      %s211 = int_to_ptr.hbm [resolvable:$true] %s210
      %s212 = sshll.u32 [#allocation28], 4
      %s213 = int_to_ptr.vmem [resolvable:$true] %s212
      %215 = dma.hbm_to_vmem [thread:$0]  %s211, 16, %s213, [#allocation27]
    $region69: #{liquid_forward.1} parent=1 // pred_fallthru
      _
    // Predicated region
    $region70: #{liquid_forward.1} parent=1 // pred_check
      _
    $region71: #{liquid_forward.1} parent=1 // pred_check_branch
      %217 = sbr.rel (0) target = $region73
    $region72: #{liquid_forward.1} parent=1 // pred_region
      %219 = vsyncadd [#allocation30], 0
      %s220 = sshll.u32 %s19, 4
      %s221 = int_to_ptr.hbm [resolvable:$true] %s220
      %s222 = sshll.u32 [#allocation29], 4
      %s223 = int_to_ptr.vmem [resolvable:$true] %s222
      %228 = dma.hbm_to_vmem [thread:$0]  %s221, 512, %s223, [#allocation30], 128, 128, 8
    $region73: #{liquid_forward.1} parent=1 // pred_fallthru
      _
    // Predicated region
    $region74: #{liquid_forward.1} parent=1 // pred_check
      _
    $region75: #{liquid_forward.1} parent=1 // pred_check_branch
      %230 = sbr.rel (0) target = $region77
    $region76: #{liquid_forward.1} parent=1 // pred_region
      %232 = vsyncadd [#allocation30], 0
      %s234 = sshll.u32 %s20, 4
      %s235 = int_to_ptr.hbm [resolvable:$true] %s234
      %s236 = sshll.u32 [#allocation31], 4
      %s237 = int_to_ptr.vmem [resolvable:$true] %s236
      %239 = dma.hbm_to_vmem [thread:$0]  %s235, 16, %s237, [#allocation30]
    $region77: #{liquid_forward.1} parent=1 // pred_fallthru
      _
    // Predicated region
    $region78: #{liquid_forward.1} parent=1 // pred_check
      _
    $region79: #{liquid_forward.1} parent=1 // pred_check_branch
      %241 = sbr.rel (0) target = $region81
    $region80: #{liquid_forward.1} parent=1 // pred_region
      _
    $region81: #{liquid_forward.1} parent=1 // pred_fallthru
      _
    // Predicated region
    $region82: #{liquid_forward.1} parent=1 // pred_check
      _
    $region83: #{liquid_forward.1} parent=1 // pred_check_branch
      %243 = sbr.rel (0) target = $region85
    $region84: #{liquid_forward.1} parent=1 // pred_region
      %245 = vsyncadd [#allocation33], 0
      %s247 = sshll.u32 %s22, 4
      %s248 = int_to_ptr.hbm [resolvable:$true] %s247
      %s249 = sshll.u32 [#allocation32], 4
      %s250 = int_to_ptr.vmem [resolvable:$true] %s249
      %252 = dma.hbm_to_vmem [thread:$0]  %s248, 16, %s250, [#allocation33]
    $region85: #{liquid_forward.1} parent=1 // pred_fallthru
      _
    // Predicated region
    $region86: #{liquid_forward.1} parent=1 // pred_check
      _
    $region87: #{liquid_forward.1} parent=1 // pred_check_branch
      %254 = sbr.rel (0) target = $region89
    $region88: #{liquid_forward.1} parent=1 // pred_region
      %256 = dma.done [#allocation6], 128
    $region89: #{liquid_forward.1} parent=1 // pred_fallthru
      _
    // Predicated region
    $region90: #{liquid_forward.1} parent=1 // pred_check
      _
    $region91: #{liquid_forward.1} parent=1 // pred_check_branch
      %258 = sbr.rel (0) target = $region93
    $region92: #{liquid_forward.1} parent=1 // pred_region
      %260 = dma.done [#allocation9], 32
    $region93: #{liquid_forward.1} parent=1 // pred_fallthru
      _
    // Predicated region
    $region94: #{liquid_forward.1} parent=1 // pred_check
      _
    $region95: #{liquid_forward.1} parent=1 // pred_check_branch
      %262 = sbr.rel (0) target = $region97
    $region96: #{liquid_forward.1} parent=1 // pred_region
      %264 = dma.done [#allocation9], 1024
    $region97: #{liquid_forward.1} parent=1 // pred_fallthru
      _
    // Predicated region
    $region98: #{liquid_forward.1} parent=1 // pred_check
      _
    $region99: #{liquid_forward.1} parent=1 // pred_check_branch
      %266 = sbr.rel (0) target = $region101
    $region100: #{liquid_forward.1} parent=1 // pred_region
      %268 = dma.done [#allocation12], 32
    $region101: #{liquid_forward.1} parent=1 // pred_fallthru
      _
    // Predicated region
    $region102: #{liquid_forward.1} parent=1 // pred_check
      _
    $region103: #{liquid_forward.1} parent=1 // pred_check_branch
      %270 = sbr.rel (0) target = $region105
    $region104: #{liquid_forward.1} parent=1 // pred_region
      %272 = dma.done [#allocation12], 1024
    $region105: #{liquid_forward.1} parent=1 // pred_fallthru
      _
    // Predicated region
    $region106: #{liquid_forward.1} parent=1 // pred_check
      _
    $region107: #{liquid_forward.1} parent=1 // pred_check_branch
      %274 = sbr.rel (0) target = $region109
    $region108: #{liquid_forward.1} parent=1 // pred_region
      %276 = dma.done [#allocation15], 32
    $region109: #{liquid_forward.1} parent=1 // pred_fallthru
      _
    // Predicated region
    $region110: #{liquid_forward.1} parent=1 // pred_check
      _
    $region111: #{liquid_forward.1} parent=1 // pred_check_branch
      %278 = sbr.rel (0) target = $region113
    $region112: #{liquid_forward.1} parent=1 // pred_region
      %280 = dma.done [#allocation15], 512
    $region113: #{liquid_forward.1} parent=1 // pred_fallthru
      _
    // Predicated region
    $region114: #{liquid_forward.1} parent=1 // pred_check
      _
    $region115: #{liquid_forward.1} parent=1 // pred_check_branch
      %282 = sbr.rel (0) target = $region117
    $region116: #{liquid_forward.1} parent=1 // pred_region
      %284 = dma.done [#allocation18], 16
    $region117: #{liquid_forward.1} parent=1 // pred_fallthru
      _
    // Predicated region
    $region118: #{liquid_forward.1} parent=1 // pred_check
      _
    $region119: #{liquid_forward.1} parent=1 // pred_check_branch
      %286 = sbr.rel (0) target = $region121
    $region120: #{liquid_forward.1} parent=1 // pred_region
      %288 = dma.done [#allocation18], 512
    $region121: #{liquid_forward.1} parent=1 // pred_fallthru
      _
    // Predicated region
    $region122: #{liquid_forward.1} parent=1 // pred_check
      _
    $region123: #{liquid_forward.1} parent=1 // pred_check_branch
      %290 = sbr.rel (0) target = $region125
    $region124: #{liquid_forward.1} parent=1 // pred_region
      %292 = dma.done [#allocation21], 16
    $region125: #{liquid_forward.1} parent=1 // pred_fallthru
      _
    // Predicated region
    $region126: #{liquid_forward.1} parent=1 // pred_check
      _
    $region127: #{liquid_forward.1} parent=1 // pred_check_branch
      %294 = sbr.rel (0) target = $region129
    $region128: #{liquid_forward.1} parent=1 // pred_region
      %296 = dma.done [#allocation21], 16
    $region129: #{liquid_forward.1} parent=1 // pred_fallthru
      _
    // Predicated region
    $region130: #{liquid_forward.1} parent=1 // pred_check
      _
    $region131: #{liquid_forward.1} parent=1 // pred_check_branch
      %298 = sbr.rel (0) target = $region133
    $region132: #{liquid_forward.1} parent=1 // pred_region
      %300 = dma.done [#allocation24], 16
    $region133: #{liquid_forward.1} parent=1 // pred_fallthru
      _
    // Predicated region
    $region134: #{liquid_forward.1} parent=1 // pred_check
      _
    $region135: #{liquid_forward.1} parent=1 // pred_check_branch
      %302 = sbr.rel (0) target = $region137
    $region136: #{liquid_forward.1} parent=1 // pred_region
      %304 = dma.done [#allocation24], 16
    $region137: #{liquid_forward.1} parent=1 // pred_fallthru
      _
    // Predicated region
    $region138: #{liquid_forward.1} parent=1 // pred_check
      _
    $region139: #{liquid_forward.1} parent=1 // pred_check_branch
      %306 = sbr.rel (0) target = $region141
    $region140: #{liquid_forward.1} parent=1 // pred_region
      %308 = dma.done [#allocation27], 16
    $region141: #{liquid_forward.1} parent=1 // pred_fallthru
      _
    // Predicated region
    $region142: #{liquid_forward.1} parent=1 // pred_check
      _
    $region143: #{liquid_forward.1} parent=1 // pred_check_branch
      %310 = sbr.rel (0) target = $region145
    $region144: #{liquid_forward.1} parent=1 // pred_region
      %312 = dma.done [#allocation27], 16
    $region145: #{liquid_forward.1} parent=1 // pred_fallthru
      _
    // Predicated region
    $region146: #{liquid_forward.1} parent=1 // pred_check
      _
    $region147: #{liquid_forward.1} parent=1 // pred_check_branch
      %314 = sbr.rel (0) target = $region149
    $region148: #{liquid_forward.1} parent=1 // pred_region
      %316 = dma.done [#allocation30], 512
    $region149: #{liquid_forward.1} parent=1 // pred_fallthru
      _
    // Predicated region
    $region150: #{liquid_forward.1} parent=1 // pred_check
      _
    $region151: #{liquid_forward.1} parent=1 // pred_check_branch
      %318 = sbr.rel (0) target = $region153
    $region152: #{liquid_forward.1} parent=1 // pred_region
      %320 = dma.done [#allocation30], 16
    $region153: #{liquid_forward.1} parent=1 // pred_fallthru
      _
    // Predicated region
    $region154: #{liquid_forward.1} parent=1 // pred_check
      _
    $region155: #{liquid_forward.1} parent=1 // pred_check_branch
      %322 = sbr.rel (0) target = $region157
    $region156: #{liquid_forward.1} parent=1 // pred_region
      %324 = dma.done [#allocation33], 16
    $region157: #{liquid_forward.1} parent=1 // pred_fallthru
      _
    // Predicated region
    $region158: #{liquid_forward.1} parent=1 // pred_check
      _
    $region159: #{liquid_forward.1} parent=1 // pred_check_branch
      %326 = sbr.rel target = $region161
    $region160: #{liquid_forward.1} parent=1 // pred_region
      %327 = sst [smem:[#allocation37]] [#allocation36]
      %328 = sst [smem:[#allocation38]] [#allocation35]
    $region161: #{liquid_forward.1} parent=1 // pred_fallthru
      _
    %330 = shalt.err (0)
    %s332 = sshll.u32 %s15, 4
    %s333 = int_to_ptr.hbm [resolvable:$true] %s332
    %s334 = sshll.u32 [#allocation2], 4
    %s335 = int_to_ptr.vmem [resolvable:$true] %s334
    %337 = dma.hbm_to_vmem [thread:$0]  %s333, 8192, %s335, [#allocation4]
    %s338 = scalar_lea.sflag [#allocation4], 1
    // Predicated region
    $region162: #{liquid_forward.1} parent=1 // pred_check
      _
    $region163: #{liquid_forward.1} parent=1 // pred_check_branch
      %340 = sbr.rel target = $region165
    $region164: #{liquid_forward.1} parent=1 // pred_region
      %341 = sst [smem:[#allocation37]] [#allocation40]
      %342 = sst [smem:[#allocation38]] [#allocation39]
    $region165: #{liquid_forward.1} parent=1 // pred_fallthru
      _
    %344 = shalt.err (0)
    %s346 = sshll.u32 %s17, 4
    %s347 = int_to_ptr.hbm [resolvable:$true] %s346
    %s348 = sshll.u32 [#allocation3], 4
    %s349 = int_to_ptr.vmem [resolvable:$true] %s348
    %351 = dma.hbm_to_vmem [thread:$0]  %s347, 8192, %s349, %s338
    %v352 = vld [vmem:[#allocation5] sm:$0xff]
    %v353 = vld [vmem:[%s1] sm:$0xff]
    %v354 = vld [vmem:[%s1 + $0x8] sm:$0xff]
    %v355 = vld [vmem:[%s1 + $0x10] sm:$0xff]
    %v356 = vld [vmem:[%s1 + $0x18] sm:$0xff]
    %v357 = vld [vmem:[#allocation8] sm:$0x3]
    %v359 = vperm.slane %v357, 0
    %v360 = vperm.slane %v357, 1
    %vm363 = vcmask 130048
    %v365 = vsel %vm363, %v352, 0
    %367 = vmatpush.msra.mxu0 0.0
    %368 = vmatpush.msra.mxu0 0.0
    %369 = vmatpush.msra.mxu0 0.0
    %370 = vmatpush.msra.mxu0 0.0
    %371 = vmatpush.msra.mxu0 0.0
    %372 = vmatpush.msra.mxu0 0.0
    %373 = vmatpush.msra.mxu0 0.0
    %374 = vmatpush.msra.mxu0 0.0
    %375 = vmatpush.msra.mxu0 0.0
    %376 = vmatpush.msra.mxu0 0.0
    %377 = vmatpush.msra.mxu0 0.0
    %378 = vmatpush.msra.mxu0 0.0
    %379 = vmatpush.msra.mxu0 0.0
    %380 = vmatpush.msra.mxu0 0.0
    %381 = vmatpush.msra.mxu0 %v355
    %382 = vmatpush.msra.mxu0 %v353
    %383 = vmatmul.f32.gmra.mxu0 %v365
    %v384 = vpop.f32.mrf.mxu0
    %v385 = vadd.f32 %v359, %v384
    %386 = vdwg.mxu0
    %387 = vmatpush.msra.mxu0 0.0
    %388 = vmatpush.msra.mxu0 0.0
    %389 = vmatpush.msra.mxu0 0.0
    %390 = vmatpush.msra.mxu0 0.0
    %391 = vmatpush.msra.mxu0 0.0
    %392 = vmatpush.msra.mxu0 0.0
    %393 = vmatpush.msra.mxu0 0.0
    %394 = vmatpush.msra.mxu0 0.0
    %395 = vmatpush.msra.mxu0 0.0
    %396 = vmatpush.msra.mxu0 0.0
    %397 = vmatpush.msra.mxu0 0.0
    %398 = vmatpush.msra.mxu0 0.0
    %399 = vmatpush.msra.mxu0 0.0
    %400 = vmatpush.msra.mxu0 0.0
    %401 = vmatpush.msra.mxu0 %v356
    %402 = vmatpush.msra.mxu0 %v354
    %403 = vmatmul.f32.gmra.mxu0 %v365
    %v404 = vpop.f32.mrf.mxu0
    %v405 = vadd.f32 %v360, %v404
    %406 = vdwg.mxu0
    %v407 = vlaneseq
    %v408 = vand.u32 %v407, 127
    %vm409 = vcmask 24576
    %v410 = vsel %vm409, %v405, -inf
    %411 = vmax.xlane.f32.xlu0 %v410
    %v412 = vpop.xlane.xlu0 %411
    %v413 = vrot.slane %v412, 4
    %v414 = vmax.f32 %v412, %v413
    %v415 = vrot.slane %v414, 2
    %v416 = vmax.f32 %v414, %v415
    %v417 = vrot.slane %v416, 1
    %v418 = vmax.f32 %v416, %v417
    %s419 = vtos %v418
    %v420 = vstv %s419
    %vm421 = vcmp.eq.f32.partialorder %v405, %v420
    %v422 = vsel %vm421, %v408, 4
    %v423 = vsel %vm409, %v422, 2147483647
    %v424 = vand.u32 %v423, 65535
    %v425 = vshra.s32 %v423, 16
    %v426 = vcvt.s32.f32 %v424
    %v427 = vcvt.s32.f32 %v425
    %428 = vmin.xlane.f32.xlu0 %v427
    %v429 = vpop.xlane.xlu0 %428
    %vm430 = vcmp.eq.f32.partialorder %v427, %v429
    %v431 = vsel %vm430, %v426, inf
    %432 = vmin.xlane.f32.xlu0 %v431
    %v433 = vpop.xlane.xlu0 %432
    %v434 = vcvt.f32.s32 %v433
    %v435 = vcvt.f32.s32 %v429
    %v436 = vshll.u32 %v435, 16
    %v437 = vadd.s32 %v436, %v434
    %v438 = vrot.slane %v437, 4
    %vm439 = vcmp.lt.s32.totalorder %v437, %v438
    %v440 = vsel %vm439, %v437, %v438
    %v441 = vrot.slane %v440, 2
    %vm442 = vcmp.lt.s32.totalorder %v440, %v441
    %v443 = vsel %vm442, %v440, %v441
    %v444 = vrot.slane %v443, 1
    %vm445 = vcmp.lt.s32.totalorder %v443, %v444
    %v446 = vsel %vm445, %v443, %v444
    %s447 = vtos %v446
    %v448 = vstv %s447
    %vm449 = vcmp.eq.s32.totalorder %v408, %v448
    %v450 = vsel %vm449, -inf, %v405
    %v451 = vsel %vm409, %v450, -inf
    %452 = vmax.xlane.f32.xlu0 %v451
    %v453 = vpop.xlane.xlu0 %452
    %v454 = vrot.slane %v453, 4
    %v455 = vmax.f32 %v453, %v454
    %v456 = vrot.slane %v455, 2
    %v457 = vmax.f32 %v455, %v456
    %v458 = vrot.slane %v457, 1
    %v459 = vmax.f32 %v457, %v458
    %s460 = vtos %v459
    %v461 = vstv %s460
    %vm462 = vcmp.eq.f32.partialorder %v450, %v461
    %v463 = vsel %vm462, %v408, 4
    %v464 = vsel %vm409, %v463, 2147483647
    %v465 = vand.u32 %v464, 65535
    %v466 = vshra.s32 %v464, 16
    %v467 = vcvt.s32.f32 %v465
    %v468 = vcvt.s32.f32 %v466
    %469 = vmin.xlane.f32.xlu0 %v468
    %v470 = vpop.xlane.xlu0 %469
    %vm471 = vcmp.eq.f32.partialorder %v468, %v470
    %v472 = vsel %vm471, %v467, inf
    %473 = vmin.xlane.f32.xlu0 %v472
    %v474 = vpop.xlane.xlu0 %473
    %v475 = vcvt.f32.s32 %v474
    %v476 = vcvt.f32.s32 %v470
    %v477 = vshll.u32 %v476, 16
    %v478 = vadd.s32 %v477, %v475
    %v479 = vrot.slane %v478, 4
    %vm480 = vcmp.lt.s32.totalorder %v478, %v479
    %v481 = vsel %vm480, %v478, %v479
    %v482 = vrot.slane %v481, 2
    %vm483 = vcmp.lt.s32.totalorder %v481, %v482
    %v484 = vsel %vm483, %v481, %v482
    %v485 = vrot.slane %v484, 1
    %vm486 = vcmp.lt.s32.totalorder %v484, %v485
    %v487 = vsel %vm486, %v484, %v485
    %s488 = vtos %v487
    %p489 = scmp.eq.s32.totalorder %s447, 0
    %s490 = scalar_select %p489, 1, 0
    %s491 = scvt.s32.f32 %s490
    %p492 = scmp.eq.s32.totalorder %s488, 0
    %s493 = scalar_select %p492, 1, 0
    %s494 = scvt.s32.f32 %s493
    %s495 = sadd.f32 %s491, %s494
    %s496 = smul.f32 %s495, 0.5
    %v497 = vstv %s496
    %v498 = vmul.f32 %v497, %v385
    %v499 = vadd.f32 %v498, 0.0
    %p500 = scmp.eq.s32.totalorder %s447, 1
    %s501 = scalar_select %p500, 1, 0
    %s502 = scvt.s32.f32 %s501
    %p503 = scmp.eq.s32.totalorder %s488, 1
    %s504 = scalar_select %p503, 1, 0
    %s505 = scvt.s32.f32 %s504
    %s506 = sadd.f32 %s502, %s505
    %s507 = smul.f32 %s506, 0.5
    %v508 = vstv %s507
    %v509 = vmul.f32 %v508, %v385
    %511 = vrot.lane.b32.xlu0 %v509, 96
    %v512 = vpop.permute.xlu0 %511
    %v514 = vadd.f32 %v499, %v512
    %p515 = scmp.eq.s32.totalorder %s447, 2
    %s516 = scalar_select %p515, 1, 0
    %s517 = scvt.s32.f32 %s516
    %p518 = scmp.eq.s32.totalorder %s488, 2
    %s519 = scalar_select %p518, 1, 0
    %s520 = scvt.s32.f32 %s519
    %s521 = sadd.f32 %s517, %s520
    %s522 = smul.f32 %s521, 0.5
    %v523 = vstv %s522
    %v524 = vmul.f32 %v523, %v385
    %526 = vrot.lane.b32.xlu0 %v524, 64
    %v527 = vpop.permute.xlu0 %526
    %v529 = vadd.f32 %v514, %v527
    %p530 = scmp.eq.s32.totalorder %s447, 3
    %s531 = scalar_select %p530, 1, 0
    %s532 = scvt.s32.f32 %s531
    %p533 = scmp.eq.s32.totalorder %s488, 3
    %s534 = scalar_select %p533, 1, 0
    %s535 = scvt.s32.f32 %s534
    %s536 = sadd.f32 %s532, %s535
    %s537 = smul.f32 %s536, 0.5
    %v538 = vstv %s537
    %v539 = vmul.f32 %v538, %v385
    %541 = vrot.lane.b32.xlu0 %v539, 32
    %v542 = vpop.permute.xlu0 %541
    %v544 = vadd.f32 %v529, %v542
    %v545 = vld [vmem:[#allocation10] sm:$0xff]
    %v546 = vld [vmem:[#allocation10 + $0x8] sm:$0xff]
    %v547 = vld [vmem:[#allocation10 + $0x10] sm:$0xff]
    %v548 = vld [vmem:[#allocation10 + $0x18] sm:$0xff]
    %v549 = vld [vmem:[#allocation10 + $0x20] sm:$0xff]
    %v550 = vld [vmem:[#allocation10 + $0x28] sm:$0xff]
    %v551 = vld [vmem:[#allocation10 + $0x30] sm:$0xff]
    %v552 = vld [vmem:[#allocation10 + $0x38] sm:$0xff]
    %v553 = vld [vmem:[#allocation11] sm:$0x3]
    %v555 = vperm.slane %v553, 0
    %v556 = vperm.slane %v553, 1
    %vm559 = vcmask 261120
    %v561 = vsel %vm559, %v544, 0
    %563 = vmatpush.msra.mxu0 0.0
    %564 = vmatpush.msra.mxu0 0.0
    %565 = vmatpush.msra.mxu0 0.0
    %566 = vmatpush.msra.mxu0 0.0
    %567 = vmatpush.msra.mxu0 0.0
    %568 = vmatpush.msra.mxu0 0.0
    %569 = vmatpush.msra.mxu0 0.0
    %570 = vmatpush.msra.mxu0 0.0
    %571 = vmatpush.msra.mxu0 0.0
    %572 = vmatpush.msra.mxu0 0.0
    %573 = vmatpush.msra.mxu0 0.0
    %574 = vmatpush.msra.mxu0 0.0
    %575 = vmatpush.msra.mxu0 %v551
    %576 = vmatpush.msra.mxu0 %v549
    %577 = vmatpush.msra.mxu0 %v547
    %578 = vmatpush.msra.mxu0 %v545
    %579 = vmatmul.f32.gmra.mxu0 %v561
    %v580 = vpop.f32.mrf.mxu0
    %v581 = vadd.f32 %v555, %v580
    %582 = vdwg.mxu0
    %583 = vmatpush.msra.mxu0 0.0
    %584 = vmatpush.msra.mxu0 0.0
    %585 = vmatpush.msra.mxu0 0.0
    %586 = vmatpush.msra.mxu0 0.0
    %587 = vmatpush.msra.mxu0 0.0
    %588 = vmatpush.msra.mxu0 0.0
    %589 = vmatpush.msra.mxu0 0.0
    %590 = vmatpush.msra.mxu0 0.0
    %591 = vmatpush.msra.mxu0 0.0
    %592 = vmatpush.msra.mxu0 0.0
    %593 = vmatpush.msra.mxu0 0.0
    %594 = vmatpush.msra.mxu0 0.0
    %595 = vmatpush.msra.mxu0 %v552
    %596 = vmatpush.msra.mxu0 %v550
    %597 = vmatpush.msra.mxu0 %v548
    %598 = vmatpush.msra.mxu0 %v546
    %599 = vmatmul.f32.gmra.mxu0 %v561
    %v600 = vpop.f32.mrf.mxu0
    %v601 = vadd.f32 %v556, %v600
    %602 = vdwg.mxu0
    %v603 = vsel %vm409, %v601, -inf
    %604 = vmax.xlane.f32.xlu0 %v603
    %v605 = vpop.xlane.xlu0 %604
    %v606 = vrot.slane %v605, 4
    %v607 = vmax.f32 %v605, %v606
    %v608 = vrot.slane %v607, 2
    %v609 = vmax.f32 %v607, %v608
    %v610 = vrot.slane %v609, 1
    %v611 = vmax.f32 %v609, %v610
    %s612 = vtos %v611
    %v613 = vstv %s612
    %vm614 = vcmp.eq.f32.partialorder %v601, %v613
    %v615 = vsel %vm614, %v408, 4
    %v616 = vsel %vm409, %v615, 2147483647
    %v617 = vand.u32 %v616, 65535
    %v618 = vshra.s32 %v616, 16
    %v619 = vcvt.s32.f32 %v617
    %v620 = vcvt.s32.f32 %v618
    %621 = vmin.xlane.f32.xlu0 %v620
    %v622 = vpop.xlane.xlu0 %621
    %vm623 = vcmp.eq.f32.partialorder %v620, %v622
    %v624 = vsel %vm623, %v619, inf
    %625 = vmin.xlane.f32.xlu0 %v624
    %v626 = vpop.xlane.xlu0 %625
    %v627 = vcvt.f32.s32 %v626
    %v628 = vcvt.f32.s32 %v622
    %v629 = vshll.u32 %v628, 16
    %v630 = vadd.s32 %v629, %v627
    %v631 = vrot.slane %v630, 4
    %vm632 = vcmp.lt.s32.totalorder %v630, %v631
    %v633 = vsel %vm632, %v630, %v631
    %v634 = vrot.slane %v633, 2
    %vm635 = vcmp.lt.s32.totalorder %v633, %v634
    %v636 = vsel %vm635, %v633, %v634
    %v637 = vrot.slane %v636, 1
    %vm638 = vcmp.lt.s32.totalorder %v636, %v637
    %v639 = vsel %vm638, %v636, %v637
    %s640 = vtos %v639
    %v641 = vstv %s640
    %vm642 = vcmp.eq.s32.totalorder %v408, %v641
    %v643 = vsel %vm642, -inf, %v601
    %v644 = vsel %vm409, %v643, -inf
    %645 = vmax.xlane.f32.xlu0 %v644
    %v646 = vpop.xlane.xlu0 %645
    %v647 = vrot.slane %v646, 4
    %v648 = vmax.f32 %v646, %v647
    %v649 = vrot.slane %v648, 2
    %v650 = vmax.f32 %v648, %v649
    %v651 = vrot.slane %v650, 1
    %v652 = vmax.f32 %v650, %v651
    %s653 = vtos %v652
    %v654 = vstv %s653
    %vm655 = vcmp.eq.f32.partialorder %v643, %v654
    %v656 = vsel %vm655, %v408, 4
    %v657 = vsel %vm409, %v656, 2147483647
    %v658 = vand.u32 %v657, 65535
    %v659 = vshra.s32 %v657, 16
    %v660 = vcvt.s32.f32 %v658
    %v661 = vcvt.s32.f32 %v659
    %662 = vmin.xlane.f32.xlu0 %v661
    %v663 = vpop.xlane.xlu0 %662
    %vm664 = vcmp.eq.f32.partialorder %v661, %v663
    %v665 = vsel %vm664, %v660, inf
    %666 = vmin.xlane.f32.xlu0 %v665
    %v667 = vpop.xlane.xlu0 %666
    %v668 = vcvt.f32.s32 %v667
    %v669 = vcvt.f32.s32 %v663
    %v670 = vshll.u32 %v669, 16
    %v671 = vadd.s32 %v670, %v668
    %v672 = vrot.slane %v671, 4
    %vm673 = vcmp.lt.s32.totalorder %v671, %v672
    %v674 = vsel %vm673, %v671, %v672
    %v675 = vrot.slane %v674, 2
    %vm676 = vcmp.lt.s32.totalorder %v674, %v675
    %v677 = vsel %vm676, %v674, %v675
    %v678 = vrot.slane %v677, 1
    %vm679 = vcmp.lt.s32.totalorder %v677, %v678
    %v680 = vsel %vm679, %v677, %v678
    %s681 = vtos %v680
    %p682 = scmp.eq.s32.totalorder %s640, 0
    %s683 = scalar_select %p682, 1, 0
    %s684 = scvt.s32.f32 %s683
    %p685 = scmp.eq.s32.totalorder %s681, 0
    %s686 = scalar_select %p685, 1, 0
    %s687 = scvt.s32.f32 %s686
    %s688 = sadd.f32 %s684, %s687
    %s689 = smul.f32 %s688, 0.5
    %v690 = vstv %s689
    %v691 = vmul.f32 %v690, %v581
    %v692 = vadd.f32 %v691, 0.0
    %p693 = scmp.eq.s32.totalorder %s640, 1
    %s694 = scalar_select %p693, 1, 0
    %s695 = scvt.s32.f32 %s694
    %p696 = scmp.eq.s32.totalorder %s681, 1
    %s697 = scalar_select %p696, 1, 0
    %s698 = scvt.s32.f32 %s697
    %s699 = sadd.f32 %s695, %s698
    %s700 = smul.f32 %s699, 0.5
    %v701 = vstv %s700
    %v702 = vmul.f32 %v701, %v581
    %704 = vrot.lane.b32.xlu0 %v702, 96
    %v705 = vpop.permute.xlu0 %704
    %v707 = vadd.f32 %v692, %v705
    %p708 = scmp.eq.s32.totalorder %s640, 2
    %s709 = scalar_select %p708, 1, 0
    %s710 = scvt.s32.f32 %s709
    %p711 = scmp.eq.s32.totalorder %s681, 2
    %s712 = scalar_select %p711, 1, 0
    %s713 = scvt.s32.f32 %s712
    %s714 = sadd.f32 %s710, %s713
    %s715 = smul.f32 %s714, 0.5
    %v716 = vstv %s715
    %v717 = vmul.f32 %v716, %v581
    %719 = vrot.lane.b32.xlu0 %v717, 64
    %v720 = vpop.permute.xlu0 %719
    %v722 = vadd.f32 %v707, %v720
    %p723 = scmp.eq.s32.totalorder %s640, 3
    %s724 = scalar_select %p723, 1, 0
    %s725 = scvt.s32.f32 %s724
    %p726 = scmp.eq.s32.totalorder %s681, 3
    %s727 = scalar_select %p726, 1, 0
    %s728 = scvt.s32.f32 %s727
    %s729 = sadd.f32 %s725, %s728
    %s730 = smul.f32 %s729, 0.5
    %v731 = vstv %s730
    %v732 = vmul.f32 %v731, %v581
    %734 = vrot.lane.b32.xlu0 %v732, 32
    %v735 = vpop.permute.xlu0 %734
    %v737 = vadd.f32 %v722, %v735
    %v738 = vld [vmem:[#allocation13] sm:$0xff]
    %v739 = vld [vmem:[#allocation13 + $0x8] sm:$0xff]
    %v740 = vld [vmem:[#allocation13 + $0x10] sm:$0xff]
    %v741 = vld [vmem:[#allocation13 + $0x18] sm:$0xff]
    %v742 = vld [vmem:[#allocation13 + $0x20] sm:$0xff]
    %v743 = vld [vmem:[#allocation13 + $0x28] sm:$0xff]
    %v744 = vld [vmem:[#allocation13 + $0x30] sm:$0xff]
    %v745 = vld [vmem:[#allocation13 + $0x38] sm:$0xff]
    %v746 = vld [vmem:[#allocation14] sm:$0x3]
    %v748 = vperm.slane %v746, 0
    %v749 = vperm.slane %v746, 1
    %v753 = vsel %vm559, %v737, 0
    %755 = vmatpush.msra.mxu0 0.0
    %756 = vmatpush.msra.mxu0 0.0
    %757 = vmatpush.msra.mxu0 0.0
    %758 = vmatpush.msra.mxu0 0.0
    %759 = vmatpush.msra.mxu0 0.0
    %760 = vmatpush.msra.mxu0 0.0
    %761 = vmatpush.msra.mxu0 0.0
    %762 = vmatpush.msra.mxu0 0.0
    %763 = vmatpush.msra.mxu0 0.0
    %764 = vmatpush.msra.mxu0 0.0
    %765 = vmatpush.msra.mxu0 0.0
    %766 = vmatpush.msra.mxu0 0.0
    %767 = vmatpush.msra.mxu0 %v744
    %768 = vmatpush.msra.mxu0 %v742
    %769 = vmatpush.msra.mxu0 %v740
    %770 = vmatpush.msra.mxu0 %v738
    %771 = vmatmul.f32.gmra.mxu0 %v753
    %v772 = vpop.f32.mrf.mxu0
    %v773 = vadd.f32 %v748, %v772
    %774 = vdwg.mxu0
    %775 = vmatpush.msra.mxu0 0.0
    %776 = vmatpush.msra.mxu0 0.0
    %777 = vmatpush.msra.mxu0 0.0
    %778 = vmatpush.msra.mxu0 0.0
    %779 = vmatpush.msra.mxu0 0.0
    %780 = vmatpush.msra.mxu0 0.0
    %781 = vmatpush.msra.mxu0 0.0
    %782 = vmatpush.msra.mxu0 0.0
    %783 = vmatpush.msra.mxu0 0.0
    %784 = vmatpush.msra.mxu0 0.0
    %785 = vmatpush.msra.mxu0 0.0
    %786 = vmatpush.msra.mxu0 0.0
    %787 = vmatpush.msra.mxu0 %v745
    %788 = vmatpush.msra.mxu0 %v743
    %789 = vmatpush.msra.mxu0 %v741
    %790 = vmatpush.msra.mxu0 %v739
    %791 = vmatmul.f32.gmra.mxu0 %v753
    %v792 = vpop.f32.mrf.mxu0
    %v793 = vadd.f32 %v749, %v792
    %794 = vdwg.mxu0
    %v795 = vsel %vm409, %v793, -inf
    %796 = vmax.xlane.f32.xlu0 %v795
    %v797 = vpop.xlane.xlu0 %796
    %v798 = vrot.slane %v797, 4
    %v799 = vmax.f32 %v797, %v798
    %v800 = vrot.slane %v799, 2
    %v801 = vmax.f32 %v799, %v800
    %v802 = vrot.slane %v801, 1
    %v803 = vmax.f32 %v801, %v802
    %s804 = vtos %v803
    %v805 = vstv %s804
    %vm806 = vcmp.eq.f32.partialorder %v793, %v805
    %v807 = vsel %vm806, %v408, 4
    %v808 = vsel %vm409, %v807, 2147483647
    %v809 = vand.u32 %v808, 65535
    %v810 = vshra.s32 %v808, 16
    %v811 = vcvt.s32.f32 %v809
    %v812 = vcvt.s32.f32 %v810
    %813 = vmin.xlane.f32.xlu0 %v812
    %v814 = vpop.xlane.xlu0 %813
    %vm815 = vcmp.eq.f32.partialorder %v812, %v814
    %v816 = vsel %vm815, %v811, inf
    %817 = vmin.xlane.f32.xlu0 %v816
    %v818 = vpop.xlane.xlu0 %817
    %v819 = vcvt.f32.s32 %v818
    %v820 = vcvt.f32.s32 %v814
    %v821 = vshll.u32 %v820, 16
    %v822 = vadd.s32 %v821, %v819
    %v823 = vrot.slane %v822, 4
    %vm824 = vcmp.lt.s32.totalorder %v822, %v823
    %v825 = vsel %vm824, %v822, %v823
    %v826 = vrot.slane %v825, 2
    %vm827 = vcmp.lt.s32.totalorder %v825, %v826
    %v828 = vsel %vm827, %v825, %v826
    %v829 = vrot.slane %v828, 1
    %vm830 = vcmp.lt.s32.totalorder %v828, %v829
    %v831 = vsel %vm830, %v828, %v829
    %s832 = vtos %v831
    %v833 = vstv %s832
    %vm834 = vcmp.eq.s32.totalorder %v408, %v833
    %v835 = vsel %vm834, -inf, %v793
    %v836 = vsel %vm409, %v835, -inf
    %837 = vmax.xlane.f32.xlu0 %v836
    %v838 = vpop.xlane.xlu0 %837
    %v839 = vrot.slane %v838, 4
    %v840 = vmax.f32 %v838, %v839
    %v841 = vrot.slane %v840, 2
    %v842 = vmax.f32 %v840, %v841
    %v843 = vrot.slane %v842, 1
    %v844 = vmax.f32 %v842, %v843
    %s845 = vtos %v844
    %v846 = vstv %s845
    %vm847 = vcmp.eq.f32.partialorder %v835, %v846
    %v848 = vsel %vm847, %v408, 4
    %v849 = vsel %vm409, %v848, 2147483647
    %v850 = vand.u32 %v849, 65535
    %v851 = vshra.s32 %v849, 16
    %v852 = vcvt.s32.f32 %v850
    %v853 = vcvt.s32.f32 %v851
    %854 = vmin.xlane.f32.xlu0 %v853
    %v855 = vpop.xlane.xlu0 %854
    %vm856 = vcmp.eq.f32.partialorder %v853, %v855
    %v857 = vsel %vm856, %v852, inf
    %858 = vmin.xlane.f32.xlu0 %v857
    %v859 = vpop.xlane.xlu0 %858
    %v860 = vcvt.f32.s32 %v859
    %v861 = vcvt.f32.s32 %v855
    %v862 = vshll.u32 %v861, 16
    %v863 = vadd.s32 %v862, %v860
    %v864 = vrot.slane %v863, 4
    %vm865 = vcmp.lt.s32.totalorder %v863, %v864
    %v866 = vsel %vm865, %v863, %v864
    %v867 = vrot.slane %v866, 2
    %vm868 = vcmp.lt.s32.totalorder %v866, %v867
    %v869 = vsel %vm868, %v866, %v867
    %v870 = vrot.slane %v869, 1
    %vm871 = vcmp.lt.s32.totalorder %v869, %v870
    %v872 = vsel %vm871, %v869, %v870
    %s873 = vtos %v872
    %p874 = scmp.eq.s32.totalorder %s832, 0
    %s875 = scalar_select %p874, 1, 0
    %s876 = scvt.s32.f32 %s875
    %p877 = scmp.eq.s32.totalorder %s873, 0
    %s878 = scalar_select %p877, 1, 0
    %s879 = scvt.s32.f32 %s878
    %s880 = sadd.f32 %s876, %s879
    %s881 = smul.f32 %s880, 0.5
    %v882 = vstv %s881
    %v883 = vmul.f32 %v882, %v773
    %v884 = vadd.f32 %v883, 0.0
    %p885 = scmp.eq.s32.totalorder %s832, 1
    %s886 = scalar_select %p885, 1, 0
    %s887 = scvt.s32.f32 %s886
    %p888 = scmp.eq.s32.totalorder %s873, 1
    %s889 = scalar_select %p888, 1, 0
    %s890 = scvt.s32.f32 %s889
    %s891 = sadd.f32 %s887, %s890
    %s892 = smul.f32 %s891, 0.5
    %v893 = vstv %s892
    %v894 = vmul.f32 %v893, %v773
    %896 = vrot.lane.b32.xlu0 %v894, 96
    %v897 = vpop.permute.xlu0 %896
    %v899 = vadd.f32 %v884, %v897
    %p900 = scmp.eq.s32.totalorder %s832, 2
    %s901 = scalar_select %p900, 1, 0
    %s902 = scvt.s32.f32 %s901
    %p903 = scmp.eq.s32.totalorder %s873, 2
    %s904 = scalar_select %p903, 1, 0
    %s905 = scvt.s32.f32 %s904
    %s906 = sadd.f32 %s902, %s905
    %s907 = smul.f32 %s906, 0.5
    %v908 = vstv %s907
    %v909 = vmul.f32 %v908, %v773
    %911 = vrot.lane.b32.xlu0 %v909, 64
    %v912 = vpop.permute.xlu0 %911
    %v914 = vadd.f32 %v899, %v912
    %p915 = scmp.eq.s32.totalorder %s832, 3
    %s916 = scalar_select %p915, 1, 0
    %s917 = scvt.s32.f32 %s916
    %p918 = scmp.eq.s32.totalorder %s873, 3
    %s919 = scalar_select %p918, 1, 0
    %s920 = scvt.s32.f32 %s919
    %s921 = sadd.f32 %s917, %s920
    %s922 = smul.f32 %s921, 0.5
    %v923 = vstv %s922
    %v924 = vmul.f32 %v923, %v773
    %926 = vrot.lane.b32.xlu0 %v924, 32
    %v927 = vpop.permute.xlu0 %926
    %v929 = vadd.f32 %v914, %v927
    %v930 = vld [vmem:[#allocation16] sm:$0xff]
    %v931 = vld [vmem:[#allocation16 + $0x8] sm:$0xff]
    %v932 = vld [vmem:[#allocation16 + $0x10] sm:$0xff]
    %v933 = vld [vmem:[#allocation16 + $0x18] sm:$0xff]
    %v934 = vld [vmem:[#allocation17] sm:$0x1]
    %v936 = vperm.slane %v934, 0
    %v939 = vsel %vm559, %v929, 0
    %941 = vmatpush.msra.mxu0 0.0
    %942 = vmatpush.msra.mxu0 0.0
    %943 = vmatpush.msra.mxu0 0.0
    %944 = vmatpush.msra.mxu0 0.0
    %945 = vmatpush.msra.mxu0 0.0
    %946 = vmatpush.msra.mxu0 0.0
    %947 = vmatpush.msra.mxu0 0.0
    %948 = vmatpush.msra.mxu0 0.0
    %949 = vmatpush.msra.mxu0 0.0
    %950 = vmatpush.msra.mxu0 0.0
    %951 = vmatpush.msra.mxu0 0.0
    %952 = vmatpush.msra.mxu0 0.0
    %953 = vmatpush.msra.mxu0 %v933
    %954 = vmatpush.msra.mxu0 %v932
    %955 = vmatpush.msra.mxu0 %v931
    %956 = vmatpush.msra.mxu0 %v930
    %957 = vmatmul.f32.gmra.mxu0 %v939
    %v958 = vpop.f32.mrf.mxu0
    %v959 = vadd.f32 %v936, %v958
    %960 = vdwg.mxu0
    %962 = vrot.lane.b32.xlu0 %v959, 96
    %v963 = vpop.permute.xlu0 %962
    %vm964 = vcmask 64512
    %v965 = vsel %vm964, %v959, 0
    %v967 = vsel %vm964, %v963, 0
    %969 = vmatpush.xpose.msra.mxu0 0.0
    %970 = vmatpush.xpose.msra.mxu0 0.0
    %971 = vmatpush.xpose.msra.mxu0 0.0
    %972 = vmatpush.xpose.msra.mxu0 0.0
    %973 = vmatpush.xpose.msra.mxu0 0.0
    %974 = vmatpush.xpose.msra.mxu0 0.0
    %975 = vmatpush.xpose.msra.mxu0 0.0
    %976 = vmatpush.xpose.msra.mxu0 0.0
    %977 = vmatpush.xpose.msra.mxu0 0.0
    %978 = vmatpush.xpose.msra.mxu0 0.0
    %979 = vmatpush.xpose.msra.mxu0 0.0
    %980 = vmatpush.xpose.msra.mxu0 0.0
    %981 = vmatpush.xpose.msra.mxu0 0.0
    %982 = vmatpush.xpose.msra.mxu0 0.0
    %983 = vmatpush.xpose.msra.mxu0 0.0
    %984 = vmatpush.xpose.msra.mxu0 %v967
    %985 = vmatmul.f32.gmra.mxu0 %v965
    %v986 = vpop.f32.mrf.mxu0
    %v987 = vadd.f32 0.0, %v986
    %988 = vdwg.mxu0
    %v989 = vmul.f32 %v987, 0.35355338
    %v990 = vsel %vm964, %v989, -inf
    %991 = vmax.xlane.f32.xlu0 %v990
    %v992 = vpop.xlane.xlu0 %991
    %v993 = vsub.f32 %v989, %v992
    %v994 = vmul.f32 %v993, 1.442695
    %v995 = vpow.pop %v994
    %v996 = vsel %vm964, %v995, 0.0
    %997 = vadd.xlane.f32.xlu0 %v996
    %v998 = vpop.xlane.xlu0 %997
    %v999 = vrcp.pop %v998
    %v1000 = vmul.f32 %v995, %v999
    %1001 = vrot.lane.b32.xlu0 %v959, 64
    %v1002 = vpop.permute.xlu0 %1001
    %v1005 = vsel %vm964, %v1000, 0
    %1007 = vmatpush.msra.mxu0 0.0
    %1008 = vmatpush.msra.mxu0 0.0
    %1009 = vmatpush.msra.mxu0 0.0
    %1010 = vmatpush.msra.mxu0 0.0
    %1011 = vmatpush.msra.mxu0 0.0
    %1012 = vmatpush.msra.mxu0 0.0
    %1013 = vmatpush.msra.mxu0 0.0
    %1014 = vmatpush.msra.mxu0 0.0
    %1015 = vmatpush.msra.mxu0 0.0
    %1016 = vmatpush.msra.mxu0 0.0
    %1017 = vmatpush.msra.mxu0 0.0
    %1018 = vmatpush.msra.mxu0 0.0
    %1019 = vmatpush.msra.mxu0 0.0
    %1020 = vmatpush.msra.mxu0 0.0
    %1021 = vmatpush.msra.mxu0 0.0
    %1022 = vmatpush.msra.mxu0 %v1002
    %1023 = vmatmul.f32.gmra.mxu0 %v1005
    %v1024 = vpop.f32.mrf.mxu0
    %v1025 = vadd.f32 0.0, %v1024
    %1026 = vdwg.mxu0
    %1027 = vrot.lane.b32.xlu0 %v959, 120
    %v1028 = vpop.permute.xlu0 %1027
    %1029 = vrot.lane.b32.xlu0 %v959, 88
    %v1030 = vpop.permute.xlu0 %1029
    %v1031 = vsel %vm964, %v1028, 0
    %v1033 = vsel %vm964, %v1030, 0
    %1035 = vmatpush.xpose.msra.mxu0 0.0
    %1036 = vmatpush.xpose.msra.mxu0 0.0
    %1037 = vmatpush.xpose.msra.mxu0 0.0
    %1038 = vmatpush.xpose.msra.mxu0 0.0
    %1039 = vmatpush.xpose.msra.mxu0 0.0
    %1040 = vmatpush.xpose.msra.mxu0 0.0
    %1041 = vmatpush.xpose.msra.mxu0 0.0
    %1042 = vmatpush.xpose.msra.mxu0 0.0
    %1043 = vmatpush.xpose.msra.mxu0 0.0
    %1044 = vmatpush.xpose.msra.mxu0 0.0
    %1045 = vmatpush.xpose.msra.mxu0 0.0
    %1046 = vmatpush.xpose.msra.mxu0 0.0
    %1047 = vmatpush.xpose.msra.mxu0 0.0
    %1048 = vmatpush.xpose.msra.mxu0 0.0
    %1049 = vmatpush.xpose.msra.mxu0 0.0
    %1050 = vmatpush.xpose.msra.mxu0 %v1033
    %1051 = vmatmul.f32.gmra.mxu0 %v1031
    %v1052 = vpop.f32.mrf.mxu0
    %v1053 = vadd.f32 0.0, %v1052
    %1054 = vdwg.mxu0
    %v1055 = vmul.f32 %v1053, 0.35355338
    %v1056 = vsel %vm964, %v1055, -inf
    %1057 = vmax.xlane.f32.xlu0 %v1056
    %v1058 = vpop.xlane.xlu0 %1057
    %v1059 = vsub.f32 %v1055, %v1058
    %v1060 = vmul.f32 %v1059, 1.442695
    %v1061 = vpow.pop %v1060
    %v1062 = vsel %vm964, %v1061, 0.0
    %1063 = vadd.xlane.f32.xlu0 %v1062
    %v1064 = vpop.xlane.xlu0 %1063
    %v1065 = vrcp.pop %v1064
    %v1066 = vmul.f32 %v1061, %v1065
    %1067 = vrot.lane.b32.xlu0 %v959, 56
    %v1068 = vpop.permute.xlu0 %1067
    %v1071 = vsel %vm964, %v1066, 0
    %1073 = vmatpush.msra.mxu0 0.0
    %1074 = vmatpush.msra.mxu0 0.0
    %1075 = vmatpush.msra.mxu0 0.0
    %1076 = vmatpush.msra.mxu0 0.0
    %1077 = vmatpush.msra.mxu0 0.0
    %1078 = vmatpush.msra.mxu0 0.0
    %1079 = vmatpush.msra.mxu0 0.0
    %1080 = vmatpush.msra.mxu0 0.0
    %1081 = vmatpush.msra.mxu0 0.0
    %1082 = vmatpush.msra.mxu0 0.0
    %1083 = vmatpush.msra.mxu0 0.0
    %1084 = vmatpush.msra.mxu0 0.0
    %1085 = vmatpush.msra.mxu0 0.0
    %1086 = vmatpush.msra.mxu0 0.0
    %1087 = vmatpush.msra.mxu0 0.0
    %1088 = vmatpush.msra.mxu0 %v1068
    %1089 = vmatmul.f32.gmra.mxu0 %v1071
    %v1090 = vpop.f32.mrf.mxu0
    %v1091 = vadd.f32 0.0, %v1090
    %1092 = vdwg.mxu0
    %1093 = vrot.lane.b32.xlu0 %v959, 112
    %v1094 = vpop.permute.xlu0 %1093
    %1095 = vrot.lane.b32.xlu0 %v959, 80
    %v1096 = vpop.permute.xlu0 %1095
    %v1097 = vsel %vm964, %v1094, 0
    %v1099 = vsel %vm964, %v1096, 0
    %1101 = vmatpush.xpose.msra.mxu0 0.0
    %1102 = vmatpush.xpose.msra.mxu0 0.0
    %1103 = vmatpush.xpose.msra.mxu0 0.0
    %1104 = vmatpush.xpose.msra.mxu0 0.0
    %1105 = vmatpush.xpose.msra.mxu0 0.0
    %1106 = vmatpush.xpose.msra.mxu0 0.0
    %1107 = vmatpush.xpose.msra.mxu0 0.0
    %1108 = vmatpush.xpose.msra.mxu0 0.0
    %1109 = vmatpush.xpose.msra.mxu0 0.0
    %1110 = vmatpush.xpose.msra.mxu0 0.0
    %1111 = vmatpush.xpose.msra.mxu0 0.0
    %1112 = vmatpush.xpose.msra.mxu0 0.0
    %1113 = vmatpush.xpose.msra.mxu0 0.0
    %1114 = vmatpush.xpose.msra.mxu0 0.0
    %1115 = vmatpush.xpose.msra.mxu0 0.0
    %1116 = vmatpush.xpose.msra.mxu0 %v1099
    %1117 = vmatmul.f32.gmra.mxu0 %v1097
    %v1118 = vpop.f32.mrf.mxu0
    %v1119 = vadd.f32 0.0, %v1118
    %1120 = vdwg.mxu0
    %v1121 = vmul.f32 %v1119, 0.35355338
    %v1122 = vsel %vm964, %v1121, -inf
    %1123 = vmax.xlane.f32.xlu0 %v1122
    %v1124 = vpop.xlane.xlu0 %1123
    %v1125 = vsub.f32 %v1121, %v1124
    %v1126 = vmul.f32 %v1125, 1.442695
    %v1127 = vpow.pop %v1126
    %v1128 = vsel %vm964, %v1127, 0.0
    %1129 = vadd.xlane.f32.xlu0 %v1128
    %v1130 = vpop.xlane.xlu0 %1129
    %v1131 = vrcp.pop %v1130
    %v1132 = vmul.f32 %v1127, %v1131
    %1133 = vrot.lane.b32.xlu0 %v959, 48
    %v1134 = vpop.permute.xlu0 %1133
    %v1137 = vsel %vm964, %v1132, 0
    %1139 = vmatpush.msra.mxu0 0.0
    %1140 = vmatpush.msra.mxu0 0.0
    %1141 = vmatpush.msra.mxu0 0.0
    %1142 = vmatpush.msra.mxu0 0.0
    %1143 = vmatpush.msra.mxu0 0.0
    %1144 = vmatpush.msra.mxu0 0.0
    %1145 = vmatpush.msra.mxu0 0.0
    %1146 = vmatpush.msra.mxu0 0.0
    %1147 = vmatpush.msra.mxu0 0.0
    %1148 = vmatpush.msra.mxu0 0.0
    %1149 = vmatpush.msra.mxu0 0.0
    %1150 = vmatpush.msra.mxu0 0.0
    %1151 = vmatpush.msra.mxu0 0.0
    %1152 = vmatpush.msra.mxu0 0.0
    %1153 = vmatpush.msra.mxu0 0.0
    %1154 = vmatpush.msra.mxu0 %v1134
    %1155 = vmatmul.f32.gmra.mxu0 %v1137
    %v1156 = vpop.f32.mrf.mxu0
    %v1157 = vadd.f32 0.0, %v1156
    %1158 = vdwg.mxu0
    %1159 = vrot.lane.b32.xlu0 %v959, 104
    %v1160 = vpop.permute.xlu0 %1159
    %1161 = vrot.lane.b32.xlu0 %v959, 72
    %v1162 = vpop.permute.xlu0 %1161
    %v1163 = vsel %vm964, %v1160, 0
    %v1165 = vsel %vm964, %v1162, 0
    %1167 = vmatpush.xpose.msra.mxu0 0.0
    %1168 = vmatpush.xpose.msra.mxu0 0.0
    %1169 = vmatpush.xpose.msra.mxu0 0.0
    %1170 = vmatpush.xpose.msra.mxu0 0.0
    %1171 = vmatpush.xpose.msra.mxu0 0.0
    %1172 = vmatpush.xpose.msra.mxu0 0.0
    %1173 = vmatpush.xpose.msra.mxu0 0.0
    %1174 = vmatpush.xpose.msra.mxu0 0.0
    %1175 = vmatpush.xpose.msra.mxu0 0.0
    %1176 = vmatpush.xpose.msra.mxu0 0.0
    %1177 = vmatpush.xpose.msra.mxu0 0.0
    %1178 = vmatpush.xpose.msra.mxu0 0.0
    %1179 = vmatpush.xpose.msra.mxu0 0.0
    %1180 = vmatpush.xpose.msra.mxu0 0.0
    %1181 = vmatpush.xpose.msra.mxu0 0.0
    %1182 = vmatpush.xpose.msra.mxu0 %v1165
    %1183 = vmatmul.f32.gmra.mxu0 %v1163
    %v1184 = vpop.f32.mrf.mxu0
    %v1185 = vadd.f32 0.0, %v1184
    %1186 = vdwg.mxu0
    %v1187 = vmul.f32 %v1185, 0.35355338
    %v1188 = vsel %vm964, %v1187, -inf
    %1189 = vmax.xlane.f32.xlu0 %v1188
    %v1190 = vpop.xlane.xlu0 %1189
    %v1191 = vsub.f32 %v1187, %v1190
    %v1192 = vmul.f32 %v1191, 1.442695
    %v1193 = vpow.pop %v1192
    %v1194 = vsel %vm964, %v1193, 0.0
    %1195 = vadd.xlane.f32.xlu0 %v1194
    %v1196 = vpop.xlane.xlu0 %1195
    %v1197 = vrcp.pop %v1196
    %v1198 = vmul.f32 %v1193, %v1197
    %1199 = vrot.lane.b32.xlu0 %v959, 40
    %v1200 = vpop.permute.xlu0 %1199
    %v1203 = vsel %vm964, %v1198, 0
    %1205 = vmatpush.msra.mxu0 0.0
    %1206 = vmatpush.msra.mxu0 0.0
    %1207 = vmatpush.msra.mxu0 0.0
    %1208 = vmatpush.msra.mxu0 0.0
    %1209 = vmatpush.msra.mxu0 0.0
    %1210 = vmatpush.msra.mxu0 0.0
    %1211 = vmatpush.msra.mxu0 0.0
    %1212 = vmatpush.msra.mxu0 0.0
    %1213 = vmatpush.msra.mxu0 0.0
    %1214 = vmatpush.msra.mxu0 0.0
    %1215 = vmatpush.msra.mxu0 0.0
    %1216 = vmatpush.msra.mxu0 0.0
    %1217 = vmatpush.msra.mxu0 0.0
    %1218 = vmatpush.msra.mxu0 0.0
    %1219 = vmatpush.msra.mxu0 0.0
    %1220 = vmatpush.msra.mxu0 %v1200
    %1221 = vmatmul.f32.gmra.mxu0 %v1203
    %v1222 = vpop.f32.mrf.mxu0
    %v1223 = vadd.f32 0.0, %v1222
    %1224 = vdwg.mxu0
    %1226 = vrot.lane.b32.xlu0 %v1091, 8
    %v1227 = vpop.permute.xlu0 %1226
    %1230 = vrot.lane.b32.xlu0 %v1157, 16
    %v1231 = vpop.permute.xlu0 %1230
    %1234 = vrot.lane.b32.xlu0 %v1223, 24
    %v1235 = vpop.permute.xlu0 %1234
    %v1237 = vsel %vm964, %v1025, %v1227
    %v1238 = vsel %vm363, %v1237, %v1231
    %vm1239 = vcmask 195584
    %v1240 = vsel %vm1239, %v1238, %v1235
    %v1241 = vld [vmem:[#allocation19] sm:$0xff]
    %v1242 = vld [vmem:[#allocation19 + $0x8] sm:$0xff]
    %v1243 = vld [vmem:[#allocation19 + $0x10] sm:$0xff]
    %v1244 = vld [vmem:[#allocation19 + $0x18] sm:$0xff]
    %v1245 = vld [vmem:[#allocation20] sm:$0x1]
    %v1247 = vperm.slane %v1245, 0
    %v1250 = vsel %vm559, %v1240, 0
    %1252 = vmatpush.msra.mxu0 0.0
    %1253 = vmatpush.msra.mxu0 0.0
    %1254 = vmatpush.msra.mxu0 0.0
    %1255 = vmatpush.msra.mxu0 0.0
    %1256 = vmatpush.msra.mxu0 0.0
    %1257 = vmatpush.msra.mxu0 0.0
    %1258 = vmatpush.msra.mxu0 0.0
    %1259 = vmatpush.msra.mxu0 0.0
    %1260 = vmatpush.msra.mxu0 0.0
    %1261 = vmatpush.msra.mxu0 0.0
    %1262 = vmatpush.msra.mxu0 0.0
    %1263 = vmatpush.msra.mxu0 0.0
    %1264 = vmatpush.msra.mxu0 %v1244
    %1265 = vmatpush.msra.mxu0 %v1243
    %1266 = vmatpush.msra.mxu0 %v1242
    %1267 = vmatpush.msra.mxu0 %v1241
    %1268 = vmatmul.f32.gmra.mxu0 %v1250
    %v1269 = vpop.f32.mrf.mxu0
    %v1270 = vadd.f32 %v1247, %v1269
    %1271 = vdwg.mxu0
    %v1272 = vadd.f32 %v929, %v1270
    %v1273 = vld [vmem:[#allocation22] sm:$0x1]
    %v1274 = vld [vmem:[#allocation23] sm:$0x1]
    %v1275 = vsel %vm559, %v1272, 0.0
    %1276 = vadd.xlane.f32.xlu0 %v1275
    %v1277 = vpop.xlane.xlu0 %1276
    %v1278 = vrcp.pop 32.0
    %v1279 = vmul.f32 32.0, %v1278
    %v1280 = vsub.f32 1.0, %v1279
    %v1281 = vmul.f32 %v1278, %v1280
    %v1282 = vadd.f32 %v1278, %v1281
    %vm1283 = vweird.f32 %v1278
    %v1284 = vsel %vm1283, %v1278, %v1282
    %v1285 = vmul.f32 %v1277, %v1284
    %v1286 = vsub.f32 %v1272, %v1285
    %v1287 = vmul.f32 %v1286, %v1286
    %v1288 = vsel %vm559, %v1287, 0.0
    %1289 = vadd.xlane.f32.xlu0 %v1288
    %v1290 = vpop.xlane.xlu0 %1289
    %v1291 = vmul.f32 %v1290, %v1284
    %v1292 = vadd.f32 %v1291, 1e-05
    %v1293 = vrsqrt.pop %v1292
    %v1294 = vmul.f32 %v1293, %v1292
    %v1295 = vmul.f32 %v1294, %v1293
    %v1296 = vmul.f32 0.5, %v1295
    %v1297 = vsub.f32 1.5, %v1296
    %v1298 = vmul.f32 %v1293, %v1297
    %vm1299 = vweird.f32 %v1292
    %vm1300 = vweird.f32 %v1293
    %vm1301 = vmor %vm1299, %vm1300
    %v1302 = vsel %vm1301, %v1293, %v1298
    %v1303 = vmul.f32 %v1286, %v1302
    %v1305 = vperm.slane %v1273, 0
    %v1307 = vmul.f32 %v1303, %v1305
    %v1309 = vperm.slane %v1274, 0
    %v1311 = vadd.f32 %v1307, %v1309
    %s1312 = smul.u32 8, 4
    %s1313 = smul.u32 %s1312, 16
    %s1314 = sshll.u32 %s1313, 4
    %1315 = dma.done [#allocation4], %s1314
    %s1316 = sshll.u32 %s1313, 4
    %1317 = dma.done %s338, %s1316
    %v1318 = vld [vmem:[#allocation2] sm:$0xff]
    %v1319 = vld [vmem:[#allocation2 + $0x8] sm:$0xff]
    %v1320 = vld [vmem:[#allocation2 + $0x10] sm:$0xff]
    %v1321 = vld [vmem:[#allocation2 + $0x18] sm:$0xff]
    %v1322 = vld [vmem:[#allocation2 + $0x20] sm:$0xff]
    %v1323 = vld [vmem:[#allocation2 + $0x28] sm:$0xff]
    %v1324 = vld [vmem:[#allocation2 + $0x30] sm:$0xff]
    %v1325 = vld [vmem:[#allocation2 + $0x38] sm:$0xff]
    %v1326 = vld [vmem:[#allocation2 + $0x40] sm:$0xff]
    %v1327 = vld [vmem:[#allocation2 + $0x48] sm:$0xff]
    %v1328 = vld [vmem:[#allocation2 + $0x50] sm:$0xff]
    %v1329 = vld [vmem:[#allocation2 + $0x58] sm:$0xff]
    %v1330 = vld [vmem:[#allocation2 + $0x60] sm:$0xff]
    %v1331 = vld [vmem:[#allocation2 + $0x68] sm:$0xff]
    %v1332 = vld [vmem:[#allocation2 + $0x70] sm:$0xff]
    %v1333 = vld [vmem:[#allocation2 + $0x78] sm:$0xff]
    %v1334 = vld [vmem:[#allocation2 + $0x80] sm:$0xff]
    %v1335 = vld [vmem:[#allocation2 + $0x88] sm:$0xff]
    %v1336 = vld [vmem:[#allocation2 + $0x90] sm:$0xff]
    %v1337 = vld [vmem:[#allocation2 + $0x98] sm:$0xff]
    %v1338 = vld [vmem:[#allocation2 + $0xa0] sm:$0xff]
    %v1339 = vld [vmem:[#allocation2 + $0xa8] sm:$0xff]
    %v1340 = vld [vmem:[#allocation2 + $0xb0] sm:$0xff]
    %v1341 = vld [vmem:[#allocation2 + $0xb8] sm:$0xff]
    %v1342 = vld [vmem:[#allocation2 + $0xc0] sm:$0xff]
    %v1343 = vld [vmem:[#allocation2 + $0xc8] sm:$0xff]
    %v1344 = vld [vmem:[#allocation2 + $0xd0] sm:$0xff]
    %v1345 = vld [vmem:[#allocation2 + $0xd8] sm:$0xff]
    %v1346 = vld [vmem:[#allocation2 + $0xe0] sm:$0xff]
    %v1347 = vld [vmem:[#allocation2 + $0xe8] sm:$0xff]
    %v1348 = vld [vmem:[#allocation2 + $0xf0] sm:$0xff]
    %v1349 = vld [vmem:[#allocation2 + $0xf8] sm:$0xff]
    %v1350 = vld [vmem:[#allocation2 + $0x100] sm:$0xff]
    %v1351 = vld [vmem:[#allocation2 + $0x108] sm:$0xff]
    %v1352 = vld [vmem:[#allocation2 + $0x110] sm:$0xff]
    %v1353 = vld [vmem:[#allocation2 + $0x118] sm:$0xff]
    %v1354 = vld [vmem:[#allocation2 + $0x120] sm:$0xff]
    %v1355 = vld [vmem:[#allocation2 + $0x128] sm:$0xff]
    %v1356 = vld [vmem:[#allocation2 + $0x130] sm:$0xff]
    %v1357 = vld [vmem:[#allocation2 + $0x138] sm:$0xff]
    %v1358 = vld [vmem:[#allocation2 + $0x140] sm:$0xff]
    %v1359 = vld [vmem:[#allocation2 + $0x148] sm:$0xff]
    %v1360 = vld [vmem:[#allocation2 + $0x150] sm:$0xff]
    %v1361 = vld [vmem:[#allocation2 + $0x158] sm:$0xff]
    %v1362 = vld [vmem:[#allocation2 + $0x160] sm:$0xff]
    %v1363 = vld [vmem:[#allocation2 + $0x168] sm:$0xff]
    %v1364 = vld [vmem:[#allocation2 + $0x170] sm:$0xff]
    %v1365 = vld [vmem:[#allocation2 + $0x178] sm:$0xff]
    %v1366 = vld [vmem:[#allocation2 + $0x180] sm:$0xff]
    %v1367 = vld [vmem:[#allocation2 + $0x188] sm:$0xff]
    %v1368 = vld [vmem:[#allocation2 + $0x190] sm:$0xff]
    %v1369 = vld [vmem:[#allocation2 + $0x198] sm:$0xff]
    %v1370 = vld [vmem:[#allocation2 + $0x1a0] sm:$0xff]
    %v1371 = vld [vmem:[#allocation2 + $0x1a8] sm:$0xff]
    %v1372 = vld [vmem:[#allocation2 + $0x1b0] sm:$0xff]
    %v1373 = vld [vmem:[#allocation2 + $0x1b8] sm:$0xff]
    %v1374 = vld [vmem:[#allocation2 + $0x1c0] sm:$0xff]
    %v1375 = vld [vmem:[#allocation2 + $0x1c8] sm:$0xff]
    %v1376 = vld [vmem:[#allocation2 + $0x1d0] sm:$0xff]
    %v1377 = vld [vmem:[#allocation2 + $0x1d8] sm:$0xff]
    %v1378 = vld [vmem:[#allocation2 + $0x1e0] sm:$0xff]
    %v1379 = vld [vmem:[#allocation2 + $0x1e8] sm:$0xff]
    %v1380 = vld [vmem:[#allocation2 + $0x1f0] sm:$0xff]
    %v1381 = vld [vmem:[#allocation2 + $0x1f8] sm:$0xff]
    %v1382 = vld [vmem:[%s16] sm:$0xff]
    %v1383 = vld [vmem:[%s16 + $0x8] sm:$0xff]
    %v1386 = vperm.slane %v1382, 0
    %v1387 = vperm.slane %v1382, 1
    %v1388 = vperm.slane %v1382, 2
    %v1389 = vperm.slane %v1382, 3
    %v1390 = vperm.slane %v1382, 4
    %v1391 = vperm.slane %v1382, 5
    %v1392 = vperm.slane %v1382, 6
    %v1393 = vperm.slane %v1382, 7
    %v1394 = vperm.slane %v1383, 0
    %v1395 = vperm.slane %v1383, 1
    %v1396 = vperm.slane %v1383, 2
    %v1397 = vperm.slane %v1383, 3
    %v1398 = vperm.slane %v1383, 4
    %v1399 = vperm.slane %v1383, 5
    %v1400 = vperm.slane %v1383, 6
    %v1401 = vperm.slane %v1383, 7
    %v1419 = vsel %vm559, %v1311, 0
    %1421 = vmatpush.msra.mxu0 0.0
    %1422 = vmatpush.msra.mxu0 0.0
    %1423 = vmatpush.msra.mxu0 0.0
    %1424 = vmatpush.msra.mxu0 0.0
    %1425 = vmatpush.msra.mxu0 0.0
    %1426 = vmatpush.msra.mxu0 0.0
    %1427 = vmatpush.msra.mxu0 0.0
    %1428 = vmatpush.msra.mxu0 0.0
    %1429 = vmatpush.msra.mxu0 0.0
    %1430 = vmatpush.msra.mxu0 0.0
    %1431 = vmatpush.msra.mxu0 0.0
    %1432 = vmatpush.msra.mxu0 0.0
    %1433 = vmatpush.msra.mxu0 %v1366
    %1434 = vmatpush.msra.mxu0 %v1350
    %1435 = vmatpush.msra.mxu0 %v1334
    %1436 = vmatpush.msra.mxu0 %v1318
    %1437 = vmatmul.f32.gmra.mxu0 %v1419
    %v1438 = vpop.f32.mrf.mxu0
    %v1439 = vadd.f32 %v1386, %v1438
    %1440 = vdwg.mxu0
    %1441 = vmatpush.msra.mxu0 0.0
    %1442 = vmatpush.msra.mxu0 0.0
    %1443 = vmatpush.msra.mxu0 0.0
    %1444 = vmatpush.msra.mxu0 0.0
    %1445 = vmatpush.msra.mxu0 0.0
    %1446 = vmatpush.msra.mxu0 0.0
    %1447 = vmatpush.msra.mxu0 0.0
    %1448 = vmatpush.msra.mxu0 0.0
    %1449 = vmatpush.msra.mxu0 0.0
    %1450 = vmatpush.msra.mxu0 0.0
    %1451 = vmatpush.msra.mxu0 0.0
    %1452 = vmatpush.msra.mxu0 0.0
    %1453 = vmatpush.msra.mxu0 %v1367
    %1454 = vmatpush.msra.mxu0 %v1351
    %1455 = vmatpush.msra.mxu0 %v1335
    %1456 = vmatpush.msra.mxu0 %v1319
    %1457 = vmatmul.f32.gmra.mxu0 %v1419
    %v1458 = vpop.f32.mrf.mxu0
    %v1459 = vadd.f32 %v1387, %v1458
    %1460 = vdwg.mxu0
    %1461 = vmatpush.msra.mxu0 0.0
    %1462 = vmatpush.msra.mxu0 0.0
    %1463 = vmatpush.msra.mxu0 0.0
    %1464 = vmatpush.msra.mxu0 0.0
    %1465 = vmatpush.msra.mxu0 0.0
    %1466 = vmatpush.msra.mxu0 0.0
    %1467 = vmatpush.msra.mxu0 0.0
    %1468 = vmatpush.msra.mxu0 0.0
    %1469 = vmatpush.msra.mxu0 0.0
    %1470 = vmatpush.msra.mxu0 0.0
    %1471 = vmatpush.msra.mxu0 0.0
    %1472 = vmatpush.msra.mxu0 0.0
    %1473 = vmatpush.msra.mxu0 %v1368
    %1474 = vmatpush.msra.mxu0 %v1352
    %1475 = vmatpush.msra.mxu0 %v1336
    %1476 = vmatpush.msra.mxu0 %v1320
    %1477 = vmatmul.f32.gmra.mxu0 %v1419
    %v1478 = vpop.f32.mrf.mxu0
    %v1479 = vadd.f32 %v1388, %v1478
    %1480 = vdwg.mxu0
    %1481 = vmatpush.msra.mxu0 0.0
    %1482 = vmatpush.msra.mxu0 0.0
    %1483 = vmatpush.msra.mxu0 0.0
    %1484 = vmatpush.msra.mxu0 0.0
    %1485 = vmatpush.msra.mxu0 0.0
    %1486 = vmatpush.msra.mxu0 0.0
    %1487 = vmatpush.msra.mxu0 0.0
    %1488 = vmatpush.msra.mxu0 0.0
    %1489 = vmatpush.msra.mxu0 0.0
    %1490 = vmatpush.msra.mxu0 0.0
    %1491 = vmatpush.msra.mxu0 0.0
    %1492 = vmatpush.msra.mxu0 0.0
    %1493 = vmatpush.msra.mxu0 %v1369
    %1494 = vmatpush.msra.mxu0 %v1353
    %1495 = vmatpush.msra.mxu0 %v1337
    %1496 = vmatpush.msra.mxu0 %v1321
    %1497 = vmatmul.f32.gmra.mxu0 %v1419
    %v1498 = vpop.f32.mrf.mxu0
    %v1499 = vadd.f32 %v1389, %v1498
    %1500 = vdwg.mxu0
    %1501 = vmatpush.msra.mxu0 0.0
    %1502 = vmatpush.msra.mxu0 0.0
    %1503 = vmatpush.msra.mxu0 0.0
    %1504 = vmatpush.msra.mxu0 0.0
    %1505 = vmatpush.msra.mxu0 0.0
    %1506 = vmatpush.msra.mxu0 0.0
    %1507 = vmatpush.msra.mxu0 0.0
    %1508 = vmatpush.msra.mxu0 0.0
    %1509 = vmatpush.msra.mxu0 0.0
    %1510 = vmatpush.msra.mxu0 0.0
    %1511 = vmatpush.msra.mxu0 0.0
    %1512 = vmatpush.msra.mxu0 0.0
    %1513 = vmatpush.msra.mxu0 %v1370
    %1514 = vmatpush.msra.mxu0 %v1354
    %1515 = vmatpush.msra.mxu0 %v1338
    %1516 = vmatpush.msra.mxu0 %v1322
    %1517 = vmatmul.f32.gmra.mxu0 %v1419
    %v1518 = vpop.f32.mrf.mxu0
    %v1519 = vadd.f32 %v1390, %v1518
    %1520 = vdwg.mxu0
    %1521 = vmatpush.msra.mxu0 0.0
    %1522 = vmatpush.msra.mxu0 0.0
    %1523 = vmatpush.msra.mxu0 0.0
    %1524 = vmatpush.msra.mxu0 0.0
    %1525 = vmatpush.msra.mxu0 0.0
    %1526 = vmatpush.msra.mxu0 0.0
    %1527 = vmatpush.msra.mxu0 0.0
    %1528 = vmatpush.msra.mxu0 0.0
    %1529 = vmatpush.msra.mxu0 0.0
    %1530 = vmatpush.msra.mxu0 0.0
    %1531 = vmatpush.msra.mxu0 0.0
    %1532 = vmatpush.msra.mxu0 0.0
    %1533 = vmatpush.msra.mxu0 %v1371
    %1534 = vmatpush.msra.mxu0 %v1355
    %1535 = vmatpush.msra.mxu0 %v1339
    %1536 = vmatpush.msra.mxu0 %v1323
    %1537 = vmatmul.f32.gmra.mxu0 %v1419
    %v1538 = vpop.f32.mrf.mxu0
    %v1539 = vadd.f32 %v1391, %v1538
    %1540 = vdwg.mxu0
    %1541 = vmatpush.msra.mxu0 0.0
    %1542 = vmatpush.msra.mxu0 0.0
    %1543 = vmatpush.msra.mxu0 0.0
    %1544 = vmatpush.msra.mxu0 0.0
    %1545 = vmatpush.msra.mxu0 0.0
    %1546 = vmatpush.msra.mxu0 0.0
    %1547 = vmatpush.msra.mxu0 0.0
    %1548 = vmatpush.msra.mxu0 0.0
    %1549 = vmatpush.msra.mxu0 0.0
    %1550 = vmatpush.msra.mxu0 0.0
    %1551 = vmatpush.msra.mxu0 0.0
    %1552 = vmatpush.msra.mxu0 0.0
    %1553 = vmatpush.msra.mxu0 %v1372
    %1554 = vmatpush.msra.mxu0 %v1356
    %1555 = vmatpush.msra.mxu0 %v1340
    %1556 = vmatpush.msra.mxu0 %v1324
    %1557 = vmatmul.f32.gmra.mxu0 %v1419
    %v1558 = vpop.f32.mrf.mxu0
    %v1559 = vadd.f32 %v1392, %v1558
    %1560 = vdwg.mxu0
    %1561 = vmatpush.msra.mxu0 0.0
    %1562 = vmatpush.msra.mxu0 0.0
    %1563 = vmatpush.msra.mxu0 0.0
    %1564 = vmatpush.msra.mxu0 0.0
    %1565 = vmatpush.msra.mxu0 0.0
    %1566 = vmatpush.msra.mxu0 0.0
    %1567 = vmatpush.msra.mxu0 0.0
    %1568 = vmatpush.msra.mxu0 0.0
    %1569 = vmatpush.msra.mxu0 0.0
    %1570 = vmatpush.msra.mxu0 0.0
    %1571 = vmatpush.msra.mxu0 0.0
    %1572 = vmatpush.msra.mxu0 0.0
    %1573 = vmatpush.msra.mxu0 %v1373
    %1574 = vmatpush.msra.mxu0 %v1357
    %1575 = vmatpush.msra.mxu0 %v1341
    %1576 = vmatpush.msra.mxu0 %v1325
    %1577 = vmatmul.f32.gmra.mxu0 %v1419
    %v1578 = vpop.f32.mrf.mxu0
    %v1579 = vadd.f32 %v1393, %v1578
    %1580 = vdwg.mxu0
    %1581 = vmatpush.msra.mxu0 0.0
    %1582 = vmatpush.msra.mxu0 0.0
    %1583 = vmatpush.msra.mxu0 0.0
    %1584 = vmatpush.msra.mxu0 0.0
    %1585 = vmatpush.msra.mxu0 0.0
    %1586 = vmatpush.msra.mxu0 0.0
    %1587 = vmatpush.msra.mxu0 0.0
    %1588 = vmatpush.msra.mxu0 0.0
    %1589 = vmatpush.msra.mxu0 0.0
    %1590 = vmatpush.msra.mxu0 0.0
    %1591 = vmatpush.msra.mxu0 0.0
    %1592 = vmatpush.msra.mxu0 0.0
    %1593 = vmatpush.msra.mxu0 %v1374
    %1594 = vmatpush.msra.mxu0 %v1358
    %1595 = vmatpush.msra.mxu0 %v1342
    %1596 = vmatpush.msra.mxu0 %v1326
    %1597 = vmatmul.f32.gmra.mxu0 %v1419
    %v1598 = vpop.f32.mrf.mxu0
    %v1599 = vadd.f32 %v1394, %v1598
    %1600 = vdwg.mxu0
    %1601 = vmatpush.msra.mxu0 0.0
    %1602 = vmatpush.msra.mxu0 0.0
    %1603 = vmatpush.msra.mxu0 0.0
    %1604 = vmatpush.msra.mxu0 0.0
    %1605 = vmatpush.msra.mxu0 0.0
    %1606 = vmatpush.msra.mxu0 0.0
    %1607 = vmatpush.msra.mxu0 0.0
    %1608 = vmatpush.msra.mxu0 0.0
    %1609 = vmatpush.msra.mxu0 0.0
    %1610 = vmatpush.msra.mxu0 0.0
    %1611 = vmatpush.msra.mxu0 0.0
    %1612 = vmatpush.msra.mxu0 0.0
    %1613 = vmatpush.msra.mxu0 %v1375
    %1614 = vmatpush.msra.mxu0 %v1359
    %1615 = vmatpush.msra.mxu0 %v1343
    %1616 = vmatpush.msra.mxu0 %v1327
    %1617 = vmatmul.f32.gmra.mxu0 %v1419
    %v1618 = vpop.f32.mrf.mxu0
    %v1619 = vadd.f32 %v1395, %v1618
    %1620 = vdwg.mxu0
    %1621 = vmatpush.msra.mxu0 0.0
    %1622 = vmatpush.msra.mxu0 0.0
    %1623 = vmatpush.msra.mxu0 0.0
    %1624 = vmatpush.msra.mxu0 0.0
    %1625 = vmatpush.msra.mxu0 0.0
    %1626 = vmatpush.msra.mxu0 0.0
    %1627 = vmatpush.msra.mxu0 0.0
    %1628 = vmatpush.msra.mxu0 0.0
    %1629 = vmatpush.msra.mxu0 0.0
    %1630 = vmatpush.msra.mxu0 0.0
    %1631 = vmatpush.msra.mxu0 0.0
    %1632 = vmatpush.msra.mxu0 0.0
    %1633 = vmatpush.msra.mxu0 %v1376
    %1634 = vmatpush.msra.mxu0 %v1360
    %1635 = vmatpush.msra.mxu0 %v1344
    %1636 = vmatpush.msra.mxu0 %v1328
    %1637 = vmatmul.f32.gmra.mxu0 %v1419
    %v1638 = vpop.f32.mrf.mxu0
    %v1639 = vadd.f32 %v1396, %v1638
    %1640 = vdwg.mxu0
    %1641 = vmatpush.msra.mxu0 0.0
    %1642 = vmatpush.msra.mxu0 0.0
    %1643 = vmatpush.msra.mxu0 0.0
    %1644 = vmatpush.msra.mxu0 0.0
    %1645 = vmatpush.msra.mxu0 0.0
    %1646 = vmatpush.msra.mxu0 0.0
    %1647 = vmatpush.msra.mxu0 0.0
    %1648 = vmatpush.msra.mxu0 0.0
    %1649 = vmatpush.msra.mxu0 0.0
    %1650 = vmatpush.msra.mxu0 0.0
    %1651 = vmatpush.msra.mxu0 0.0
    %1652 = vmatpush.msra.mxu0 0.0
    %1653 = vmatpush.msra.mxu0 %v1377
    %1654 = vmatpush.msra.mxu0 %v1361
    %1655 = vmatpush.msra.mxu0 %v1345
    %1656 = vmatpush.msra.mxu0 %v1329
    %1657 = vmatmul.f32.gmra.mxu0 %v1419
    %v1658 = vpop.f32.mrf.mxu0
    %v1659 = vadd.f32 %v1397, %v1658
    %1660 = vdwg.mxu0
    %1661 = vmatpush.msra.mxu0 0.0
    %1662 = vmatpush.msra.mxu0 0.0
    %1663 = vmatpush.msra.mxu0 0.0
    %1664 = vmatpush.msra.mxu0 0.0
    %1665 = vmatpush.msra.mxu0 0.0
    %1666 = vmatpush.msra.mxu0 0.0
    %1667 = vmatpush.msra.mxu0 0.0
    %1668 = vmatpush.msra.mxu0 0.0
    %1669 = vmatpush.msra.mxu0 0.0
    %1670 = vmatpush.msra.mxu0 0.0
    %1671 = vmatpush.msra.mxu0 0.0
    %1672 = vmatpush.msra.mxu0 0.0
    %1673 = vmatpush.msra.mxu0 %v1378
    %1674 = vmatpush.msra.mxu0 %v1362
    %1675 = vmatpush.msra.mxu0 %v1346
    %1676 = vmatpush.msra.mxu0 %v1330
    %1677 = vmatmul.f32.gmra.mxu0 %v1419
    %v1678 = vpop.f32.mrf.mxu0
    %v1679 = vadd.f32 %v1398, %v1678
    %1680 = vdwg.mxu0
    %1681 = vmatpush.msra.mxu0 0.0
    %1682 = vmatpush.msra.mxu0 0.0
    %1683 = vmatpush.msra.mxu0 0.0
    %1684 = vmatpush.msra.mxu0 0.0
    %1685 = vmatpush.msra.mxu0 0.0
    %1686 = vmatpush.msra.mxu0 0.0
    %1687 = vmatpush.msra.mxu0 0.0
    %1688 = vmatpush.msra.mxu0 0.0
    %1689 = vmatpush.msra.mxu0 0.0
    %1690 = vmatpush.msra.mxu0 0.0
    %1691 = vmatpush.msra.mxu0 0.0
    %1692 = vmatpush.msra.mxu0 0.0
    %1693 = vmatpush.msra.mxu0 %v1379
    %1694 = vmatpush.msra.mxu0 %v1363
    %1695 = vmatpush.msra.mxu0 %v1347
    %1696 = vmatpush.msra.mxu0 %v1331
    %1697 = vmatmul.f32.gmra.mxu0 %v1419
    %v1698 = vpop.f32.mrf.mxu0
    %v1699 = vadd.f32 %v1399, %v1698
    %1700 = vdwg.mxu0
    %1701 = vmatpush.msra.mxu0 0.0
    %1702 = vmatpush.msra.mxu0 0.0
    %1703 = vmatpush.msra.mxu0 0.0
    %1704 = vmatpush.msra.mxu0 0.0
    %1705 = vmatpush.msra.mxu0 0.0
    %1706 = vmatpush.msra.mxu0 0.0
    %1707 = vmatpush.msra.mxu0 0.0
    %1708 = vmatpush.msra.mxu0 0.0
    %1709 = vmatpush.msra.mxu0 0.0
    %1710 = vmatpush.msra.mxu0 0.0
    %1711 = vmatpush.msra.mxu0 0.0
    %1712 = vmatpush.msra.mxu0 0.0
    %1713 = vmatpush.msra.mxu0 %v1380
    %1714 = vmatpush.msra.mxu0 %v1364
    %1715 = vmatpush.msra.mxu0 %v1348
    %1716 = vmatpush.msra.mxu0 %v1332
    %1717 = vmatmul.f32.gmra.mxu0 %v1419
    %v1718 = vpop.f32.mrf.mxu0
    %v1719 = vadd.f32 %v1400, %v1718
    %1720 = vdwg.mxu0
    %1721 = vmatpush.msra.mxu0 0.0
    %1722 = vmatpush.msra.mxu0 0.0
    %1723 = vmatpush.msra.mxu0 0.0
    %1724 = vmatpush.msra.mxu0 0.0
    %1725 = vmatpush.msra.mxu0 0.0
    %1726 = vmatpush.msra.mxu0 0.0
    %1727 = vmatpush.msra.mxu0 0.0
    %1728 = vmatpush.msra.mxu0 0.0
    %1729 = vmatpush.msra.mxu0 0.0
    %1730 = vmatpush.msra.mxu0 0.0
    %1731 = vmatpush.msra.mxu0 0.0
    %1732 = vmatpush.msra.mxu0 0.0
    %1733 = vmatpush.msra.mxu0 %v1381
    %1734 = vmatpush.msra.mxu0 %v1365
    %1735 = vmatpush.msra.mxu0 %v1349
    %1736 = vmatpush.msra.mxu0 %v1333
    %1737 = vmatmul.f32.gmra.mxu0 %v1419
    %v1738 = vpop.f32.mrf.mxu0
    %v1739 = vadd.f32 %v1401, %v1738
    %1740 = vdwg.mxu0
    %v1741 = vmax.f32 %v1439, 0.0
    %v1742 = vmax.f32 %v1459, 0.0
    %v1743 = vmax.f32 %v1479, 0.0
    %v1744 = vmax.f32 %v1499, 0.0
    %v1745 = vmax.f32 %v1519, 0.0
    %v1746 = vmax.f32 %v1539, 0.0
    %v1747 = vmax.f32 %v1559, 0.0
    %v1748 = vmax.f32 %v1579, 0.0
    %v1749 = vmax.f32 %v1599, 0.0
    %v1750 = vmax.f32 %v1619, 0.0
    %v1751 = vmax.f32 %v1639, 0.0
    %v1752 = vmax.f32 %v1659, 0.0
    %v1753 = vmax.f32 %v1679, 0.0
    %v1754 = vmax.f32 %v1699, 0.0
    %v1755 = vmax.f32 %v1719, 0.0
    %v1756 = vmax.f32 %v1739, 0.0
    %v1757 = vld [vmem:[#allocation3] sm:$0xff]
    %v1758 = vld [vmem:[#allocation3 + $0x8] sm:$0xff]
    %v1759 = vld [vmem:[#allocation3 + $0x10] sm:$0xff]
    %v1760 = vld [vmem:[#allocation3 + $0x18] sm:$0xff]
    %v1761 = vld [vmem:[#allocation3 + $0x20] sm:$0xff]
    %v1762 = vld [vmem:[#allocation3 + $0x28] sm:$0xff]
    %v1763 = vld [vmem:[#allocation3 + $0x30] sm:$0xff]
    %v1764 = vld [vmem:[#allocation3 + $0x38] sm:$0xff]
    %v1765 = vld [vmem:[#allocation3 + $0x40] sm:$0xff]
    %v1766 = vld [vmem:[#allocation3 + $0x48] sm:$0xff]
    %v1767 = vld [vmem:[#allocation3 + $0x50] sm:$0xff]
    %v1768 = vld [vmem:[#allocation3 + $0x58] sm:$0xff]
    %v1769 = vld [vmem:[#allocation3 + $0x60] sm:$0xff]
    %v1770 = vld [vmem:[#allocation3 + $0x68] sm:$0xff]
    %v1771 = vld [vmem:[#allocation3 + $0x70] sm:$0xff]
    %v1772 = vld [vmem:[#allocation3 + $0x78] sm:$0xff]
    %v1773 = vld [vmem:[#allocation3 + $0x80] sm:$0xff]
    %v1774 = vld [vmem:[#allocation3 + $0x88] sm:$0xff]
    %v1775 = vld [vmem:[#allocation3 + $0x90] sm:$0xff]
    %v1776 = vld [vmem:[#allocation3 + $0x98] sm:$0xff]
    %v1777 = vld [vmem:[#allocation3 + $0xa0] sm:$0xff]
    %v1778 = vld [vmem:[#allocation3 + $0xa8] sm:$0xff]
    %v1779 = vld [vmem:[#allocation3 + $0xb0] sm:$0xff]
    %v1780 = vld [vmem:[#allocation3 + $0xb8] sm:$0xff]
    %v1781 = vld [vmem:[#allocation3 + $0xc0] sm:$0xff]
    %v1782 = vld [vmem:[#allocation3 + $0xc8] sm:$0xff]
    %v1783 = vld [vmem:[#allocation3 + $0xd0] sm:$0xff]
    %v1784 = vld [vmem:[#allocation3 + $0xd8] sm:$0xff]
    %v1785 = vld [vmem:[#allocation3 + $0xe0] sm:$0xff]
    %v1786 = vld [vmem:[#allocation3 + $0xe8] sm:$0xff]
    %v1787 = vld [vmem:[#allocation3 + $0xf0] sm:$0xff]
    %v1788 = vld [vmem:[#allocation3 + $0xf8] sm:$0xff]
    %v1789 = vld [vmem:[#allocation3 + $0x100] sm:$0xff]
    %v1790 = vld [vmem:[#allocation3 + $0x108] sm:$0xff]
    %v1791 = vld [vmem:[#allocation3 + $0x110] sm:$0xff]
    %v1792 = vld [vmem:[#allocation3 + $0x118] sm:$0xff]
    %v1793 = vld [vmem:[#allocation3 + $0x120] sm:$0xff]
    %v1794 = vld [vmem:[#allocation3 + $0x128] sm:$0xff]
    %v1795 = vld [vmem:[#allocation3 + $0x130] sm:$0xff]
    %v1796 = vld [vmem:[#allocation3 + $0x138] sm:$0xff]
    %v1797 = vld [vmem:[#allocation3 + $0x140] sm:$0xff]
    %v1798 = vld [vmem:[#allocation3 + $0x148] sm:$0xff]
    %v1799 = vld [vmem:[#allocation3 + $0x150] sm:$0xff]
    %v1800 = vld [vmem:[#allocation3 + $0x158] sm:$0xff]
    %v1801 = vld [vmem:[#allocation3 + $0x160] sm:$0xff]
    %v1802 = vld [vmem:[#allocation3 + $0x168] sm:$0xff]
    %v1803 = vld [vmem:[#allocation3 + $0x170] sm:$0xff]
    %v1804 = vld [vmem:[#allocation3 + $0x178] sm:$0xff]
    %v1805 = vld [vmem:[#allocation3 + $0x180] sm:$0xff]
    %v1806 = vld [vmem:[#allocation3 + $0x188] sm:$0xff]
    %v1807 = vld [vmem:[#allocation3 + $0x190] sm:$0xff]
    %v1808 = vld [vmem:[#allocation3 + $0x198] sm:$0xff]
    %v1809 = vld [vmem:[#allocation3 + $0x1a0] sm:$0xff]
    %v1810 = vld [vmem:[#allocation3 + $0x1a8] sm:$0xff]
    %v1811 = vld [vmem:[#allocation3 + $0x1b0] sm:$0xff]
    %v1812 = vld [vmem:[#allocation3 + $0x1b8] sm:$0xff]
    %v1813 = vld [vmem:[#allocation3 + $0x1c0] sm:$0xff]
    %v1814 = vld [vmem:[#allocation3 + $0x1c8] sm:$0xff]
    %v1815 = vld [vmem:[#allocation3 + $0x1d0] sm:$0xff]
    %v1816 = vld [vmem:[#allocation3 + $0x1d8] sm:$0xff]
    %v1817 = vld [vmem:[#allocation3 + $0x1e0] sm:$0xff]
    %v1818 = vld [vmem:[#allocation3 + $0x1e8] sm:$0xff]
    %v1819 = vld [vmem:[#allocation3 + $0x1f0] sm:$0xff]
    %v1820 = vld [vmem:[#allocation3 + $0x1f8] sm:$0xff]
    %v1821 = vld [vmem:[#allocation28] sm:$0x1]
    %v1823 = vperm.slane %v1821, 0
    %1825 = vmatpush.xpose.msra.mxu0 0.0
    %1826 = vmatpush.xpose.msra.mxu0 0.0
    %1827 = vmatpush.xpose.msra.mxu0 0.0
    %1828 = vmatpush.xpose.msra.mxu0 0.0
    %1829 = vmatpush.xpose.msra.mxu0 0.0
    %1830 = vmatpush.xpose.msra.mxu0 0.0
    %1831 = vmatpush.xpose.msra.mxu0 0.0
    %1832 = vmatpush.xpose.msra.mxu0 0.0
    %1833 = vmatpush.xpose.msra.mxu0 0.0
    %1834 = vmatpush.xpose.msra.mxu0 0.0
    %1835 = vmatpush.xpose.msra.mxu0 0.0
    %1836 = vmatpush.xpose.msra.mxu0 0.0
    %1837 = vmatpush.xpose.msra.mxu0 %v1805
    %1838 = vmatpush.xpose.msra.mxu0 %v1789
    %1839 = vmatpush.xpose.msra.mxu0 %v1773
    %1840 = vmatpush.xpose.msra.mxu0 %v1757
    %1841 = vmatmul.f32.gmra.mxu0 %v1741
    %v1842 = vpop.f32.mrf.mxu0
    %v1843 = vadd.f32 %v1823, %v1842
    %1844 = vdwg.mxu0
    %1845 = vmatpush.xpose.msra.mxu0 0.0
    %1846 = vmatpush.xpose.msra.mxu0 0.0
    %1847 = vmatpush.xpose.msra.mxu0 0.0
    %1848 = vmatpush.xpose.msra.mxu0 0.0
    %1849 = vmatpush.xpose.msra.mxu0 0.0
    %1850 = vmatpush.xpose.msra.mxu0 0.0
    %1851 = vmatpush.xpose.msra.mxu0 0.0
    %1852 = vmatpush.xpose.msra.mxu0 0.0
    %1853 = vmatpush.xpose.msra.mxu0 0.0
    %1854 = vmatpush.xpose.msra.mxu0 0.0
    %1855 = vmatpush.xpose.msra.mxu0 0.0
    %1856 = vmatpush.xpose.msra.mxu0 0.0
    %1857 = vmatpush.xpose.msra.mxu0 %v1806
    %1858 = vmatpush.xpose.msra.mxu0 %v1790
    %1859 = vmatpush.xpose.msra.mxu0 %v1774
    %1860 = vmatpush.xpose.msra.mxu0 %v1758
    %1861 = vmatmul.f32.gmra.mxu0 %v1742
    %v1862 = vpop.f32.mrf.mxu0
    %v1863 = vadd.f32 %v1843, %v1862
    %1864 = vdwg.mxu0
    %1865 = vmatpush.xpose.msra.mxu0 0.0
    %1866 = vmatpush.xpose.msra.mxu0 0.0
    %1867 = vmatpush.xpose.msra.mxu0 0.0
    %1868 = vmatpush.xpose.msra.mxu0 0.0
    %1869 = vmatpush.xpose.msra.mxu0 0.0
    %1870 = vmatpush.xpose.msra.mxu0 0.0
    %1871 = vmatpush.xpose.msra.mxu0 0.0
    %1872 = vmatpush.xpose.msra.mxu0 0.0
    %1873 = vmatpush.xpose.msra.mxu0 0.0
    %1874 = vmatpush.xpose.msra.mxu0 0.0
    %1875 = vmatpush.xpose.msra.mxu0 0.0
    %1876 = vmatpush.xpose.msra.mxu0 0.0
    %1877 = vmatpush.xpose.msra.mxu0 %v1807
    %1878 = vmatpush.xpose.msra.mxu0 %v1791
    %1879 = vmatpush.xpose.msra.mxu0 %v1775
    %1880 = vmatpush.xpose.msra.mxu0 %v1759
    %1881 = vmatmul.f32.gmra.mxu0 %v1743
    %v1882 = vpop.f32.mrf.mxu0
    %v1883 = vadd.f32 %v1863, %v1882
    %1884 = vdwg.mxu0
    %1885 = vmatpush.xpose.msra.mxu0 0.0
    %1886 = vmatpush.xpose.msra.mxu0 0.0
    %1887 = vmatpush.xpose.msra.mxu0 0.0
    %1888 = vmatpush.xpose.msra.mxu0 0.0
    %1889 = vmatpush.xpose.msra.mxu0 0.0
    %1890 = vmatpush.xpose.msra.mxu0 0.0
    %1891 = vmatpush.xpose.msra.mxu0 0.0
    %1892 = vmatpush.xpose.msra.mxu0 0.0
    %1893 = vmatpush.xpose.msra.mxu0 0.0
    %1894 = vmatpush.xpose.msra.mxu0 0.0
    %1895 = vmatpush.xpose.msra.mxu0 0.0
    %1896 = vmatpush.xpose.msra.mxu0 0.0
    %1897 = vmatpush.xpose.msra.mxu0 %v1808
    %1898 = vmatpush.xpose.msra.mxu0 %v1792
    %1899 = vmatpush.xpose.msra.mxu0 %v1776
    %1900 = vmatpush.xpose.msra.mxu0 %v1760
    %1901 = vmatmul.f32.gmra.mxu0 %v1744
    %v1902 = vpop.f32.mrf.mxu0
    %v1903 = vadd.f32 %v1883, %v1902
    %1904 = vdwg.mxu0
    %1905 = vmatpush.xpose.msra.mxu0 0.0
    %1906 = vmatpush.xpose.msra.mxu0 0.0
    %1907 = vmatpush.xpose.msra.mxu0 0.0
    %1908 = vmatpush.xpose.msra.mxu0 0.0
    %1909 = vmatpush.xpose.msra.mxu0 0.0
    %1910 = vmatpush.xpose.msra.mxu0 0.0
    %1911 = vmatpush.xpose.msra.mxu0 0.0
    %1912 = vmatpush.xpose.msra.mxu0 0.0
    %1913 = vmatpush.xpose.msra.mxu0 0.0
    %1914 = vmatpush.xpose.msra.mxu0 0.0
    %1915 = vmatpush.xpose.msra.mxu0 0.0
    %1916 = vmatpush.xpose.msra.mxu0 0.0
    %1917 = vmatpush.xpose.msra.mxu0 %v1809
    %1918 = vmatpush.xpose.msra.mxu0 %v1793
    %1919 = vmatpush.xpose.msra.mxu0 %v1777
    %1920 = vmatpush.xpose.msra.mxu0 %v1761
    %1921 = vmatmul.f32.gmra.mxu0 %v1745
    %v1922 = vpop.f32.mrf.mxu0
    %v1923 = vadd.f32 %v1903, %v1922
    %1924 = vdwg.mxu0
    %1925 = vmatpush.xpose.msra.mxu0 0.0
    %1926 = vmatpush.xpose.msra.mxu0 0.0
    %1927 = vmatpush.xpose.msra.mxu0 0.0
    %1928 = vmatpush.xpose.msra.mxu0 0.0
    %1929 = vmatpush.xpose.msra.mxu0 0.0
    %1930 = vmatpush.xpose.msra.mxu0 0.0
    %1931 = vmatpush.xpose.msra.mxu0 0.0
    %1932 = vmatpush.xpose.msra.mxu0 0.0
    %1933 = vmatpush.xpose.msra.mxu0 0.0
    %1934 = vmatpush.xpose.msra.mxu0 0.0
    %1935 = vmatpush.xpose.msra.mxu0 0.0
    %1936 = vmatpush.xpose.msra.mxu0 0.0
    %1937 = vmatpush.xpose.msra.mxu0 %v1810
    %1938 = vmatpush.xpose.msra.mxu0 %v1794
    %1939 = vmatpush.xpose.msra.mxu0 %v1778
    %1940 = vmatpush.xpose.msra.mxu0 %v1762
    %1941 = vmatmul.f32.gmra.mxu0 %v1746
    %v1942 = vpop.f32.mrf.mxu0
    %v1943 = vadd.f32 %v1923, %v1942
    %1944 = vdwg.mxu0
    %1945 = vmatpush.xpose.msra.mxu0 0.0
    %1946 = vmatpush.xpose.msra.mxu0 0.0
    %1947 = vmatpush.xpose.msra.mxu0 0.0
    %1948 = vmatpush.xpose.msra.mxu0 0.0
    %1949 = vmatpush.xpose.msra.mxu0 0.0
    %1950 = vmatpush.xpose.msra.mxu0 0.0
    %1951 = vmatpush.xpose.msra.mxu0 0.0
    %1952 = vmatpush.xpose.msra.mxu0 0.0
    %1953 = vmatpush.xpose.msra.mxu0 0.0
    %1954 = vmatpush.xpose.msra.mxu0 0.0
    %1955 = vmatpush.xpose.msra.mxu0 0.0
    %1956 = vmatpush.xpose.msra.mxu0 0.0
    %1957 = vmatpush.xpose.msra.mxu0 %v1811
    %1958 = vmatpush.xpose.msra.mxu0 %v1795
    %1959 = vmatpush.xpose.msra.mxu0 %v1779
    %1960 = vmatpush.xpose.msra.mxu0 %v1763
    %1961 = vmatmul.f32.gmra.mxu0 %v1747
    %v1962 = vpop.f32.mrf.mxu0
    %v1963 = vadd.f32 %v1943, %v1962
    %1964 = vdwg.mxu0
    %1965 = vmatpush.xpose.msra.mxu0 0.0
    %1966 = vmatpush.xpose.msra.mxu0 0.0
    %1967 = vmatpush.xpose.msra.mxu0 0.0
    %1968 = vmatpush.xpose.msra.mxu0 0.0
    %1969 = vmatpush.xpose.msra.mxu0 0.0
    %1970 = vmatpush.xpose.msra.mxu0 0.0
    %1971 = vmatpush.xpose.msra.mxu0 0.0
    %1972 = vmatpush.xpose.msra.mxu0 0.0
    %1973 = vmatpush.xpose.msra.mxu0 0.0
    %1974 = vmatpush.xpose.msra.mxu0 0.0
    %1975 = vmatpush.xpose.msra.mxu0 0.0
    %1976 = vmatpush.xpose.msra.mxu0 0.0
    %1977 = vmatpush.xpose.msra.mxu0 %v1812
    %1978 = vmatpush.xpose.msra.mxu0 %v1796
    %1979 = vmatpush.xpose.msra.mxu0 %v1780
    %1980 = vmatpush.xpose.msra.mxu0 %v1764
    %1981 = vmatmul.f32.gmra.mxu0 %v1748
    %v1982 = vpop.f32.mrf.mxu0
    %v1983 = vadd.f32 %v1963, %v1982
    %1984 = vdwg.mxu0
    %1985 = vmatpush.xpose.msra.mxu0 0.0
    %1986 = vmatpush.xpose.msra.mxu0 0.0
    %1987 = vmatpush.xpose.msra.mxu0 0.0
    %1988 = vmatpush.xpose.msra.mxu0 0.0
    %1989 = vmatpush.xpose.msra.mxu0 0.0
    %1990 = vmatpush.xpose.msra.mxu0 0.0
    %1991 = vmatpush.xpose.msra.mxu0 0.0
    %1992 = vmatpush.xpose.msra.mxu0 0.0
    %1993 = vmatpush.xpose.msra.mxu0 0.0
    %1994 = vmatpush.xpose.msra.mxu0 0.0
    %1995 = vmatpush.xpose.msra.mxu0 0.0
    %1996 = vmatpush.xpose.msra.mxu0 0.0
    %1997 = vmatpush.xpose.msra.mxu0 %v1813
    %1998 = vmatpush.xpose.msra.mxu0 %v1797
    %1999 = vmatpush.xpose.msra.mxu0 %v1781
    %2000 = vmatpush.xpose.msra.mxu0 %v1765
    %2001 = vmatmul.f32.gmra.mxu0 %v1749
    %v2002 = vpop.f32.mrf.mxu0
    %v2003 = vadd.f32 %v1983, %v2002
    %2004 = vdwg.mxu0
    %2005 = vmatpush.xpose.msra.mxu0 0.0
    %2006 = vmatpush.xpose.msra.mxu0 0.0
    %2007 = vmatpush.xpose.msra.mxu0 0.0
    %2008 = vmatpush.xpose.msra.mxu0 0.0
    %2009 = vmatpush.xpose.msra.mxu0 0.0
    %2010 = vmatpush.xpose.msra.mxu0 0.0
    %2011 = vmatpush.xpose.msra.mxu0 0.0
    %2012 = vmatpush.xpose.msra.mxu0 0.0
    %2013 = vmatpush.xpose.msra.mxu0 0.0
    %2014 = vmatpush.xpose.msra.mxu0 0.0
    %2015 = vmatpush.xpose.msra.mxu0 0.0
    %2016 = vmatpush.xpose.msra.mxu0 0.0
    %2017 = vmatpush.xpose.msra.mxu0 %v1814
    %2018 = vmatpush.xpose.msra.mxu0 %v1798
    %2019 = vmatpush.xpose.msra.mxu0 %v1782
    %2020 = vmatpush.xpose.msra.mxu0 %v1766
    %2021 = vmatmul.f32.gmra.mxu0 %v1750
    %v2022 = vpop.f32.mrf.mxu0
    %v2023 = vadd.f32 %v2003, %v2022
    %2024 = vdwg.mxu0
    %2025 = vmatpush.xpose.msra.mxu0 0.0
    %2026 = vmatpush.xpose.msra.mxu0 0.0
    %2027 = vmatpush.xpose.msra.mxu0 0.0
    %2028 = vmatpush.xpose.msra.mxu0 0.0
    %2029 = vmatpush.xpose.msra.mxu0 0.0
    %2030 = vmatpush.xpose.msra.mxu0 0.0
    %2031 = vmatpush.xpose.msra.mxu0 0.0
    %2032 = vmatpush.xpose.msra.mxu0 0.0
    %2033 = vmatpush.xpose.msra.mxu0 0.0
    %2034 = vmatpush.xpose.msra.mxu0 0.0
    %2035 = vmatpush.xpose.msra.mxu0 0.0
    %2036 = vmatpush.xpose.msra.mxu0 0.0
    %2037 = vmatpush.xpose.msra.mxu0 %v1815
    %2038 = vmatpush.xpose.msra.mxu0 %v1799
    %2039 = vmatpush.xpose.msra.mxu0 %v1783
    %2040 = vmatpush.xpose.msra.mxu0 %v1767
    %2041 = vmatmul.f32.gmra.mxu0 %v1751
    %v2042 = vpop.f32.mrf.mxu0
    %v2043 = vadd.f32 %v2023, %v2042
    %2044 = vdwg.mxu0
    %2045 = vmatpush.xpose.msra.mxu0 0.0
    %2046 = vmatpush.xpose.msra.mxu0 0.0
    %2047 = vmatpush.xpose.msra.mxu0 0.0
    %2048 = vmatpush.xpose.msra.mxu0 0.0
    %2049 = vmatpush.xpose.msra.mxu0 0.0
    %2050 = vmatpush.xpose.msra.mxu0 0.0
    %2051 = vmatpush.xpose.msra.mxu0 0.0
    %2052 = vmatpush.xpose.msra.mxu0 0.0
    %2053 = vmatpush.xpose.msra.mxu0 0.0
    %2054 = vmatpush.xpose.msra.mxu0 0.0
    %2055 = vmatpush.xpose.msra.mxu0 0.0
    %2056 = vmatpush.xpose.msra.mxu0 0.0
    %2057 = vmatpush.xpose.msra.mxu0 %v1816
    %2058 = vmatpush.xpose.msra.mxu0 %v1800
    %2059 = vmatpush.xpose.msra.mxu0 %v1784
    %2060 = vmatpush.xpose.msra.mxu0 %v1768
    %2061 = vmatmul.f32.gmra.mxu0 %v1752
    %v2062 = vpop.f32.mrf.mxu0
    %v2063 = vadd.f32 %v2043, %v2062
    %2064 = vdwg.mxu0
    %2065 = vmatpush.xpose.msra.mxu0 0.0
    %2066 = vmatpush.xpose.msra.mxu0 0.0
    %2067 = vmatpush.xpose.msra.mxu0 0.0
    %2068 = vmatpush.xpose.msra.mxu0 0.0
    %2069 = vmatpush.xpose.msra.mxu0 0.0
    %2070 = vmatpush.xpose.msra.mxu0 0.0
    %2071 = vmatpush.xpose.msra.mxu0 0.0
    %2072 = vmatpush.xpose.msra.mxu0 0.0
    %2073 = vmatpush.xpose.msra.mxu0 0.0
    %2074 = vmatpush.xpose.msra.mxu0 0.0
    %2075 = vmatpush.xpose.msra.mxu0 0.0
    %2076 = vmatpush.xpose.msra.mxu0 0.0
    %2077 = vmatpush.xpose.msra.mxu0 %v1817
    %2078 = vmatpush.xpose.msra.mxu0 %v1801
    %2079 = vmatpush.xpose.msra.mxu0 %v1785
    %2080 = vmatpush.xpose.msra.mxu0 %v1769
    %2081 = vmatmul.f32.gmra.mxu0 %v1753
    %v2082 = vpop.f32.mrf.mxu0
    %v2083 = vadd.f32 %v2063, %v2082
    %2084 = vdwg.mxu0
    %2085 = vmatpush.xpose.msra.mxu0 0.0
    %2086 = vmatpush.xpose.msra.mxu0 0.0
    %2087 = vmatpush.xpose.msra.mxu0 0.0
    %2088 = vmatpush.xpose.msra.mxu0 0.0
    %2089 = vmatpush.xpose.msra.mxu0 0.0
    %2090 = vmatpush.xpose.msra.mxu0 0.0
    %2091 = vmatpush.xpose.msra.mxu0 0.0
    %2092 = vmatpush.xpose.msra.mxu0 0.0
    %2093 = vmatpush.xpose.msra.mxu0 0.0
    %2094 = vmatpush.xpose.msra.mxu0 0.0
    %2095 = vmatpush.xpose.msra.mxu0 0.0
    %2096 = vmatpush.xpose.msra.mxu0 0.0
    %2097 = vmatpush.xpose.msra.mxu0 %v1818
    %2098 = vmatpush.xpose.msra.mxu0 %v1802
    %2099 = vmatpush.xpose.msra.mxu0 %v1786
    %2100 = vmatpush.xpose.msra.mxu0 %v1770
    %2101 = vmatmul.f32.gmra.mxu0 %v1754
    %v2102 = vpop.f32.mrf.mxu0
    %v2103 = vadd.f32 %v2083, %v2102
    %2104 = vdwg.mxu0
    %2105 = vmatpush.xpose.msra.mxu0 0.0
    %2106 = vmatpush.xpose.msra.mxu0 0.0
    %2107 = vmatpush.xpose.msra.mxu0 0.0
    %2108 = vmatpush.xpose.msra.mxu0 0.0
    %2109 = vmatpush.xpose.msra.mxu0 0.0
    %2110 = vmatpush.xpose.msra.mxu0 0.0
    %2111 = vmatpush.xpose.msra.mxu0 0.0
    %2112 = vmatpush.xpose.msra.mxu0 0.0
    %2113 = vmatpush.xpose.msra.mxu0 0.0
    %2114 = vmatpush.xpose.msra.mxu0 0.0
    %2115 = vmatpush.xpose.msra.mxu0 0.0
    %2116 = vmatpush.xpose.msra.mxu0 0.0
    %2117 = vmatpush.xpose.msra.mxu0 %v1819
    %2118 = vmatpush.xpose.msra.mxu0 %v1803
    %2119 = vmatpush.xpose.msra.mxu0 %v1787
    %2120 = vmatpush.xpose.msra.mxu0 %v1771
    %2121 = vmatmul.f32.gmra.mxu0 %v1755
    %v2122 = vpop.f32.mrf.mxu0
    %v2123 = vadd.f32 %v2103, %v2122
    %2124 = vdwg.mxu0
    %2125 = vmatpush.xpose.msra.mxu0 0.0
    %2126 = vmatpush.xpose.msra.mxu0 0.0
    %2127 = vmatpush.xpose.msra.mxu0 0.0
    %2128 = vmatpush.xpose.msra.mxu0 0.0
    %2129 = vmatpush.xpose.msra.mxu0 0.0
    %2130 = vmatpush.xpose.msra.mxu0 0.0
    %2131 = vmatpush.xpose.msra.mxu0 0.0
    %2132 = vmatpush.xpose.msra.mxu0 0.0
    %2133 = vmatpush.xpose.msra.mxu0 0.0
    %2134 = vmatpush.xpose.msra.mxu0 0.0
    %2135 = vmatpush.xpose.msra.mxu0 0.0
    %2136 = vmatpush.xpose.msra.mxu0 0.0
    %2137 = vmatpush.xpose.msra.mxu0 %v1820
    %2138 = vmatpush.xpose.msra.mxu0 %v1804
    %2139 = vmatpush.xpose.msra.mxu0 %v1788
    %2140 = vmatpush.xpose.msra.mxu0 %v1772
    %2141 = vmatmul.f32.gmra.mxu0 %v1756
    %v2142 = vpop.f32.mrf.mxu0
    %v2143 = vadd.f32 %v2123, %v2142
    %2144 = vdwg.mxu0
    %v2145 = vadd.f32 %v1311, %v2143
    %v2146 = vld [vmem:[#allocation25] sm:$0x1]
    %v2147 = vld [vmem:[#allocation26] sm:$0x1]
    %v2148 = vsel %vm559, %v2145, 0.0
    %2149 = vadd.xlane.f32.xlu0 %v2148
    %v2150 = vpop.xlane.xlu0 %2149
    %v2151 = vmul.f32 %v2150, %v1284
    %v2152 = vsub.f32 %v2145, %v2151
    %v2153 = vmul.f32 %v2152, %v2152
    %v2154 = vsel %vm559, %v2153, 0.0
    %2155 = vadd.xlane.f32.xlu0 %v2154
    %v2156 = vpop.xlane.xlu0 %2155
    %v2157 = vmul.f32 %v2156, %v1284
    %v2158 = vadd.f32 %v2157, 1e-05
    %v2159 = vrsqrt.pop %v2158
    %v2160 = vmul.f32 %v2159, %v2158
    %v2161 = vmul.f32 %v2160, %v2159
    %v2162 = vmul.f32 0.5, %v2161
    %v2163 = vsub.f32 1.5, %v2162
    %v2164 = vmul.f32 %v2159, %v2163
    %vm2165 = vweird.f32 %v2158
    %vm2166 = vweird.f32 %v2159
    %vm2167 = vmor %vm2165, %vm2166
    %v2168 = vsel %vm2167, %v2159, %v2164
    %v2169 = vmul.f32 %v2152, %v2168
    %v2171 = vperm.slane %v2146, 0
    %v2173 = vmul.f32 %v2169, %v2171
    %v2175 = vperm.slane %v2147, 0
    %v2177 = vadd.f32 %v2173, %v2175
    %v2178 = vld [vmem:[#allocation29] sm:$0xff]
    %v2179 = vld [vmem:[#allocation29 + $0x8] sm:$0xff]
    %v2180 = vld [vmem:[#allocation29 + $0x10] sm:$0xff]
    %v2181 = vld [vmem:[#allocation29 + $0x18] sm:$0xff]
    %v2182 = vld [vmem:[#allocation31] sm:$0x1]
    %v2184 = vperm.slane %v2182, 0
    %v2187 = vsel %vm559, %v2177, 0
    %2189 = vmatpush.msra.mxu0 0.0
    %2190 = vmatpush.msra.mxu0 0.0
    %2191 = vmatpush.msra.mxu0 0.0
    %2192 = vmatpush.msra.mxu0 0.0
    %2193 = vmatpush.msra.mxu0 0.0
    %2194 = vmatpush.msra.mxu0 0.0
    %2195 = vmatpush.msra.mxu0 0.0
    %2196 = vmatpush.msra.mxu0 0.0
    %2197 = vmatpush.msra.mxu0 0.0
    %2198 = vmatpush.msra.mxu0 0.0
    %2199 = vmatpush.msra.mxu0 0.0
    %2200 = vmatpush.msra.mxu0 0.0
    %2201 = vmatpush.msra.mxu0 %v2181
    %2202 = vmatpush.msra.mxu0 %v2180
    %2203 = vmatpush.msra.mxu0 %v2179
    %2204 = vmatpush.msra.mxu0 %v2178
    %2205 = vmatmul.f32.gmra.mxu0 %v2187
    %v2206 = vpop.f32.mrf.mxu0
    %v2207 = vadd.f32 %v2184, %v2206
    %2208 = vdwg.mxu0
    %v2209 = vmax.f32 %v2207, 0.0
    %v2210 = vld [vmem:[%s21] sm:$0xff]
    %v2211 = vld [vmem:[%s21 + $0x8] sm:$0xff]
    %v2212 = vld [vmem:[%s21 + $0x10] sm:$0xff]
    %v2213 = vld [vmem:[%s21 + $0x18] sm:$0xff]
    %v2214 = vld [vmem:[#allocation32] sm:$0x1]
    %v2216 = vperm.slane %v2214, 0
    %v2219 = vsel %vm559, %v2209, 0
    %2221 = vmatpush.msra.mxu0 0.0
    %2222 = vmatpush.msra.mxu0 0.0
    %2223 = vmatpush.msra.mxu0 0.0
    %2224 = vmatpush.msra.mxu0 0.0
    %2225 = vmatpush.msra.mxu0 0.0
    %2226 = vmatpush.msra.mxu0 0.0
    %2227 = vmatpush.msra.mxu0 0.0
    %2228 = vmatpush.msra.mxu0 0.0
    %2229 = vmatpush.msra.mxu0 0.0
    %2230 = vmatpush.msra.mxu0 0.0
    %2231 = vmatpush.msra.mxu0 0.0
    %2232 = vmatpush.msra.mxu0 0.0
    %2233 = vmatpush.msra.mxu0 %v2213
    %2234 = vmatpush.msra.mxu0 %v2212
    %2235 = vmatpush.msra.mxu0 %v2211
    %2236 = vmatpush.msra.mxu0 %v2210
    %2237 = vmatmul.f32.gmra.mxu0 %v2219
    %v2238 = vpop.f32.mrf.mxu0
    %v2239 = vadd.f32 %v2216, %v2238
    %2240 = vdwg.mxu0
    %2241 = vst.msk [vmem:[#allocation34] sm:$0xff] %vm964, %v2239
    // Predicated region
    $region166: #{liquid_forward.1} parent=1 // pred_check
      _
    $region167: #{liquid_forward.1} parent=1 // pred_check_branch
      %2243 = sbr.rel (0) target = $region169
    $region168: #{liquid_forward.1} parent=1 // pred_region
      %2245 = vsyncadd [#allocation7], 0
      %s2247 = sshll.u32 [#allocation34], 4
      %s2248 = int_to_ptr.vmem [resolvable:$true] %s2247
      %s2249 = sshll.u32 %s23, 4
      %s2250 = int_to_ptr.hbm [resolvable:$true] %s2249
      %2252 = dma.vmem_to_hbm [thread:$0]  %s2248, 128, %s2250, [#allocation7]
    $region169: #{liquid_forward.1} parent=1 // pred_fallthru
      _
    // Predicated region
    $region170: #{liquid_forward.1} parent=1 // pred_check
      _
    $region171: #{liquid_forward.1} parent=1 // pred_check_branch
      %2254 = sbr.rel (0) target = $region173
    $region172: #{liquid_forward.1} parent=1 // pred_region
      %2256 = dma.done [#allocation7], 128
    $region173: #{liquid_forward.1} parent=1 // pred_fallthru
      _
    %2257 = vsyncpa [#allocation6], 1
    %2258 = vsyncpa [#allocation9], 1
    %2259 = vsyncpa [#allocation12], 1
    %2260 = vsyncpa [#allocation15], 1
    %2261 = vsyncpa [#allocation18], 1
    %2262 = vsyncpa [#allocation21], 1
    %2263 = vsyncpa [#allocation24], 1
    %2264 = vsyncpa [#allocation27], 1
    %2265 = vsyncpa [#allocation30], 1
    %2266 = vsyncpa [#allocation33], 1
    %2267 = vsyncpa [#allocation7], 1
  %2268 = vsyncmov [#allocation4]
  %s2269 = vpop.sfrf %2268
  %p2270 = scmp.eq.s32.totalorder %s2269, 0
  %p2271 = pneg %p2270
  %2273 = shalt.err (%p2271)
  %s2274 = scalar_lea.sflag [#allocation4], 1
  %2275 = vsyncmov %s2274
  %s2276 = vpop.sfrf %2275
  %p2277 = scmp.eq.s32.totalorder %s2276, 0
  %p2278 = pneg %p2277
  %2280 = shalt.err (%p2278)

</llo_original>
